<compile_context>
chip_gen: v7x
topology: tpu7x:2x2x1
jax: 0.10.0
libtpu: 0.0.40
codegen_flags: <defaults>
</compile_context>

<pallas_src>
import functools
from typing import NamedTuple

import jax
import jax.numpy as jnp
from jax.experimental import pallas as pl
from jax.experimental.pallas import tpu as pltpu


class IcmNetworkOutput(NamedTuple):
    pi_logits: jax.Array
    features: jax.Array
    pred_features: jax.Array


# ----------------------------------------------------------------------------- helpers
def _round_up(x, m):
    return (x + m - 1) // m * m


def _pad2d(x, rows, cols):
    r, c = x.shape
    if r == rows and c == cols:
        return x
    return jnp.pad(x, ((0, rows - r), (0, cols - c)))


def _m_tiling(M, block_m):
    """Pick a row-tile: floor of 16 (bf16 sublane pack), never pad tiny M up to block_m."""
    tm = min(block_m, _round_up(M, 16))
    return tm, _round_up(M, tm)


def _im2col_nhwc(x, k, s, c_real=None):
    """x: [B, H, W, C] (NHWC) -> patches [B*oh*ow, k*k*c_real], feature order
    (kh, kw, c), rows ordered (b, oh, ow).  The channel slice to c_real is part
    of the gather, so padded conv outputs never need a separate slice copy."""
    B, H, W, C = x.shape
    c_real = C if c_real is None else c_real
    oh = (H - k) // s + 1
    ow = (W - k) // s + 1
    r = (jnp.arange(oh) * s)[:, None, None, None] + jnp.arange(k)[None, None, :, None]
    c = (jnp.arange(ow) * s)[None, :, None, None] + jnp.arange(k)[None, None, None, :]
    p = x[:, r, c, :c_real]                        # [B, oh, ow, kh, kw, c_real]
    return p.reshape(B * oh * ow, k * k * c_real), oh, ow


# ----------------------------------------------------------------------------- kernels
def _linear_kernel(x_ref, w_ref, b_ref, o_ref, *, apply_relu):
    # bf16 operands feed the MXU; f32 accumulation; bias-add / ReLU in f32 (VPU).
    acc = jnp.dot(x_ref[...], w_ref[...], preferred_element_type=jnp.float32)
    acc = acc + b_ref[...]
    if apply_relu:
        acc = jnp.maximum(acc, 0.0)
    o_ref[...] = acc.astype(o_ref.dtype)


def _heads_kernel(f1_ref, ft_ref, ah_ref,
                  fw1a_ref, fw1b_ref, fb1_ref, fw2_ref, fb2_ref,
                  iw1a_ref, iw1b_ref, ib1_ref, iw2_ref, ib2_ref,
                  pred_ref, pi_ref):
    """Both ICM heads fused; cat([a, b]) @ W1 computed as a@W1a + b@W1b."""
    f1 = f1_ref[...]
    # forward_net: Linear -> ReLU -> Linear on cat[feat_tm1, onehot(a)]
    hf = jnp.dot(f1, fw1a_ref[...], preferred_element_type=jnp.float32)
    hf = hf + jnp.dot(ah_ref[...], fw1b_ref[...], preferred_element_type=jnp.float32)
    hf = jnp.maximum(hf + fb1_ref[...], 0.0)
    pred = jnp.dot(hf.astype(jnp.bfloat16), fw2_ref[...],
                   preferred_element_type=jnp.float32)
    pred_ref[...] = (pred + fb2_ref[...]).astype(pred_ref.dtype)
    # inverse_net: Linear -> ReLU -> Linear on cat[feat_tm1, feat_t]
    hi = jnp.dot(f1, iw1a_ref[...], preferred_element_type=jnp.float32)
    hi = hi + jnp.dot(ft_ref[...], iw1b_ref[...], preferred_element_type=jnp.float32)
    hi = jnp.maximum(hi + ib1_ref[...], 0.0)
    pi = jnp.dot(hi.astype(jnp.bfloat16), iw2_ref[...],
                 preferred_element_type=jnp.float32)
    pi_ref[...] = (pi + ib2_ref[...]).astype(pi_ref.dtype)


# ----------------------------------------------------------------------------- wrappers
def _pallas_linear(x, wp, bp, *, relu, out_dtype, block_m=256):
    """y = x @ wp + bp (optional ReLU).  wp: [Kp, Np] bf16 (K/N zero-padded to
    multiples of 128), bp: [1, Np] f32, x: [M, K<=Kp].  Returns [M, Np]."""
    M, K = x.shape
    Kp, Np = wp.shape
    tm, Mp = _m_tiling(M, block_m)
    xp = _pad2d(x.astype(jnp.bfloat16), Mp, Kp)
    out = pl.pallas_call(
        functools.partial(_linear_kernel, apply_relu=relu),
        out_shape=jax.ShapeDtypeStruct((Mp, Np), out_dtype),
        grid_spec=pltpu.PrefetchScalarGridSpec(
            num_scalar_prefetch=0,
            grid=(Mp // tm,),
            in_specs=[
                pl.BlockSpec((tm, Kp), lambda i: (i, 0)),   # streamed rows
                pl.BlockSpec((Kp, Np), lambda i: (0, 0)),   # weights (resident)
                pl.BlockSpec((1, Np), lambda i: (0, 0)),    # bias
            ],
            out_specs=pl.BlockSpec((tm, Np), lambda i: (i, 0)),
        ),
        compiler_params=pltpu.CompilerParams(
            dimension_semantics=("parallel",)),
        cost_estimate=pl.CostEstimate(           # real (unpadded) M
            flops=2 * M * K * Np,
            transcendentals=0,
            bytes_accessed=M * Kp * 2 + Kp * Np * 2 + Np * 4
                           + M * Np * jnp.dtype(out_dtype).itemsize),
    )(xp, wp, bp)
    return out if Mp == M else out[:M]


def _pallas_heads(feat_tm1, feat_t, onehot, fwd, inv, *, block_m=256):
    """Both heads (forward_net & inverse_net) in a single fused pallas_call."""
    M = feat_tm1.shape[0]
    Kf, Hf = fwd["w1a"].shape
    Ka = fwd["w1b"].shape[0]
    Kt = inv["w1b"].shape[0]
    Hi = inv["w1a"].shape[1]
    Nf = fwd["w2"].shape[1]
    Ni = inv["w2"].shape[1]
    tm, Mp = _m_tiling(M, block_m)
    f1 = _pad2d(feat_tm1.astype(jnp.bfloat16), Mp, Kf)
    ft = _pad2d(feat_t.astype(jnp.bfloat16), Mp, Kt)
    ah = _pad2d(onehot.astype(jnp.bfloat16), Mp, Ka)
    row = lambda i: (i, 0)
    rep = lambda i: (0, 0)
    pred, pi = pl.pallas_call(
        _heads_kernel,
        out_shape=(jax.ShapeDtypeStruct((Mp, Nf), jnp.float32),
                   jax.ShapeDtypeStruct((Mp, Ni), jnp.float32)),
        grid_spec=pltpu.PrefetchScalarGridSpec(
            num_scalar_prefetch=0,
            grid=(Mp // tm,),
            in_specs=[
                pl.BlockSpec((tm, Kf), row),    # feat_tm1
                pl.BlockSpec((tm, Kt), row),    # feat_t
                pl.BlockSpec((tm, Ka), row),    # onehot(a)
                pl.BlockSpec((Kf, Hf), rep), pl.BlockSpec((Ka, Hf), rep),
                pl.BlockSpec((1, Hf), rep),
                pl.BlockSpec((Hf, Nf), rep), pl.BlockSpec((1, Nf), rep),
                pl.BlockSpec((Kf, Hi), rep), pl.BlockSpec((Kt, Hi), rep),
                pl.BlockSpec((1, Hi), rep),
                pl.BlockSpec((Hi, Ni), rep), pl.BlockSpec((1, Ni), rep),
            ],
            out_specs=[pl.BlockSpec((tm, Nf), row),
                       pl.BlockSpec((tm, Ni), row)],
        ),
        compiler_params=pltpu.CompilerParams(
            dimension_semantics=("parallel",)),
        cost_estimate=pl.CostEstimate(
            flops=2 * M * ((Kf + Ka) * Hf + Hf * Nf + (Kf + Kt) * Hi + Hi * Ni),
            transcendentals=0,
            bytes_accessed=(M * (Kf + Kt + Ka)
                            + (Kf + Ka) * Hf + Hf * Nf
                            + (Kf + Kt) * Hi + Hi * Ni) * 2
                           + (Hf + Nf + Hi + Ni) * 4
                           + M * (Nf + Ni) * 4),
    )(f1, ft, ah,
      fwd["w1a"], fwd["w1b"], fwd["b1"], fwd["w2"], fwd["b2"],
      inv["w1a"], inv["w1b"], inv["b1"], inv["w2"], inv["b2"])
    return pred[:M, :fwd["n_out"]], pi[:M, :inv["n_out"]]


# ----------------------------------------------------------------------------- model
_CONV_CFG = (("conv1", 8, 4), ("conv2", 4, 2), ("conv3", 3, 1))


def _nature_cnn_body(x, prep, *, conv_block_m=512, block_m=256):
    """x: [Bs, H, W, C] bf16 (raw 0..255 pixels; /255 folded into conv1 weights).
    Returns features [Bs, 256] f32."""
    Bs = x.shape[0]
    h = x
    c_real = x.shape[-1]
    for name, k, s in _CONV_CFG:
        wp, bp, oc = prep[name]
        patches, oh, ow = _im2col_nhwc(h, k, s, c_real)
        out = _pallas_linear(patches, wp, bp, relu=True,
                             out_dtype=jnp.bfloat16, block_m=conv_block_m)
        h = out.reshape(Bs, oh, ow, out.shape[-1])   # stay NHWC, channels stay padded
        c_real = oc
    wp, bp, nf = prep["fc"]
    flat = h[..., :c_real].reshape(Bs, -1)           # NHWC flatten: (h, w, c) order
    feat = _pallas_linear(flat, wp, bp, relu=True,
                          out_dtype=jnp.float32, block_m=block_m)
    return feat[:, :nf]


def icm_forward(s_tm1, a_tm1, s_t, prep, num_actions, *,
                conv_block_m=512, block_m=256):
    B = s_tm1.shape[0]
    # Run the body ONCE on the stacked batch (s_tm1 ; s_t).  NHWC layout; the
    # uint8 -> bf16 cast is exact and /255 lives in conv1's prepped weights.
    s = jnp.concatenate([s_tm1, s_t], axis=0)
    s = jnp.transpose(s, (0, 2, 3, 1)).astype(jnp.bfloat16)
    feats = _nature_cnn_body(s, prep, conv_block_m=conv_block_m, block_m=block_m)
    feat_tm1, feat_t = feats[:B], feats[B:]
    onehot = jax.nn.one_hot(a_tm1, num_actions, dtype=jnp.bfloat16)
    pred_features, pi_logits = _pallas_heads(
        feat_tm1, feat_t, onehot, prep["fwd"], prep["inv"], block_m=block_m)
    return IcmNetworkOutput(pi_logits=pi_logits, features=feat_t,
                            pred_features=pred_features)


# ----------------------------------------------------------------------------- params
def _conv_out(n, k, s):
    return (n - k) // s + 1


def init_params(key, in_channels, num_actions, height, width, *, out_features=256):
    """Deterministic init mimicking PyTorch defaults (uniform +-1/sqrt(fan_in)).
    Conv weights are stored flattened/transposed as [C*kh*kw, OC] (rows ordered
    (c, kh, kw), matching PyTorch weight.reshape(OC,-1).T); linear weights as
    [in, out] so every layer computes x @ W + b."""
    h1, w1 = _conv_out(height, 8, 4), _conv_out(width, 8, 4)
    h2, w2 = _conv_out(h1, 4, 2), _conv_out(w1, 4, 2)
    h3, w3 = _conv_out(h2, 3, 1), _conv_out(w2, 3, 1)
    assert h3 >= 1 and w3 >= 1, "spatial dims too small for the Nature CNN trunk"
    flat = 64 * h3 * w3
    layer_dims = {
        "conv1": (in_channels * 8 * 8, 32),
        "conv2": (32 * 4 * 4, 64),
        "conv3": (64 * 3 * 3, 64),
        "fc": (flat, out_features),
        "fwd1": (out_features + num_actions, 256),
        "fwd2": (256, out_features),
        "inv1": (out_features * 2, 256),
        "inv2": (256, num_actions),
    }
    raw = {}
    keys = jax.random.split(key, 2 * len(layer_dims))
    for i, (name, (fan_in, fan_out)) in enumerate(layer_dims.items()):
        bound = 1.0 / float(fan_in) ** 0.5
        w = jax.random.uniform(keys[2 * i], (fan_in, fan_out), jnp.float32, -bound, bound)
        b = jax.random.uniform(keys[2 * i + 1], (1, fan_out), jnp.float32, -bound, bound)
        raw[name] = (w, b)
    return raw


def _prep_matmul(w, b):
    K, N = w.shape
    Kp, Np = _round_up(K, 128), _round_up(N, 128)
    return (_pad2d(w, Kp, Np).astype(jnp.bfloat16),
            _pad2d(b, 1, Np).astype(jnp.float32), N)


def _permute_conv_rows(w, c, k):
    # raw rows are (c, kh, kw); the NHWC im2col produces (kh, kw, c).
    oc = w.shape[1]
    return w.reshape(c, k, k, oc).transpose(1, 2, 0, 3).reshape(k * k * c, oc)


def _prep_head(w1, b1, w2, b2, *, split):
    w1a, w1b = w1[:split], w1[split:]
    Ka = _round_up(w1a.shape[0], 128)
    Kb = _round_up(w1b.shape[0], 128)
    Hp = _round_up(w1.shape[1], 128)
    N = w2.shape[1]
    Np = _round_up(N, 128)
    return dict(
        w1a=_pad2d(w1a, Ka, Hp).astype(jnp.bfloat16),
        w1b=_pad2d(w1b, Kb, Hp).astype(jnp.bfloat16),
        b1=_pad2d(b1, 1, Hp).astype(jnp.float32),
        w2=_pad2d(w2, Hp, Np).astype(jnp.bfloat16),
        b2=_pad2d(b2, 1, Np).astype(jnp.float32),
        n_out=N,
    )


def prepare_params(raw, in_channels, height, width, *, body_features=256):
    h1, w1 = _conv_out(height, 8, 4), _conv_out(width, 8, 4)
    h2, w2 = _conv_out(h1, 4, 2), _conv_out(w1, 4, 2)
    h3, w3 = _conv_out(h2, 3, 1), _conv_out(w2, 3, 1)
    chans = {"conv1": in_channels, "conv2": 32, "conv3": 64}
    prep = {}
    for name, k, s in _CONV_CFG:
        w, b = raw[name]
        if name == "conv1":
            w = w / 255.0                      # fold the /255 normalization
        prep[name] = _prep_matmul(_permute_conv_rows(w, chans[name], k), b)
    w, b = raw["fc"]
    # PyTorch Flatten on NCHW is (c, h, w); the NHWC flatten is (h, w, c).
    wn = w.reshape(64, h3, w3, -1).transpose(1, 2, 0, 3).reshape(64 * h3 * w3, -1)
    prep["fc"] = _prep_matmul(wn, b)
    prep["fwd"] = _prep_head(*raw["fwd1"], *raw["fwd2"], split=body_features)
    prep["inv"] = _prep_head(*raw["inv1"], *raw["inv2"], split=body_features)
    return prep


# ----------------------------------------------------------------------------- reference
def _im2col_nchw(x, k, s):
    """Reference im2col: NCHW input, features ordered (c, kh, kw)."""
    B, C, H, W = x.shape
    oh = (H - k) // s + 1
    ow = (W - k) // s + 1
    rows = (jnp.arange(oh) * s)[:, None] + jnp.arange(k)[None, :]
    cols = (jnp.arange(ow) * s)[:, None] + jnp.arange(k)[None, :]
    p = x[:, :, rows, :]
    p = p[:, :, :, :, cols]
    p = p.transpose(0, 2, 4, 1, 3, 5)
    return p.reshape(B * oh * ow, C * k * k), oh, ow


def _reference(s_tm1, a_tm1, s_t, raw, num_actions):
    """Pure-JAX reference mirroring the kernel precision policy (bf16 matmul
    inputs, f32 accumulation, f32 bias/ReLU, /255 folded into conv1 weights),
    but computed in the original NCHW / (c,kh,kw) layout so it independently
    checks the NHWC weight permutation."""
    def mm(x, w):
        return jnp.dot(x.astype(jnp.bfloat16), w.astype(jnp.bfloat16),
                       preferred_element_type=jnp.float32)

    def body(x):
        h = x.astype(jnp.float32)
        for name, k, s in _CONV_CFG:
            w, b = raw[name]
            if name == "conv1":
                w = w / 255.0                  # same fold as the kernel path
            B = h.shape[0]
            patches, oh, ow = _im2col_nchw(h, k, s)
            out = jnp.maximum(mm(patches, w) + b, 0.0).astype(jnp.bfloat16)
            h = out.reshape(B, oh, ow, w.shape[1]).transpose(0, 3, 1, 2)
        w, b = raw["fc"]
        return jnp.maximum(mm(h.reshape(h.shape[0], -1), w) + b, 0.0)

    def mlp2(x, w1, b1, w2, b2):
        hid = jnp.maximum(mm(x, w1) + b1, 0.0)
        return mm(hid, w2) + b2

    f_tm1, f_t = body(s_tm1), body(s_t)
    onehot = jax.nn.one_hot(a_tm1, num_actions, dtype=jnp.float32)
    pred = mlp2(jnp.concatenate([f_tm1, onehot], -1), *raw["fwd1"], *raw["fwd2"])
    pi = mlp2(jnp.concatenate([f_tm1, f_t], -1), *raw["inv1"], *raw["inv2"])
    return pi, f_t, pred


# ----------------------------------------------------------------------------- main
if __name__ == "__main__":
    key = jax.random.PRNGKey(0)
    k1, k2, k3, kp = jax.random.split(key, 4)

    # Smallest spatial size that survives the Nature CNN (8/4, 4/2, 3/1) trunk.
    B, C, H, W = 2, 4, 36, 36
    num_actions = 6

    s_tm1 = jax.random.randint(k1, (B, C, H, W), 0, 256).astype(jnp.uint8)
    s_t = jax.random.randint(k2, (B, C, H, W), 0, 256).astype(jnp.uint8)
    a_tm1 = jax.random.randint(k3, (B,), 0, num_actions)

    raw_params = init_params(kp, C, num_actions, H, W)
    prep_params = prepare_params(raw_params, C, H, W)

    fwd = jax.jit(lambda s0, a, s1: icm_forward(s0, a, s1, prep_params, num_actions))
    out = fwd(s_tm1, a_tm1, s_t)
    out = jax.block_until_ready(out)

    ref_pi, ref_feat, ref_pred = _reference(s_tm1, a_tm1, s_t, raw_params, num_actions)

    assert out.pi_logits.shape == (B, num_actions), out.pi_logits.shape
    assert out.features.shape == (B, 256), out.features.shape
    assert out.pred_features.shape == (B, 256), out.pred_features.shape
    for got, ref in ((out.pi_logits, ref_pi), (out.features, ref_feat),
                     (out.pred_features, ref_pred)):
        err = float(jnp.max(jnp.abs(got - ref)))
        assert jnp.allclose(got, ref, atol=2e-2, rtol=2e-2), f"mismatch, max err {err}"

    print("KERNEL_OK")
</pallas_src>

<mosaic_0001>
module attributes {stable_mosaic.version = 11 : i64} {
  func.func @_linear_kernel(%arg0: i32, %arg1: memref<256x256xbf16, #tpu.memory_space<vmem>>, %arg2: memref<256x128xbf16, #tpu.memory_space<vmem>>, %arg3: memref<1x128xf32, #tpu.memory_space<vmem>>, %arg4: memref<256x128xbf16, #tpu.memory_space<vmem>>) attributes {dimension_semantics = [#tpu.dimension_semantics<parallel>], iteration_bounds = array<i64: 1>, scalar_prefetch = 0 : i64, scratch_operands = 0 : i64, tpu.core_type = #tpu.core_type<tc>, window_params = [{transform_indices = @transform_0, window_bounds = array<i64: 256, 256>}, {pipeline_mode = #tpu.pipeline_mode<synchronous>, transform_indices = @transform_1, window_bounds = array<i64: 256, 128>}, {pipeline_mode = #tpu.pipeline_mode<synchronous>, transform_indices = @transform_2, window_bounds = array<i64: 1, 128>}, {transform_indices = @transform_3, window_bounds = array<i64: 256, 128>}]} {
    %c0 = arith.constant 0 : index
    %c0_0 = arith.constant 0 : index
    %0 = vector.load %arg1[%c0, %c0_0] : memref<256x256xbf16, #tpu.memory_space<vmem>>, vector<256x256xbf16>
    %c0_1 = arith.constant 0 : index
    %c0_2 = arith.constant 0 : index
    %1 = vector.load %arg2[%c0_1, %c0_2] : memref<256x128xbf16, #tpu.memory_space<vmem>>, vector<256x128xbf16>
    %cst = arith.constant dense<0.000000e+00> : vector<256x128xf32>
    %2 = tpu.matmul %0, %1, %cst {dimension_numbers = #tpu.dot_dimension_numbers<[1], [0], [0], [1], [0, 0, 1, 1], [], []>} : vector<256x256xbf16>, vector<256x128xbf16>, vector<256x128xf32> -> vector<256x128xf32>
    %c0_3 = arith.constant 0 : index
    %c0_4 = arith.constant 0 : index
    %3 = vector.load %arg3[%c0_3, %c0_4] : memref<1x128xf32, #tpu.memory_space<vmem>>, vector<1x128xf32>
    %4 = vector.broadcast %3 : vector<1x128xf32> to vector<256x128xf32>
    %5 = arith.addf %2, %4 : vector<256x128xf32>
    %cst_5 = arith.constant 0.000000e+00 : f32
    %6 = vector.broadcast %cst_5 : f32 to vector<256x128xf32>
    %7 = arith.maximumf %5, %6 : vector<256x128xf32>
    %8 = arith.truncf %7 : vector<256x128xf32> to vector<256x128xbf16>
    %c0_6 = arith.constant 0 : index
    %c0_7 = arith.constant 0 : index
    %9 = vector.load %arg4[%c0_6, %c0_7] : memref<256x128xbf16, #tpu.memory_space<vmem>>, vector<256x128xbf16>
    tpu.vector_store %arg4[%c0_6, %c0_7], %8 {strides = array<i32>} : memref<256x128xbf16, #tpu.memory_space<vmem>>, vector<256x128xbf16>,
    return
  }
  func.func @transform_0(%arg0: i32) -> (i32, i32) {
    %c0_i32 = arith.constant 0 : i32
    %c0_i32_0 = arith.constant 0 : i32
    return %arg0, %c0_i32 : i32, i32
  }
  func.func @transform_1(%arg0: i32) -> (i32, i32) {
    %c0_i32 = arith.constant 0 : i32
    %c0_i32_0 = arith.constant 0 : i32
    %c0_i32_1 = arith.constant 0 : i32
    return %c0_i32, %c0_i32_0 : i32, i32
  }
  func.func @transform_2(%arg0: i32) -> (i32, i32) {
    %c0_i32 = arith.constant 0 : i32
    %c0_i32_0 = arith.constant 0 : i32
    %c0_i32_1 = arith.constant 0 : i32
    return %c0_i32, %c0_i32_0 : i32, i32
  }
  func.func @transform_3(%arg0: i32) -> (i32, i32) {
    %c0_i32 = arith.constant 0 : i32
    %c0_i32_0 = arith.constant 0 : i32
    return %arg0, %c0_i32 : i32, i32
  }
}

module attributes {stable_mosaic.version = 11 : i64} {
  func.func @_linear_kernel(%arg0: i32, %arg1: memref<48x512xbf16, #tpu.memory_space<vmem>>, %arg2: memref<512x128xbf16, #tpu.memory_space<vmem>>, %arg3: memref<1x128xf32, #tpu.memory_space<vmem>>, %arg4: memref<48x128xbf16, #tpu.memory_space<vmem>>) attributes {dimension_semantics = [#tpu.dimension_semantics<parallel>], iteration_bounds = array<i64: 1>, scalar_prefetch = 0 : i64, scratch_operands = 0 : i64, tpu.core_type = #tpu.core_type<tc>, window_params = [{transform_indices = @transform_0, window_bounds = array<i64: 48, 512>}, {pipeline_mode = #tpu.pipeline_mode<synchronous>, transform_indices = @transform_1, window_bounds = array<i64: 512, 128>}, {pipeline_mode = #tpu.pipeline_mode<synchronous>, transform_indices = @transform_2, window_bounds = array<i64: 1, 128>}, {transform_indices = @transform_3, window_bounds = array<i64: 48, 128>}]} {
    %c0 = arith.constant 0 : index
    %c0_0 = arith.constant 0 : index
    %0 = vector.load %arg1[%c0, %c0_0] : memref<48x512xbf16, #tpu.memory_space<vmem>>, vector<48x512xbf16>
    %c0_1 = arith.constant 0 : index
    %c0_2 = arith.constant 0 : index
    %1 = vector.load %arg2[%c0_1, %c0_2] : memref<512x128xbf16, #tpu.memory_space<vmem>>, vector<512x128xbf16>
    %cst = arith.constant dense<0.000000e+00> : vector<48x128xf32>
    %2 = tpu.matmul %0, %1, %cst {dimension_numbers = #tpu.dot_dimension_numbers<[1], [0], [0], [1], [0, 0, 1, 1], [], []>} : vector<48x512xbf16>, vector<512x128xbf16>, vector<48x128xf32> -> vector<48x128xf32>
    %c0_3 = arith.constant 0 : index
    %c0_4 = arith.constant 0 : index
    %3 = vector.load %arg3[%c0_3, %c0_4] : memref<1x128xf32, #tpu.memory_space<vmem>>, vector<1x128xf32>
    %4 = vector.broadcast %3 : vector<1x128xf32> to vector<48x128xf32>
    %5 = arith.addf %2, %4 : vector<48x128xf32>
    %cst_5 = arith.constant 0.000000e+00 : f32
    %6 = vector.broadcast %cst_5 : f32 to vector<48x128xf32>
    %7 = arith.maximumf %5, %6 : vector<48x128xf32>
    %8 = arith.truncf %7 : vector<48x128xf32> to vector<48x128xbf16>
    %c0_6 = arith.constant 0 : index
    %c0_7 = arith.constant 0 : index
    %9 = vector.load %arg4[%c0_6, %c0_7] : memref<48x128xbf16, #tpu.memory_space<vmem>>, vector<48x128xbf16>
    tpu.vector_store %arg4[%c0_6, %c0_7], %8 {strides = array<i32>} : memref<48x128xbf16, #tpu.memory_space<vmem>>, vector<48x128xbf16>,
    return
  }
  func.func @transform_0(%arg0: i32) -> (i32, i32) {
    %c0_i32 = arith.constant 0 : i32
    %c0_i32_0 = arith.constant 0 : i32
    return %arg0, %c0_i32 : i32, i32
  }
  func.func @transform_1(%arg0: i32) -> (i32, i32) {
    %c0_i32 = arith.constant 0 : i32
    %c0_i32_0 = arith.constant 0 : i32
    %c0_i32_1 = arith.constant 0 : i32
    return %c0_i32, %c0_i32_0 : i32, i32
  }
  func.func @transform_2(%arg0: i32) -> (i32, i32) {
    %c0_i32 = arith.constant 0 : i32
    %c0_i32_0 = arith.constant 0 : i32
    %c0_i32_1 = arith.constant 0 : i32
    return %c0_i32, %c0_i32_0 : i32, i32
  }
  func.func @transform_3(%arg0: i32) -> (i32, i32) {
    %c0_i32 = arith.constant 0 : i32
    %c0_i32_0 = arith.constant 0 : i32
    return %arg0, %c0_i32 : i32, i32
  }
}

module attributes {stable_mosaic.version = 11 : i64} {
  func.func @_linear_kernel(%arg0: i32, %arg1: memref<16x640xbf16, #tpu.memory_space<vmem>>, %arg2: memref<640x128xbf16, #tpu.memory_space<vmem>>, %arg3: memref<1x128xf32, #tpu.memory_space<vmem>>, %arg4: memref<16x128xbf16, #tpu.memory_space<vmem>>) attributes {dimension_semantics = [#tpu.dimension_semantics<parallel>], iteration_bounds = array<i64: 1>, scalar_prefetch = 0 : i64, scratch_operands = 0 : i64, tpu.core_type = #tpu.core_type<tc>, window_params = [{transform_indices = @transform_0, window_bounds = array<i64: 16, 640>}, {pipeline_mode = #tpu.pipeline_mode<synchronous>, transform_indices = @transform_1, window_bounds = array<i64: 640, 128>}, {pipeline_mode = #tpu.pipeline_mode<synchronous>, transform_indices = @transform_2, window_bounds = array<i64: 1, 128>}, {transform_indices = @transform_3, window_bounds = array<i64: 16, 128>}]} {
    %c0 = arith.constant 0 : index
    %c0_0 = arith.constant 0 : index
    %0 = vector.load %arg1[%c0, %c0_0] : memref<16x640xbf16, #tpu.memory_space<vmem>>, vector<16x640xbf16>
    %c0_1 = arith.constant 0 : index
    %c0_2 = arith.constant 0 : index
    %1 = vector.load %arg2[%c0_1, %c0_2] : memref<640x128xbf16, #tpu.memory_space<vmem>>, vector<640x128xbf16>
    %cst = arith.constant dense<0.000000e+00> : vector<16x128xf32>
    %2 = tpu.matmul %0, %1, %cst {dimension_numbers = #tpu.dot_dimension_numbers<[1], [0], [0], [1], [0, 0, 1, 1], [], []>} : vector<16x640xbf16>, vector<640x128xbf16>, vector<16x128xf32> -> vector<16x128xf32>
    %c0_3 = arith.constant 0 : index
    %c0_4 = arith.constant 0 : index
    %3 = vector.load %arg3[%c0_3, %c0_4] : memref<1x128xf32, #tpu.memory_space<vmem>>, vector<1x128xf32>
    %4 = vector.broadcast %3 : vector<1x128xf32> to vector<16x128xf32>
    %5 = arith.addf %2, %4 : vector<16x128xf32>
    %cst_5 = arith.constant 0.000000e+00 : f32
    %6 = vector.broadcast %cst_5 : f32 to vector<16x128xf32>
    %7 = arith.maximumf %5, %6 : vector<16x128xf32>
    %8 = arith.truncf %7 : vector<16x128xf32> to vector<16x128xbf16>
    %c0_6 = arith.constant 0 : index
    %c0_7 = arith.constant 0 : index
    %9 = vector.load %arg4[%c0_6, %c0_7] : memref<16x128xbf16, #tpu.memory_space<vmem>>, vector<16x128xbf16>
    tpu.vector_store %arg4[%c0_6, %c0_7], %8 {strides = array<i32>} : memref<16x128xbf16, #tpu.memory_space<vmem>>, vector<16x128xbf16>,
    return
  }
  func.func @transform_0(%arg0: i32) -> (i32, i32) {
    %c0_i32 = arith.constant 0 : i32
    %c0_i32_0 = arith.constant 0 : i32
    return %arg0, %c0_i32 : i32, i32
  }
  func.func @transform_1(%arg0: i32) -> (i32, i32) {
    %c0_i32 = arith.constant 0 : i32
    %c0_i32_0 = arith.constant 0 : i32
    %c0_i32_1 = arith.constant 0 : i32
    return %c0_i32, %c0_i32_0 : i32, i32
  }
  func.func @transform_2(%arg0: i32) -> (i32, i32) {
    %c0_i32 = arith.constant 0 : i32
    %c0_i32_0 = arith.constant 0 : i32
    %c0_i32_1 = arith.constant 0 : i32
    return %c0_i32, %c0_i32_0 : i32, i32
  }
  func.func @transform_3(%arg0: i32) -> (i32, i32) {
    %c0_i32 = arith.constant 0 : i32
    %c0_i32_0 = arith.constant 0 : i32
    return %arg0, %c0_i32 : i32, i32
  }
}

module attributes {stable_mosaic.version = 11 : i64} {
  func.func @_linear_kernel(%arg0: i32, %arg1: memref<16x128xbf16, #tpu.memory_space<vmem>>, %arg2: memref<128x256xbf16, #tpu.memory_space<vmem>>, %arg3: memref<1x256xf32, #tpu.memory_space<vmem>>, %arg4: memref<16x256xf32, #tpu.memory_space<vmem>>) attributes {dimension_semantics = [#tpu.dimension_semantics<parallel>], iteration_bounds = array<i64: 1>, scalar_prefetch = 0 : i64, scratch_operands = 0 : i64, tpu.core_type = #tpu.core_type<tc>, window_params = [{transform_indices = @transform_0, window_bounds = array<i64: 16, 128>}, {pipeline_mode = #tpu.pipeline_mode<synchronous>, transform_indices = @transform_1, window_bounds = array<i64: 128, 256>}, {pipeline_mode = #tpu.pipeline_mode<synchronous>, transform_indices = @transform_2, window_bounds = array<i64: 1, 256>}, {transform_indices = @transform_3, window_bounds = array<i64: 16, 256>}]} {
    %c0 = arith.constant 0 : index
    %c0_0 = arith.constant 0 : index
    %0 = vector.load %arg1[%c0, %c0_0] : memref<16x128xbf16, #tpu.memory_space<vmem>>, vector<16x128xbf16>
    %c0_1 = arith.constant 0 : index
    %c0_2 = arith.constant 0 : index
    %1 = vector.load %arg2[%c0_1, %c0_2] : memref<128x256xbf16, #tpu.memory_space<vmem>>, vector<128x256xbf16>
    %cst = arith.constant dense<0.000000e+00> : vector<16x256xf32>
    %2 = tpu.matmul %0, %1, %cst {dimension_numbers = #tpu.dot_dimension_numbers<[1], [0], [0], [1], [0, 0, 1, 1], [], []>} : vector<16x128xbf16>, vector<128x256xbf16>, vector<16x256xf32> -> vector<16x256xf32>
    %c0_3 = arith.constant 0 : index
    %c0_4 = arith.constant 0 : index
    %3 = vector.load %arg3[%c0_3, %c0_4] : memref<1x256xf32, #tpu.memory_space<vmem>>, vector<1x256xf32>
    %4 = vector.broadcast %3 : vector<1x256xf32> to vector<16x256xf32>
    %5 = arith.addf %2, %4 : vector<16x256xf32>
    %cst_5 = arith.constant 0.000000e+00 : f32
    %6 = vector.broadcast %cst_5 : f32 to vector<16x256xf32>
    %7 = arith.maximumf %5, %6 : vector<16x256xf32>
    %c0_6 = arith.constant 0 : index
    %c0_7 = arith.constant 0 : index
    %8 = vector.load %arg4[%c0_6, %c0_7] : memref<16x256xf32, #tpu.memory_space<vmem>>, vector<16x256xf32>
    tpu.vector_store %arg4[%c0_6, %c0_7], %7 {strides = array<i32>} : memref<16x256xf32, #tpu.memory_space<vmem>>, vector<16x256xf32>,
    return
  }
  func.func @transform_0(%arg0: i32) -> (i32, i32) {
    %c0_i32 = arith.constant 0 : i32
    %c0_i32_0 = arith.constant 0 : i32
    return %arg0, %c0_i32 : i32, i32
  }
  func.func @transform_1(%arg0: i32) -> (i32, i32) {
    %c0_i32 = arith.constant 0 : i32
    %c0_i32_0 = arith.constant 0 : i32
    %c0_i32_1 = arith.constant 0 : i32
    return %c0_i32, %c0_i32_0 : i32, i32
  }
  func.func @transform_2(%arg0: i32) -> (i32, i32) {
    %c0_i32 = arith.constant 0 : i32
    %c0_i32_0 = arith.constant 0 : i32
    %c0_i32_1 = arith.constant 0 : i32
    return %c0_i32, %c0_i32_0 : i32, i32
  }
  func.func @transform_3(%arg0: i32) -> (i32, i32) {
    %c0_i32 = arith.constant 0 : i32
    %c0_i32_0 = arith.constant 0 : i32
    return %arg0, %c0_i32 : i32, i32
  }
}

module attributes {stable_mosaic.version = 11 : i64} {
  func.func @_heads_kernel(%arg0: i32, %arg1: memref<16x256xbf16, #tpu.memory_space<vmem>>, %arg2: memref<16x256xbf16, #tpu.memory_space<vmem>>, %arg3: memref<16x128xbf16, #tpu.memory_space<vmem>>, %arg4: memref<256x256xbf16, #tpu.memory_space<vmem>>, %arg5: memref<128x256xbf16, #tpu.memory_space<vmem>>, %arg6: memref<1x256xf32, #tpu.memory_space<vmem>>, %arg7: memref<256x256xbf16, #tpu.memory_space<vmem>>, %arg8: memref<1x256xf32, #tpu.memory_space<vmem>>, %arg9: memref<256x256xbf16, #tpu.memory_space<vmem>>, %arg10: memref<256x256xbf16, #tpu.memory_space<vmem>>, %arg11: memref<1x256xf32, #tpu.memory_space<vmem>>, %arg12: memref<256x128xbf16, #tpu.memory_space<vmem>>, %arg13: memref<1x128xf32, #tpu.memory_space<vmem>>, %arg14: memref<16x256xf32, #tpu.memory_space<vmem>>, %arg15: memref<16x128xf32, #tpu.memory_space<vmem>>) attributes {dimension_semantics = [#tpu.dimension_semantics<parallel>], iteration_bounds = array<i64: 1>, scalar_prefetch = 0 : i64, scratch_operands = 0 : i64, tpu.core_type = #tpu.core_type<tc>, window_params = [{transform_indices = @transform_0, window_bounds = array<i64: 16, 256>}, {transform_indices = @transform_1, window_bounds = array<i64: 16, 256>}, {transform_indices = @transform_2, window_bounds = array<i64: 16, 128>}, {pipeline_mode = #tpu.pipeline_mode<synchronous>, transform_indices = @transform_3, window_bounds = array<i64: 256, 256>}, {pipeline_mode = #tpu.pipeline_mode<synchronous>, transform_indices = @transform_4, window_bounds = array<i64: 128, 256>}, {pipeline_mode = #tpu.pipeline_mode<synchronous>, transform_indices = @transform_5, window_bounds = array<i64: 1, 256>}, {pipeline_mode = #tpu.pipeline_mode<synchronous>, transform_indices = @transform_6, window_bounds = array<i64: 256, 256>}, {pipeline_mode = #tpu.pipeline_mode<synchronous>, transform_indices = @transform_7, window_bounds = array<i64: 1, 256>}, {pipeline_mode = #tpu.pipeline_mode<synchronous>, transform_indices = @transform_8, window_bounds = array<i64: 256, 256>}, {pipeline_mode = #tpu.pipeline_mode<synchronous>, transform_indices = @transform_9, window_bounds = array<i64: 256, 256>}, {pipeline_mode = #tpu.pipeline_mode<synchronous>, transform_indices = @transform_10, window_bounds = array<i64: 1, 256>}, {pipeline_mode = #tpu.pipeline_mode<synchronous>, transform_indices = @transform_11, window_bounds = array<i64: 256, 128>}, {pipeline_mode = #tpu.pipeline_mode<synchronous>, transform_indices = @transform_12, window_bounds = array<i64: 1, 128>}, {transform_indices = @transform_13, window_bounds = array<i64: 16, 256>}, {transform_indices = @transform_14, window_bounds = array<i64: 16, 128>}]} {
    %c0 = arith.constant 0 : index
    %c0_0 = arith.constant 0 : index
    %0 = vector.load %arg1[%c0, %c0_0] : memref<16x256xbf16, #tpu.memory_space<vmem>>, vector<16x256xbf16>
    %c0_1 = arith.constant 0 : index
    %c0_2 = arith.constant 0 : index
    %1 = vector.load %arg4[%c0_1, %c0_2] : memref<256x256xbf16, #tpu.memory_space<vmem>>, vector<256x256xbf16>
    %cst = arith.constant dense<0.000000e+00> : vector<16x256xf32>
    %2 = tpu.matmul %0, %1, %cst {dimension_numbers = #tpu.dot_dimension_numbers<[1], [0], [0], [1], [0, 0, 1, 1], [], []>} : vector<16x256xbf16>, vector<256x256xbf16>, vector<16x256xf32> -> vector<16x256xf32>
    %c0_3 = arith.constant 0 : index
    %c0_4 = arith.constant 0 : index
    %3 = vector.load %arg3[%c0_3, %c0_4] : memref<16x128xbf16, #tpu.memory_space<vmem>>, vector<16x128xbf16>
    %c0_5 = arith.constant 0 : index
    %c0_6 = arith.constant 0 : index
    %4 = vector.load %arg5[%c0_5, %c0_6] : memref<128x256xbf16, #tpu.memory_space<vmem>>, vector<128x256xbf16>
    %cst_7 = arith.constant dense<0.000000e+00> : vector<16x256xf32>
    %5 = tpu.matmul %3, %4, %cst_7 {dimension_numbers = #tpu.dot_dimension_numbers<[1], [0], [0], [1], [0, 0, 1, 1], [], []>} : vector<16x128xbf16>, vector<128x256xbf16>, vector<16x256xf32> -> vector<16x256xf32>
    %6 = arith.addf %2, %5 : vector<16x256xf32>
    %c0_8 = arith.constant 0 : index
    %c0_9 = arith.constant 0 : index
    %7 = vector.load %arg6[%c0_8, %c0_9] : memref<1x256xf32, #tpu.memory_space<vmem>>, vector<1x256xf32>
    %8 = vector.broadcast %7 : vector<1x256xf32> to vector<16x256xf32>
    %9 = arith.addf %6, %8 : vector<16x256xf32>
    %cst_10 = arith.constant 0.000000e+00 : f32
    %10 = vector.broadcast %cst_10 : f32 to vector<16x256xf32>
    %11 = arith.maximumf %9, %10 : vector<16x256xf32>
    %12 = arith.truncf %11 : vector<16x256xf32> to vector<16x256xbf16>
    %c0_11 = arith.constant 0 : index
    %c0_12 = arith.constant 0 : index
    %13 = vector.load %arg7[%c0_11, %c0_12] : memref<256x256xbf16, #tpu.memory_space<vmem>>, vector<256x256xbf16>
    %cst_13 = arith.constant dense<0.000000e+00> : vector<16x256xf32>
    %14 = tpu.matmul %12, %13, %cst_13 {dimension_numbers = #tpu.dot_dimension_numbers<[1], [0], [0], [1], [0, 0, 1, 1], [], []>} : vector<16x256xbf16>, vector<256x256xbf16>, vector<16x256xf32> -> vector<16x256xf32>
    %c0_14 = arith.constant 0 : index
    %c0_15 = arith.constant 0 : index
    %15 = vector.load %arg8[%c0_14, %c0_15] : memref<1x256xf32, #tpu.memory_space<vmem>>, vector<1x256xf32>
    %16 = vector.broadcast %15 : vector<1x256xf32> to vector<16x256xf32>
    %17 = arith.addf %14, %16 : vector<16x256xf32>
    %c0_16 = arith.constant 0 : index
    %c0_17 = arith.constant 0 : index
    %18 = vector.load %arg14[%c0_16, %c0_17] : memref<16x256xf32, #tpu.memory_space<vmem>>, vector<16x256xf32>
    tpu.vector_store %arg14[%c0_16, %c0_17], %17 {strides = array<i32>} : memref<16x256xf32, #tpu.memory_space<vmem>>, vector<16x256xf32>,
    %c0_18 = arith.constant 0 : index
    %c0_19 = arith.constant 0 : index
    %19 = vector.load %arg9[%c0_18, %c0_19] : memref<256x256xbf16, #tpu.memory_space<vmem>>, vector<256x256xbf16>
    %cst_20 = arith.constant dense<0.000000e+00> : vector<16x256xf32>
    %20 = tpu.matmul %0, %19, %cst_20 {dimension_numbers = #tpu.dot_dimension_numbers<[1], [0], [0], [1], [0, 0, 1, 1], [], []>} : vector<16x256xbf16>, vector<256x256xbf16>, vector<16x256xf32> -> vector<16x256xf32>
    %c0_21 = arith.constant 0 : index
    %c0_22 = arith.constant 0 : index
    %21 = vector.load %arg2[%c0_21, %c0_22] : memref<16x256xbf16, #tpu.memory_space<vmem>>, vector<16x256xbf16>
    %c0_23 = arith.constant 0 : index
    %c0_24 = arith.constant 0 : index
    %22 = vector.load %arg10[%c0_23, %c0_24] : memref<256x256xbf16, #tpu.memory_space<vmem>>, vector<256x256xbf16>
    %cst_25 = arith.constant dense<0.000000e+00> : vector<16x256xf32>
    %23 = tpu.matmul %21, %22, %cst_25 {dimension_numbers = #tpu.dot_dimension_numbers<[1], [0], [0], [1], [0, 0, 1, 1], [], []>} : vector<16x256xbf16>, vector<256x256xbf16>, vector<16x256xf32> -> vector<16x256xf32>
    %24 = arith.addf %20, %23 : vector<16x256xf32>
    %c0_26 = arith.constant 0 : index
    %c0_27 = arith.constant 0 : index
    %25 = vector.load %arg11[%c0_26, %c0_27] : memref<1x256xf32, #tpu.memory_space<vmem>>, vector<1x256xf32>
    %26 = vector.broadcast %25 : vector<1x256xf32> to vector<16x256xf32>
    %27 = arith.addf %24, %26 : vector<16x256xf32>
    %cst_28 = arith.constant 0.000000e+00 : f32
    %28 = vector.broadcast %cst_28 : f32 to vector<16x256xf32>
    %29 = arith.maximumf %27, %28 : vector<16x256xf32>
    %30 = arith.truncf %29 : vector<16x256xf32> to vector<16x256xbf16>
    %c0_29 = arith.constant 0 : index
    %c0_30 = arith.constant 0 : index
    %31 = vector.load %arg12[%c0_29, %c0_30] : memref<256x128xbf16, #tpu.memory_space<vmem>>, vector<256x128xbf16>
    %cst_31 = arith.constant dense<0.000000e+00> : vector<16x128xf32>
    %32 = tpu.matmul %30, %31, %cst_31 {dimension_numbers = #tpu.dot_dimension_numbers<[1], [0], [0], [1], [0, 0, 1, 1], [], []>} : vector<16x256xbf16>, vector<256x128xbf16>, vector<16x128xf32> -> vector<16x128xf32>
    %c0_32 = arith.constant 0 : index
    %c0_33 = arith.constant 0 : index
    %33 = vector.load %arg13[%c0_32, %c0_33] : memref<1x128xf32, #tpu.memory_space<vmem>>, vector<1x128xf32>
    %34 = vector.broadcast %33 : vector<1x128xf32> to vector<16x128xf32>
    %35 = arith.addf %32, %34 : vector<16x128xf32>
    %c0_34 = arith.constant 0 : index
    %c0_35 = arith.constant 0 : index
    %36 = vector.load %arg15[%c0_34, %c0_35] : memref<16x128xf32, #tpu.memory_space<vmem>>, vector<16x128xf32>
    tpu.vector_store %arg15[%c0_34, %c0_35], %35 {strides = array<i32>} : memref<16x128xf32, #tpu.memory_space<vmem>>, vector<16x128xf32>,
    return
  }
  func.func @transform_0(%arg0: i32) -> (i32, i32) {
    %c0_i32 = arith.constant 0 : i32
    %c0_i32_0 = arith.constant 0 : i32
    return %arg0, %c0_i32 : i32, i32
  }
  func.func @transform_1(%arg0: i32) -> (i32, i32) {
    %c0_i32 = arith.constant 0 : i32
    %c0_i32_0 = arith.constant 0 : i32
    return %arg0, %c0_i32 : i32, i32
  }
  func.func @transform_2(%arg0: i32) -> (i32, i32) {
    %c0_i32 = arith.constant 0 : i32
    %c0_i32_0 = arith.constant 0 : i32
    return %arg0, %c0_i32 : i32, i32
  }
  func.func @transform_3(%arg0: i32) -> (i32, i32) {
    %c0_i32 = arith.constant 0 : i32
    %c0_i32_0 = arith.constant 0 : i32
    %c0_i32_1 = arith.constant 0 : i32
    return %c0_i32, %c0_i32_0 : i32, i32
  }
  func.func @transform_4(%arg0: i32) -> (i32, i32) {
    %c0_i32 = arith.constant 0 : i32
    %c0_i32_0 = arith.constant 0 : i32
    %c0_i32_1 = arith.constant 0 : i32
    return %c0_i32, %c0_i32_0 : i32, i32
  }
  func.func @transform_5(%arg0: i32) -> (i32, i32) {
    %c0_i32 = arith.constant 0 : i32
    %c0_i32_0 = arith.constant 0 : i32
    %c0_i32_1 = arith.constant 0 : i32
    return %c0_i32, %c0_i32_0 : i32, i32
  }
  func.func @transform_6(%arg0: i32) -> (i32, i32) {
    %c0_i32 = arith.constant 0 : i32
    %c0_i32_0 = arith.constant 0 : i32
    %c0_i32_1 = arith.constant 0 : i32
    return %c0_i32, %c0_i32_0 : i32, i32
  }
  func.func @transform_7(%arg0: i32) -> (i32, i32) {
    %c0_i32 = arith.constant 0 : i32
    %c0_i32_0 = arith.constant 0 : i32
    %c0_i32_1 = arith.constant 0 : i32
    return %c0_i32, %c0_i32_0 : i32, i32
  }
  func.func @transform_8(%arg0: i32) -> (i32, i32) {
    %c0_i32 = arith.constant 0 : i32
    %c0_i32_0 = arith.constant 0 : i32
    %c0_i32_1 = arith.constant 0 : i32
    return %c0_i32, %c0_i32_0 : i32, i32
  }
  func.func @transform_9(%arg0: i32) -> (i32, i32) {
    %c0_i32 = arith.constant 0 : i32
    %c0_i32_0 = arith.constant 0 : i32
    %c0_i32_1 = arith.constant 0 : i32
    return %c0_i32, %c0_i32_0 : i32, i32
  }
  func.func @transform_10(%arg0: i32) -> (i32, i32) {
    %c0_i32 = arith.constant 0 : i32
    %c0_i32_0 = arith.constant 0 : i32
    %c0_i32_1 = arith.constant 0 : i32
    return %c0_i32, %c0_i32_0 : i32, i32
  }
  func.func @transform_11(%arg0: i32) -> (i32, i32) {
    %c0_i32 = arith.constant 0 : i32
    %c0_i32_0 = arith.constant 0 : i32
    %c0_i32_1 = arith.constant 0 : i32
    return %c0_i32, %c0_i32_0 : i32, i32
  }
  func.func @transform_12(%arg0: i32) -> (i32, i32) {
    %c0_i32 = arith.constant 0 : i32
    %c0_i32_0 = arith.constant 0 : i32
    %c0_i32_1 = arith.constant 0 : i32
    return %c0_i32, %c0_i32_0 : i32, i32
  }
  func.func @transform_13(%arg0: i32) -> (i32, i32) {
    %c0_i32 = arith.constant 0 : i32
    %c0_i32_0 = arith.constant 0 : i32
    return %arg0, %c0_i32 : i32, i32
  }
  func.func @transform_14(%arg0: i32) -> (i32, i32) {
    %c0_i32 = arith.constant 0 : i32
    %c0_i32_0 = arith.constant 0 : i32
    return %arg0, %c0_i32 : i32, i32
  }
}

</mosaic_0001>

<llo_original>
// kernel: _lambda_.5
$region0: #{_lambda_.5}
  #allocation0 [shape = 'u32[]', space=smem, size = 0x4, offset = 0x4, fixed_abs, tag = 'smem constant byte address 0x4 - core index']
  #allocation1 [shape = 'u32[144,128]{1,0:T(1,128)}', space=vmem, size = 0x12000, scoped, tag = 'internal scratch']
  %s0 = inlined_call_operand.vmem [shape: bf16[256,256], index: 0, kind: input, shape index: {}]
  %s1 = inlined_call_operand.vmem [shape: bf16[256,128], index: 1, kind: input, shape index: {}]
  %s2 = inlined_call_operand.vmem [shape: f32[1,128], index: 2, kind: input, shape index: {}]
  %s3 = inlined_call_operand.vmem [shape: bf16[256,128], index: 3, kind: output, shape index: {}]
  %s4 = sld [smem:[#allocation0]]
  $region22: #{_lambda_.5} parent=0
    _
  %s6 = ssub.s32 1, %s4
  %s7 = scalar_select 0, %s6, %s4
  // Predicated region
  $region2: #{_lambda_.5} parent=0 // pred_check
    _
  $region3: #{_lambda_.5} parent=0 // pred_check_branch
    %9 = sbr.rel (0) target = $region5
  $region4: #{_lambda_.5} parent=0 // pred_region
    _
  $region5: #{_lambda_.5} parent=0 // pred_fallthru
    _
  // Predicated region
  $region6: #{_lambda_.5} parent=0 // pred_check
    _
  $region7: #{_lambda_.5} parent=0 // pred_check_branch
    %11 = sbr.rel (0) target = $region9
  $region8: #{_lambda_.5} parent=0 // pred_region
    _
  $region9: #{_lambda_.5} parent=0 // pred_fallthru
    _
  // Predicated region
  $region10: #{_lambda_.5} parent=0 // pred_check
    _
  $region11: #{_lambda_.5} parent=0 // pred_check_branch
    %13 = sbr.rel (0) target = $region13
  $region12: #{_lambda_.5} parent=0 // pred_region
    _
  $region13: #{_lambda_.5} parent=0 // pred_fallthru
    _
  %v15 = vld [vmem:[%s0] sm:$0xff]
  %v16 = vld [vmem:[%s0 + $0x8] sm:$0xff]
  %v17 = vld [vmem:[%s0 + $0x10] sm:$0xff]
  %v18 = vld [vmem:[%s0 + $0x18] sm:$0xff]
  %v19 = vld [vmem:[%s0 + $0x20] sm:$0xff]
  %v20 = vld [vmem:[%s0 + $0x28] sm:$0xff]
  %v21 = vld [vmem:[%s0 + $0x30] sm:$0xff]
  %v22 = vld [vmem:[%s0 + $0x38] sm:$0xff]
  %v23 = vld [vmem:[%s0 + $0x40] sm:$0xff]
  %v24 = vld [vmem:[%s0 + $0x48] sm:$0xff]
  %v25 = vld [vmem:[%s0 + $0x50] sm:$0xff]
  %v26 = vld [vmem:[%s0 + $0x58] sm:$0xff]
  %v27 = vld [vmem:[%s0 + $0x60] sm:$0xff]
  %v28 = vld [vmem:[%s0 + $0x68] sm:$0xff]
  %v29 = vld [vmem:[%s0 + $0x70] sm:$0xff]
  %v30 = vld [vmem:[%s0 + $0x78] sm:$0xff]
  %v31 = vld [vmem:[%s0 + $0x80] sm:$0xff]
  %v32 = vld [vmem:[%s0 + $0x88] sm:$0xff]
  %v33 = vld [vmem:[%s0 + $0x90] sm:$0xff]
  %v34 = vld [vmem:[%s0 + $0x98] sm:$0xff]
  %v35 = vld [vmem:[%s0 + $0xa0] sm:$0xff]
  %v36 = vld [vmem:[%s0 + $0xa8] sm:$0xff]
  %v37 = vld [vmem:[%s0 + $0xb0] sm:$0xff]
  %v38 = vld [vmem:[%s0 + $0xb8] sm:$0xff]
  %v39 = vld [vmem:[%s0 + $0xc0] sm:$0xff]
  %v40 = vld [vmem:[%s0 + $0xc8] sm:$0xff]
  %v41 = vld [vmem:[%s0 + $0xd0] sm:$0xff]
  %v42 = vld [vmem:[%s0 + $0xd8] sm:$0xff]
  %v43 = vld [vmem:[%s0 + $0xe0] sm:$0xff]
  %v44 = vld [vmem:[%s0 + $0xe8] sm:$0xff]
  %v45 = vld [vmem:[%s0 + $0xf0] sm:$0xff]
  %v46 = vld [vmem:[%s0 + $0xf8] sm:$0xff]
  %v47 = vld [vmem:[%s1] sm:$0xf]
  %v48 = vld [vmem:[%s1 + $0x4] sm:$0xf]
  %v49 = vld [vmem:[%s1 + $0x8] sm:$0xf]
  %v50 = vld [vmem:[%s1 + $0xc] sm:$0xf]
  %v51 = vld [vmem:[%s1 + $0x10] sm:$0xf]
  %v52 = vld [vmem:[%s1 + $0x14] sm:$0xf]
  %v53 = vld [vmem:[%s1 + $0x18] sm:$0xf]
  %v54 = vld [vmem:[%s1 + $0x1c] sm:$0xf]
  %v55 = vld [vmem:[%s1 + $0x20] sm:$0xf]
  %v56 = vld [vmem:[%s1 + $0x24] sm:$0xf]
  %v57 = vld [vmem:[%s1 + $0x28] sm:$0xf]
  %v58 = vld [vmem:[%s1 + $0x2c] sm:$0xf]
  %v59 = vld [vmem:[%s1 + $0x30] sm:$0xf]
  %v60 = vld [vmem:[%s1 + $0x34] sm:$0xf]
  %v61 = vld [vmem:[%s1 + $0x38] sm:$0xf]
  %v62 = vld [vmem:[%s1 + $0x3c] sm:$0xf]
  %v63 = vld [vmem:[%s1 + $0x40] sm:$0xf]
  %v64 = vld [vmem:[%s1 + $0x44] sm:$0xf]
  %v65 = vld [vmem:[%s1 + $0x48] sm:$0xf]
  %v66 = vld [vmem:[%s1 + $0x4c] sm:$0xf]
  %v67 = vld [vmem:[%s1 + $0x50] sm:$0xf]
  %v68 = vld [vmem:[%s1 + $0x54] sm:$0xf]
  %v69 = vld [vmem:[%s1 + $0x58] sm:$0xf]
  %v70 = vld [vmem:[%s1 + $0x5c] sm:$0xf]
  %v71 = vld [vmem:[%s1 + $0x60] sm:$0xf]
  %v72 = vld [vmem:[%s1 + $0x64] sm:$0xf]
  %v73 = vld [vmem:[%s1 + $0x68] sm:$0xf]
  %v74 = vld [vmem:[%s1 + $0x6c] sm:$0xf]
  %v75 = vld [vmem:[%s1 + $0x70] sm:$0xf]
  %v76 = vld [vmem:[%s1 + $0x74] sm:$0xf]
  %v77 = vld [vmem:[%s1 + $0x78] sm:$0xf]
  %v78 = vld [vmem:[%s1 + $0x7c] sm:$0xf]
  %v79 = vld [vmem:[%s2] sm:$0x1]
  %v81 = vlaneseq
  %v82 = vshrl.u32 %v81, 7
  %v83 = vsub.s32 0, %v82
  %v84 = vrot.slane %v79, %v83
  %v118 = vunpack.c.l.b16 %v15
  %v119 = vunpack.c.h.b16 %v15
  %v120 = vunpack.c.l.b16 %v16
  %v121 = vunpack.c.h.b16 %v16
  %v122 = vunpack.c.l.b16 %v17
  %v123 = vunpack.c.h.b16 %v17
  %v124 = vunpack.c.l.b16 %v18
  %v125 = vunpack.c.h.b16 %v18
  %v126 = vunpack.c.l.b16 %v19
  %v127 = vunpack.c.h.b16 %v19
  %v128 = vunpack.c.l.b16 %v20
  %v129 = vunpack.c.h.b16 %v20
  %v130 = vunpack.c.l.b16 %v21
  %v131 = vunpack.c.h.b16 %v21
  %v132 = vunpack.c.l.b16 %v22
  %v133 = vunpack.c.h.b16 %v22
  %v134 = vunpack.c.l.b16 %v23
  %v135 = vunpack.c.h.b16 %v23
  %v136 = vunpack.c.l.b16 %v24
  %v137 = vunpack.c.h.b16 %v24
  %v138 = vunpack.c.l.b16 %v25
  %v139 = vunpack.c.h.b16 %v25
  %v140 = vunpack.c.l.b16 %v26
  %v141 = vunpack.c.h.b16 %v26
  %v142 = vunpack.c.l.b16 %v27
  %v143 = vunpack.c.h.b16 %v27
  %v144 = vunpack.c.l.b16 %v28
  %v145 = vunpack.c.h.b16 %v28
  %v146 = vunpack.c.l.b16 %v29
  %v147 = vunpack.c.h.b16 %v29
  %v148 = vunpack.c.l.b16 %v30
  %v149 = vunpack.c.h.b16 %v30
  %v150 = vunpack.c.l.b16 %v31
  %v151 = vunpack.c.h.b16 %v31
  %v152 = vunpack.c.l.b16 %v32
  %v153 = vunpack.c.h.b16 %v32
  %v154 = vunpack.c.l.b16 %v33
  %v155 = vunpack.c.h.b16 %v33
  %v156 = vunpack.c.l.b16 %v34
  %v157 = vunpack.c.h.b16 %v34
  %v158 = vunpack.c.l.b16 %v35
  %v159 = vunpack.c.h.b16 %v35
  %v160 = vunpack.c.l.b16 %v36
  %v161 = vunpack.c.h.b16 %v36
  %v162 = vunpack.c.l.b16 %v37
  %v163 = vunpack.c.h.b16 %v37
  %v164 = vunpack.c.l.b16 %v38
  %v165 = vunpack.c.h.b16 %v38
  %v166 = vunpack.c.l.b16 %v39
  %v167 = vunpack.c.h.b16 %v39
  %v168 = vunpack.c.l.b16 %v40
  %v169 = vunpack.c.h.b16 %v40
  %v170 = vunpack.c.l.b16 %v41
  %v171 = vunpack.c.h.b16 %v41
  %v172 = vunpack.c.l.b16 %v42
  %v173 = vunpack.c.h.b16 %v42
  %v174 = vunpack.c.l.b16 %v43
  %v175 = vunpack.c.h.b16 %v43
  %v176 = vunpack.c.l.b16 %v44
  %v177 = vunpack.c.h.b16 %v44
  %v178 = vunpack.c.l.b16 %v45
  %v179 = vunpack.c.h.b16 %v45
  %v180 = vunpack.c.l.b16 %v46
  %v181 = vunpack.c.h.b16 %v46
  %v182 = vpack.c.b16 %v120, %v118
  %v183 = vpack.c.b16 %v121, %v119
  %v184 = vpack.c.b16 %v124, %v122
  %v185 = vpack.c.b16 %v125, %v123
  %v186 = vpack.c.b16 %v128, %v126
  %v187 = vpack.c.b16 %v129, %v127
  %v188 = vpack.c.b16 %v132, %v130
  %v189 = vpack.c.b16 %v133, %v131
  %v190 = vpack.c.b16 %v136, %v134
  %v191 = vpack.c.b16 %v137, %v135
  %v192 = vpack.c.b16 %v140, %v138
  %v193 = vpack.c.b16 %v141, %v139
  %v194 = vpack.c.b16 %v144, %v142
  %v195 = vpack.c.b16 %v145, %v143
  %v196 = vpack.c.b16 %v148, %v146
  %v197 = vpack.c.b16 %v149, %v147
  %v198 = vpack.c.b16 %v152, %v150
  %v199 = vpack.c.b16 %v153, %v151
  %v200 = vpack.c.b16 %v156, %v154
  %v201 = vpack.c.b16 %v157, %v155
  %v202 = vpack.c.b16 %v160, %v158
  %v203 = vpack.c.b16 %v161, %v159
  %v204 = vpack.c.b16 %v164, %v162
  %v205 = vpack.c.b16 %v165, %v163
  %v206 = vpack.c.b16 %v168, %v166
  %v207 = vpack.c.b16 %v169, %v167
  %v208 = vpack.c.b16 %v172, %v170
  %v209 = vpack.c.b16 %v173, %v171
  %v210 = vpack.c.b16 %v176, %v174
  %v211 = vpack.c.b16 %v177, %v175
  %v212 = vpack.c.b16 %v180, %v178
  %v213 = vpack.c.b16 %v181, %v179
  %v278 = vunpack.c.l.b16 %v47
  %v279 = vunpack.c.l.b16 %v48
  %v280 = vunpack.c.l.b16 %v49
  %v281 = vunpack.c.l.b16 %v50
  %v282 = vunpack.c.l.b16 %v51
  %v283 = vunpack.c.l.b16 %v52
  %v284 = vunpack.c.l.b16 %v53
  %v285 = vunpack.c.l.b16 %v54
  %v286 = vunpack.c.l.b16 %v55
  %v287 = vunpack.c.l.b16 %v56
  %v288 = vunpack.c.l.b16 %v57
  %v289 = vunpack.c.l.b16 %v58
  %v290 = vunpack.c.l.b16 %v59
  %v291 = vunpack.c.l.b16 %v60
  %v292 = vunpack.c.l.b16 %v61
  %v293 = vunpack.c.l.b16 %v62
  %v294 = vunpack.c.l.b16 %v63
  %v295 = vunpack.c.l.b16 %v64
  %v296 = vunpack.c.l.b16 %v65
  %v297 = vunpack.c.l.b16 %v66
  %v298 = vunpack.c.l.b16 %v67
  %v299 = vunpack.c.l.b16 %v68
  %v300 = vunpack.c.l.b16 %v69
  %v301 = vunpack.c.l.b16 %v70
  %v302 = vunpack.c.l.b16 %v71
  %v303 = vunpack.c.l.b16 %v72
  %v304 = vunpack.c.l.b16 %v73
  %v305 = vunpack.c.l.b16 %v74
  %v306 = vunpack.c.l.b16 %v75
  %v307 = vunpack.c.l.b16 %v76
  %v308 = vunpack.c.l.b16 %v77
  %v309 = vunpack.c.l.b16 %v78
  %v310 = vpack.c.b16 %v279, %v278
  %v311 = vpack.c.b16 %v281, %v280
  %v312 = vpack.c.b16 %v283, %v282
  %v313 = vpack.c.b16 %v285, %v284
  %v314 = vpack.c.b16 %v287, %v286
  %v315 = vpack.c.b16 %v289, %v288
  %v316 = vpack.c.b16 %v291, %v290
  %v317 = vpack.c.b16 %v293, %v292
  %v318 = vpack.c.b16 %v295, %v294
  %v319 = vpack.c.b16 %v297, %v296
  %v320 = vpack.c.b16 %v299, %v298
  %v321 = vpack.c.b16 %v301, %v300
  %v322 = vpack.c.b16 %v303, %v302
  %v323 = vpack.c.b16 %v305, %v304
  %v324 = vpack.c.b16 %v307, %v306
  %v325 = vpack.c.b16 %v309, %v308
  %342 = vmatprep.subr.bf16.mxu0 0
  %343 = vmatpush1.bf16.msra.mxu0 %v310
  %344 = vmatprep.subr.bf16.mxu0 0
  %345 = vmatpush1.bf16.msra.mxu0 %v311
  %346 = vmatprep.subr.bf16.mxu0 0
  %347 = vmatpush1.bf16.msra.mxu0 %v312
  %348 = vmatprep.subr.bf16.mxu0 0
  %349 = vmatpush1.bf16.msra.mxu0 %v313
  %350 = vmatprep.subr.bf16.mxu0 0
  %351 = vmatpush1.bf16.msra.mxu0 %v314
  %352 = vmatprep.subr.bf16.mxu0 0
  %353 = vmatpush1.bf16.msra.mxu0 %v315
  %354 = vmatprep.subr.bf16.mxu0 0
  %355 = vmatpush1.bf16.msra.mxu0 %v316
  %356 = vmatprep.subr.bf16.mxu0 0
  %357 = vmatpush1.bf16.msra.mxu0 %v317
  %358 = vmatprep.subr.bf16.mxu0 0
  %359 = vmatpush1.bf16.msra.mxu0 %v318
  %360 = vmatprep.subr.bf16.mxu0 0
  %361 = vmatpush1.bf16.msra.mxu0 %v319
  %362 = vmatprep.subr.bf16.mxu0 0
  %363 = vmatpush1.bf16.msra.mxu0 %v320
  %364 = vmatprep.subr.bf16.mxu0 0
  %365 = vmatpush1.bf16.msra.mxu0 %v321
  %366 = vmatprep.subr.bf16.mxu0 0
  %367 = vmatpush1.bf16.msra.mxu0 %v322
  %368 = vmatprep.subr.bf16.mxu0 0
  %369 = vmatpush1.bf16.msra.mxu0 %v323
  %370 = vmatprep.subr.bf16.mxu0 0
  %371 = vmatpush1.bf16.msra.mxu0 %v324
  %372 = vmatprep.subr.bf16.mxu0 0
  %373 = vmatpush1.bf16.msra.mxu0 %v325
  %374 = vmatprep.mubr.bf16.mxu0 %v183
  %375 = vmatmul.mubr.bf16.gmra.mrb[0].mxu0 %v182
  %v376 = vpop.f32.mrb[0].mxu0
  %v377 = vadd.f32 %v84, %v376
  %v378 = vpop.f32.mrb[0].mxu0
  %v379 = vpop.f32.mrb[0].mxu0
  %v380 = vadd.f32 %v84, %v379
  %v381 = vpop.f32.mrb[0].mxu0
  %382 = vmatprep.mubr.bf16.mxu0 %v185
  %383 = vmatmul.mubr.bf16.gmra.mrb[0].mxu0 %v184
  %v384 = vpop.f32.mrb[0].mxu0
  %v385 = vadd.f32 %v84, %v384
  %v386 = vpop.f32.mrb[0].mxu0
  %v387 = vpop.f32.mrb[0].mxu0
  %v388 = vadd.f32 %v84, %v387
  %v389 = vpop.f32.mrb[0].mxu0
  %390 = vmatprep.mubr.bf16.mxu0 %v187
  %391 = vmatmul.mubr.bf16.gmra.mrb[0].mxu0 %v186
  %v392 = vpop.f32.mrb[0].mxu0
  %v393 = vadd.f32 %v84, %v392
  %v394 = vpop.f32.mrb[0].mxu0
  %v395 = vpop.f32.mrb[0].mxu0
  %v396 = vadd.f32 %v84, %v395
  %v397 = vpop.f32.mrb[0].mxu0
  %398 = vmatprep.mubr.bf16.mxu0 %v189
  %399 = vmatmul.mubr.bf16.gmra.mrb[0].mxu0 %v188
  %v400 = vpop.f32.mrb[0].mxu0
  %v401 = vadd.f32 %v84, %v400
  %v402 = vpop.f32.mrb[0].mxu0
  %v403 = vpop.f32.mrb[0].mxu0
  %v404 = vadd.f32 %v84, %v403
  %v405 = vpop.f32.mrb[0].mxu0
  %406 = vmatprep.mubr.bf16.mxu0 %v191
  %407 = vmatmul.mubr.bf16.gmra.mrb[0].mxu0 %v190
  %v408 = vpop.f32.mrb[0].mxu0
  %v409 = vadd.f32 %v84, %v408
  %v410 = vpop.f32.mrb[0].mxu0
  %v411 = vpop.f32.mrb[0].mxu0
  %v412 = vadd.f32 %v84, %v411
  %v413 = vpop.f32.mrb[0].mxu0
  %414 = vmatprep.mubr.bf16.mxu0 %v193
  %415 = vmatmul.mubr.bf16.gmra.mrb[0].mxu0 %v192
  %v416 = vpop.f32.mrb[0].mxu0
  %v417 = vadd.f32 %v84, %v416
  %v418 = vpop.f32.mrb[0].mxu0
  %v419 = vpop.f32.mrb[0].mxu0
  %v420 = vadd.f32 %v84, %v419
  %v421 = vpop.f32.mrb[0].mxu0
  %422 = vmatprep.mubr.bf16.mxu0 %v195
  %423 = vmatmul.mubr.bf16.gmra.mrb[0].mxu0 %v194
  %v424 = vpop.f32.mrb[0].mxu0
  %v425 = vadd.f32 %v84, %v424
  %v426 = vpop.f32.mrb[0].mxu0
  %v427 = vpop.f32.mrb[0].mxu0
  %v428 = vadd.f32 %v84, %v427
  %v429 = vpop.f32.mrb[0].mxu0
  %430 = vmatprep.mubr.bf16.mxu0 %v197
  %431 = vmatmul.mubr.bf16.gmra.mrb[0].mxu0 %v196
  %v432 = vpop.f32.mrb[0].mxu0
  %v433 = vadd.f32 %v84, %v432
  %v434 = vpop.f32.mrb[0].mxu0
  %v435 = vpop.f32.mrb[0].mxu0
  %v436 = vadd.f32 %v84, %v435
  %v437 = vpop.f32.mrb[0].mxu0
  %438 = vmatprep.mubr.bf16.mxu0 %v199
  %439 = vmatmul.mubr.bf16.gmra.mrb[0].mxu0 %v198
  %v440 = vpop.f32.mrb[0].mxu0
  %v441 = vadd.f32 %v84, %v440
  %v442 = vpop.f32.mrb[0].mxu0
  %v443 = vpop.f32.mrb[0].mxu0
  %v444 = vadd.f32 %v84, %v443
  %v445 = vpop.f32.mrb[0].mxu0
  %446 = vmatprep.mubr.bf16.mxu0 %v201
  %447 = vmatmul.mubr.bf16.gmra.mrb[0].mxu0 %v200
  %v448 = vpop.f32.mrb[0].mxu0
  %v449 = vadd.f32 %v84, %v448
  %v450 = vpop.f32.mrb[0].mxu0
  %v451 = vpop.f32.mrb[0].mxu0
  %v452 = vadd.f32 %v84, %v451
  %v453 = vpop.f32.mrb[0].mxu0
  %454 = vmatprep.mubr.bf16.mxu0 %v203
  %455 = vmatmul.mubr.bf16.gmra.mrb[0].mxu0 %v202
  %v456 = vpop.f32.mrb[0].mxu0
  %v457 = vadd.f32 %v84, %v456
  %v458 = vpop.f32.mrb[0].mxu0
  %v459 = vpop.f32.mrb[0].mxu0
  %v460 = vadd.f32 %v84, %v459
  %v461 = vpop.f32.mrb[0].mxu0
  %462 = vmatprep.mubr.bf16.mxu0 %v205
  %463 = vmatmul.mubr.bf16.gmra.mrb[0].mxu0 %v204
  %v464 = vpop.f32.mrb[0].mxu0
  %v465 = vadd.f32 %v84, %v464
  %v466 = vpop.f32.mrb[0].mxu0
  %v467 = vpop.f32.mrb[0].mxu0
  %v468 = vadd.f32 %v84, %v467
  %v469 = vpop.f32.mrb[0].mxu0
  %470 = vmatprep.mubr.bf16.mxu0 %v207
  %471 = vmatmul.mubr.bf16.gmra.mrb[0].mxu0 %v206
  %v472 = vpop.f32.mrb[0].mxu0
  %v473 = vadd.f32 %v84, %v472
  %v474 = vpop.f32.mrb[0].mxu0
  %v475 = vpop.f32.mrb[0].mxu0
  %v476 = vadd.f32 %v84, %v475
  %v477 = vpop.f32.mrb[0].mxu0
  %478 = vmatprep.mubr.bf16.mxu0 %v209
  %479 = vmatmul.mubr.bf16.gmra.mrb[0].mxu0 %v208
  %v480 = vpop.f32.mrb[0].mxu0
  %v481 = vadd.f32 %v84, %v480
  %v482 = vpop.f32.mrb[0].mxu0
  %v483 = vpop.f32.mrb[0].mxu0
  %v484 = vadd.f32 %v84, %v483
  %v485 = vpop.f32.mrb[0].mxu0
  %486 = vmatprep.mubr.bf16.mxu0 %v211
  %487 = vmatmul.mubr.bf16.gmra.mrb[0].mxu0 %v210
  %v488 = vpop.f32.mrb[0].mxu0
  %v489 = vadd.f32 %v84, %v488
  %v490 = vpop.f32.mrb[0].mxu0
  %v491 = vpop.f32.mrb[0].mxu0
  %v492 = vadd.f32 %v84, %v491
  %v493 = vpop.f32.mrb[0].mxu0
  %494 = vmatprep.mubr.bf16.mxu0 %v213
  %495 = vmatmul.mubr.bf16.gmra.mrb[0].mxu0 %v212
  %v496 = vpop.f32.mrb[0].mxu0
  %v497 = vadd.f32 %v84, %v496
  %v498 = vpop.f32.mrb[0].mxu0
  %v499 = vpop.f32.mrb[0].mxu0
  %v500 = vadd.f32 %v84, %v499
  %v501 = vpop.f32.mrb[0].mxu0
  %502 = vdwg.mxu0
  %v503 = vmax.f32 %v377, 0.0
  %v504 = vmax.f32 %v380, 0.0
  %v505 = vmax.f32 %v385, 0.0
  %v506 = vmax.f32 %v388, 0.0
  %v507 = vmax.f32 %v393, 0.0
  %v508 = vmax.f32 %v396, 0.0
  %v509 = vmax.f32 %v401, 0.0
  %v510 = vmax.f32 %v404, 0.0
  %v511 = vmax.f32 %v409, 0.0
  %v512 = vmax.f32 %v412, 0.0
  %v513 = vmax.f32 %v417, 0.0
  %v514 = vmax.f32 %v420, 0.0
  %v515 = vmax.f32 %v425, 0.0
  %v516 = vmax.f32 %v428, 0.0
  %v517 = vmax.f32 %v433, 0.0
  %v518 = vmax.f32 %v436, 0.0
  %v519 = vmax.f32 %v441, 0.0
  %v520 = vmax.f32 %v444, 0.0
  %v521 = vmax.f32 %v449, 0.0
  %v522 = vmax.f32 %v452, 0.0
  %v523 = vmax.f32 %v457, 0.0
  %v524 = vmax.f32 %v460, 0.0
  %v525 = vmax.f32 %v465, 0.0
  %v526 = vmax.f32 %v468, 0.0
  %v527 = vmax.f32 %v473, 0.0
  %v528 = vmax.f32 %v476, 0.0
  %v529 = vmax.f32 %v481, 0.0
  %v530 = vmax.f32 %v484, 0.0
  %v531 = vmax.f32 %v489, 0.0
  %v532 = vmax.f32 %v492, 0.0
  %v533 = vmax.f32 %v497, 0.0
  %v534 = vmax.f32 %v500, 0.0
  %v535 = vpack.c.bf16 %v504, %v503
  %v536 = vpack.c.bf16 %v506, %v505
  %v537 = vpack.c.bf16 %v508, %v507
  %v538 = vpack.c.bf16 %v510, %v509
  %v539 = vpack.c.bf16 %v512, %v511
  %v540 = vpack.c.bf16 %v514, %v513
  %v541 = vpack.c.bf16 %v516, %v515
  %v542 = vpack.c.bf16 %v518, %v517
  %v543 = vpack.c.bf16 %v520, %v519
  %v544 = vpack.c.bf16 %v522, %v521
  %v545 = vpack.c.bf16 %v524, %v523
  %v546 = vpack.c.bf16 %v526, %v525
  %v547 = vpack.c.bf16 %v528, %v527
  %v548 = vpack.c.bf16 %v530, %v529
  %v549 = vpack.c.bf16 %v532, %v531
  %v550 = vpack.c.bf16 %v534, %v533
  %v567 = vunpack.c.l.b16 %v535
  %v568 = vunpack.c.h.b16 %v535
  %v569 = vunpack.c.l.b16 %v536
  %v570 = vunpack.c.h.b16 %v536
  %v571 = vunpack.c.l.b16 %v537
  %v572 = vunpack.c.h.b16 %v537
  %v573 = vunpack.c.l.b16 %v538
  %v574 = vunpack.c.h.b16 %v538
  %v575 = vunpack.c.l.b16 %v539
  %v576 = vunpack.c.h.b16 %v539
  %v577 = vunpack.c.l.b16 %v540
  %v578 = vunpack.c.h.b16 %v540
  %v579 = vunpack.c.l.b16 %v541
  %v580 = vunpack.c.h.b16 %v541
  %v581 = vunpack.c.l.b16 %v542
  %v582 = vunpack.c.h.b16 %v542
  %v583 = vunpack.c.l.b16 %v543
  %v584 = vunpack.c.h.b16 %v543
  %v585 = vunpack.c.l.b16 %v544
  %v586 = vunpack.c.h.b16 %v544
  %v587 = vunpack.c.l.b16 %v545
  %v588 = vunpack.c.h.b16 %v545
  %v589 = vunpack.c.l.b16 %v546
  %v590 = vunpack.c.h.b16 %v546
  %v591 = vunpack.c.l.b16 %v547
  %v592 = vunpack.c.h.b16 %v547
  %v593 = vunpack.c.l.b16 %v548
  %v594 = vunpack.c.h.b16 %v548
  %v595 = vunpack.c.l.b16 %v549
  %v596 = vunpack.c.h.b16 %v549
  %v597 = vunpack.c.l.b16 %v550
  %v598 = vunpack.c.h.b16 %v550
  %v599 = vpack.c.b16 %v567, %v567
  %v600 = vpack.c.b16 %v568, %v568
  %v601 = vpack.c.b16 %v569, %v569
  %v602 = vpack.c.b16 %v570, %v570
  %v603 = vpack.c.b16 %v571, %v571
  %v604 = vpack.c.b16 %v572, %v572
  %v605 = vpack.c.b16 %v573, %v573
  %v606 = vpack.c.b16 %v574, %v574
  %v607 = vpack.c.b16 %v575, %v575
  %v608 = vpack.c.b16 %v576, %v576
  %v609 = vpack.c.b16 %v577, %v577
  %v610 = vpack.c.b16 %v578, %v578
  %v611 = vpack.c.b16 %v579, %v579
  %v612 = vpack.c.b16 %v580, %v580
  %v613 = vpack.c.b16 %v581, %v581
  %v614 = vpack.c.b16 %v582, %v582
  %v615 = vpack.c.b16 %v583, %v583
  %v616 = vpack.c.b16 %v584, %v584
  %v617 = vpack.c.b16 %v585, %v585
  %v618 = vpack.c.b16 %v586, %v586
  %v619 = vpack.c.b16 %v587, %v587
  %v620 = vpack.c.b16 %v588, %v588
  %v621 = vpack.c.b16 %v589, %v589
  %v622 = vpack.c.b16 %v590, %v590
  %v623 = vpack.c.b16 %v591, %v591
  %v624 = vpack.c.b16 %v592, %v592
  %v625 = vpack.c.b16 %v593, %v593
  %v626 = vpack.c.b16 %v594, %v594
  %v627 = vpack.c.b16 %v595, %v595
  %v628 = vpack.c.b16 %v596, %v596
  %v629 = vpack.c.b16 %v597, %v597
  %v630 = vpack.c.b16 %v598, %v598
  %663 = vst [vmem:[%s3] sm:$0xf] %v599
  %664 = vst [vmem:[%s3 + $0x4] sm:$0xf] %v600
  %665 = vst [vmem:[%s3 + $0x8] sm:$0xf] %v601
  %666 = vst [vmem:[%s3 + $0xc] sm:$0xf] %v602
  %667 = vst [vmem:[%s3 + $0x10] sm:$0xf] %v603
  %668 = vst [vmem:[%s3 + $0x14] sm:$0xf] %v604
  %669 = vst [vmem:[%s3 + $0x18] sm:$0xf] %v605
  %670 = vst [vmem:[%s3 + $0x1c] sm:$0xf] %v606
  %671 = vst [vmem:[%s3 + $0x20] sm:$0xf] %v607
  %672 = vst [vmem:[%s3 + $0x24] sm:$0xf] %v608
  %673 = vst [vmem:[%s3 + $0x28] sm:$0xf] %v609
  %674 = vst [vmem:[%s3 + $0x2c] sm:$0xf] %v610
  %675 = vst [vmem:[%s3 + $0x30] sm:$0xf] %v611
  %676 = vst [vmem:[%s3 + $0x34] sm:$0xf] %v612
  %677 = vst [vmem:[%s3 + $0x38] sm:$0xf] %v613
  %678 = vst [vmem:[%s3 + $0x3c] sm:$0xf] %v614
  %679 = vst [vmem:[%s3 + $0x40] sm:$0xf] %v615
  %680 = vst [vmem:[%s3 + $0x44] sm:$0xf] %v616
  %681 = vst [vmem:[%s3 + $0x48] sm:$0xf] %v617
  %682 = vst [vmem:[%s3 + $0x4c] sm:$0xf] %v618
  %683 = vst [vmem:[%s3 + $0x50] sm:$0xf] %v619
  %684 = vst [vmem:[%s3 + $0x54] sm:$0xf] %v620
  %685 = vst [vmem:[%s3 + $0x58] sm:$0xf] %v621
  %686 = vst [vmem:[%s3 + $0x5c] sm:$0xf] %v622
  %687 = vst [vmem:[%s3 + $0x60] sm:$0xf] %v623
  %688 = vst [vmem:[%s3 + $0x64] sm:$0xf] %v624
  %689 = vst [vmem:[%s3 + $0x68] sm:$0xf] %v625
  %690 = vst [vmem:[%s3 + $0x6c] sm:$0xf] %v626
  %691 = vst [vmem:[%s3 + $0x70] sm:$0xf] %v627
  %692 = vst [vmem:[%s3 + $0x74] sm:$0xf] %v628
  %693 = vst [vmem:[%s3 + $0x78] sm:$0xf] %v629
  %694 = vst [vmem:[%s3 + $0x7c] sm:$0xf] %v630
  // Predicated region
  $region14: #{_lambda_.5} parent=0 // pred_check
    _
  $region15: #{_lambda_.5} parent=0 // pred_check_branch
    %696 = sbr.rel (0) target = $region17
  $region16: #{_lambda_.5} parent=0 // pred_region
    _
  $region17: #{_lambda_.5} parent=0 // pred_fallthru
    _
  // Predicated region
  $region18: #{_lambda_.5} parent=0 // pred_check
    _
  $region19: #{_lambda_.5} parent=0 // pred_check_branch
    %698 = sbr.rel (0) target = $region21
  $region20: #{_lambda_.5} parent=0 // pred_region
    _
  $region21: #{_lambda_.5} parent=0 // pred_fallthru
    _

// kernel: _lambda_.6
$region0: #{_lambda_.6}
  #allocation0 [shape = 'u32[]', space=smem, size = 0x4, offset = 0x4, fixed_abs, tag = 'smem constant byte address 0x4 - core index']
  #allocation1 [shape = 'u32[144,128]{1,0:T(1,128)}', space=vmem, size = 0x12000, scoped, tag = 'internal scratch']
  %s0 = inlined_call_operand.vmem [shape: bf16[48,512], index: 0, kind: input, shape index: {}]
  %s1 = inlined_call_operand.vmem [shape: bf16[512,128], index: 1, kind: input, shape index: {}]
  %s2 = inlined_call_operand.vmem [shape: f32[1,128], index: 2, kind: input, shape index: {}]
  %s3 = inlined_call_operand.vmem [shape: bf16[48,128], index: 3, kind: output, shape index: {}]
  %s4 = sld [smem:[#allocation0]]
  $region22: #{_lambda_.6} parent=0
    _
  %s6 = ssub.s32 1, %s4
  %s7 = scalar_select 0, %s6, %s4
  // Predicated region
  $region2: #{_lambda_.6} parent=0 // pred_check
    _
  $region3: #{_lambda_.6} parent=0 // pred_check_branch
    %9 = sbr.rel (0) target = $region5
  $region4: #{_lambda_.6} parent=0 // pred_region
    _
  $region5: #{_lambda_.6} parent=0 // pred_fallthru
    _
  // Predicated region
  $region6: #{_lambda_.6} parent=0 // pred_check
    _
  $region7: #{_lambda_.6} parent=0 // pred_check_branch
    %11 = sbr.rel (0) target = $region9
  $region8: #{_lambda_.6} parent=0 // pred_region
    _
  $region9: #{_lambda_.6} parent=0 // pred_fallthru
    _
  // Predicated region
  $region10: #{_lambda_.6} parent=0 // pred_check
    _
  $region11: #{_lambda_.6} parent=0 // pred_check_branch
    %13 = sbr.rel (0) target = $region13
  $region12: #{_lambda_.6} parent=0 // pred_region
    _
  $region13: #{_lambda_.6} parent=0 // pred_fallthru
    _
  %v15 = vld [vmem:[%s0] sm:$0xff]
  %v16 = vld [vmem:[%s0 + $0x8] sm:$0xff]
  %v17 = vld [vmem:[%s0 + $0x10] sm:$0xff]
  %v18 = vld [vmem:[%s0 + $0x18] sm:$0xff]
  %v19 = vld [vmem:[%s0 + $0x20] sm:$0xff]
  %v20 = vld [vmem:[%s0 + $0x28] sm:$0xff]
  %v21 = vld [vmem:[%s0 + $0x30] sm:$0xff]
  %v22 = vld [vmem:[%s0 + $0x38] sm:$0xff]
  %v23 = vld [vmem:[%s0 + $0x40] sm:$0xff]
  %v24 = vld [vmem:[%s0 + $0x48] sm:$0xff]
  %v25 = vld [vmem:[%s0 + $0x50] sm:$0xff]
  %v26 = vld [vmem:[%s0 + $0x58] sm:$0xff]
  %v27 = vld [vmem:[%s1] sm:$0xf]
  %v28 = vld [vmem:[%s1 + $0x4] sm:$0xf]
  %v29 = vld [vmem:[%s1 + $0x8] sm:$0xf]
  %v30 = vld [vmem:[%s1 + $0xc] sm:$0xf]
  %v31 = vld [vmem:[%s1 + $0x10] sm:$0xf]
  %v32 = vld [vmem:[%s1 + $0x14] sm:$0xf]
  %v33 = vld [vmem:[%s1 + $0x18] sm:$0xf]
  %v34 = vld [vmem:[%s1 + $0x1c] sm:$0xf]
  %v35 = vld [vmem:[%s1 + $0x20] sm:$0xf]
  %v36 = vld [vmem:[%s1 + $0x24] sm:$0xf]
  %v37 = vld [vmem:[%s1 + $0x28] sm:$0xf]
  %v38 = vld [vmem:[%s1 + $0x2c] sm:$0xf]
  %v39 = vld [vmem:[%s1 + $0x30] sm:$0xf]
  %v40 = vld [vmem:[%s1 + $0x34] sm:$0xf]
  %v41 = vld [vmem:[%s1 + $0x38] sm:$0xf]
  %v42 = vld [vmem:[%s1 + $0x3c] sm:$0xf]
  %v43 = vld [vmem:[%s1 + $0x40] sm:$0xf]
  %v44 = vld [vmem:[%s1 + $0x44] sm:$0xf]
  %v45 = vld [vmem:[%s1 + $0x48] sm:$0xf]
  %v46 = vld [vmem:[%s1 + $0x4c] sm:$0xf]
  %v47 = vld [vmem:[%s1 + $0x50] sm:$0xf]
  %v48 = vld [vmem:[%s1 + $0x54] sm:$0xf]
  %v49 = vld [vmem:[%s1 + $0x58] sm:$0xf]
  %v50 = vld [vmem:[%s1 + $0x5c] sm:$0xf]
  %v51 = vld [vmem:[%s1 + $0x60] sm:$0xf]
  %v52 = vld [vmem:[%s1 + $0x64] sm:$0xf]
  %v53 = vld [vmem:[%s1 + $0x68] sm:$0xf]
  %v54 = vld [vmem:[%s1 + $0x6c] sm:$0xf]
  %v55 = vld [vmem:[%s1 + $0x70] sm:$0xf]
  %v56 = vld [vmem:[%s1 + $0x74] sm:$0xf]
  %v57 = vld [vmem:[%s1 + $0x78] sm:$0xf]
  %v58 = vld [vmem:[%s1 + $0x7c] sm:$0xf]
  %v59 = vld [vmem:[%s1 + $0x80] sm:$0xf]
  %v60 = vld [vmem:[%s1 + $0x84] sm:$0xf]
  %v61 = vld [vmem:[%s1 + $0x88] sm:$0xf]
  %v62 = vld [vmem:[%s1 + $0x8c] sm:$0xf]
  %v63 = vld [vmem:[%s1 + $0x90] sm:$0xf]
  %v64 = vld [vmem:[%s1 + $0x94] sm:$0xf]
  %v65 = vld [vmem:[%s1 + $0x98] sm:$0xf]
  %v66 = vld [vmem:[%s1 + $0x9c] sm:$0xf]
  %v67 = vld [vmem:[%s1 + $0xa0] sm:$0xf]
  %v68 = vld [vmem:[%s1 + $0xa4] sm:$0xf]
  %v69 = vld [vmem:[%s1 + $0xa8] sm:$0xf]
  %v70 = vld [vmem:[%s1 + $0xac] sm:$0xf]
  %v71 = vld [vmem:[%s1 + $0xb0] sm:$0xf]
  %v72 = vld [vmem:[%s1 + $0xb4] sm:$0xf]
  %v73 = vld [vmem:[%s1 + $0xb8] sm:$0xf]
  %v74 = vld [vmem:[%s1 + $0xbc] sm:$0xf]
  %v75 = vld [vmem:[%s1 + $0xc0] sm:$0xf]
  %v76 = vld [vmem:[%s1 + $0xc4] sm:$0xf]
  %v77 = vld [vmem:[%s1 + $0xc8] sm:$0xf]
  %v78 = vld [vmem:[%s1 + $0xcc] sm:$0xf]
  %v79 = vld [vmem:[%s1 + $0xd0] sm:$0xf]
  %v80 = vld [vmem:[%s1 + $0xd4] sm:$0xf]
  %v81 = vld [vmem:[%s1 + $0xd8] sm:$0xf]
  %v82 = vld [vmem:[%s1 + $0xdc] sm:$0xf]
  %v83 = vld [vmem:[%s1 + $0xe0] sm:$0xf]
  %v84 = vld [vmem:[%s1 + $0xe4] sm:$0xf]
  %v85 = vld [vmem:[%s1 + $0xe8] sm:$0xf]
  %v86 = vld [vmem:[%s1 + $0xec] sm:$0xf]
  %v87 = vld [vmem:[%s1 + $0xf0] sm:$0xf]
  %v88 = vld [vmem:[%s1 + $0xf4] sm:$0xf]
  %v89 = vld [vmem:[%s1 + $0xf8] sm:$0xf]
  %v90 = vld [vmem:[%s1 + $0xfc] sm:$0xf]
  %v91 = vld [vmem:[%s2] sm:$0x1]
  %v93 = vlaneseq
  %v94 = vshrl.u32 %v93, 7
  %v95 = vsub.s32 0, %v94
  %v96 = vrot.slane %v91, %v95
  %v110 = vunpack.c.l.b16 %v15
  %v111 = vunpack.c.h.b16 %v15
  %v112 = vunpack.c.l.b16 %v16
  %v113 = vunpack.c.h.b16 %v16
  %v114 = vunpack.c.l.b16 %v17
  %v115 = vunpack.c.h.b16 %v17
  %v116 = vunpack.c.l.b16 %v18
  %v117 = vunpack.c.h.b16 %v18
  %v118 = vunpack.c.l.b16 %v19
  %v119 = vunpack.c.h.b16 %v19
  %v120 = vunpack.c.l.b16 %v20
  %v121 = vunpack.c.h.b16 %v20
  %v122 = vunpack.c.l.b16 %v21
  %v123 = vunpack.c.h.b16 %v21
  %v124 = vunpack.c.l.b16 %v22
  %v125 = vunpack.c.h.b16 %v22
  %v126 = vunpack.c.l.b16 %v23
  %v127 = vunpack.c.h.b16 %v23
  %v128 = vunpack.c.l.b16 %v24
  %v129 = vunpack.c.h.b16 %v24
  %v130 = vunpack.c.l.b16 %v25
  %v131 = vunpack.c.h.b16 %v25
  %v132 = vunpack.c.l.b16 %v26
  %v133 = vunpack.c.h.b16 %v26
  %v134 = vpack.c.b16 %v114, %v110
  %v135 = vpack.c.b16 %v115, %v111
  %v136 = vpack.c.b16 %v116, %v112
  %v137 = vpack.c.b16 %v117, %v113
  %v138 = vpack.c.b16 %v122, %v118
  %v139 = vpack.c.b16 %v123, %v119
  %v140 = vpack.c.b16 %v124, %v120
  %v141 = vpack.c.b16 %v125, %v121
  %v142 = vpack.c.b16 %v130, %v126
  %v143 = vpack.c.b16 %v131, %v127
  %v144 = vpack.c.b16 %v132, %v128
  %v145 = vpack.c.b16 %v133, %v129
  %v222 = vunpack.c.l.b16 %v27
  %v223 = vunpack.c.l.b16 %v28
  %v224 = vunpack.c.l.b16 %v29
  %v225 = vunpack.c.l.b16 %v30
  %v226 = vunpack.c.l.b16 %v31
  %v227 = vunpack.c.l.b16 %v32
  %v228 = vunpack.c.l.b16 %v33
  %v229 = vunpack.c.l.b16 %v34
  %v230 = vunpack.c.l.b16 %v35
  %v231 = vunpack.c.l.b16 %v36
  %v232 = vunpack.c.l.b16 %v37
  %v233 = vunpack.c.l.b16 %v38
  %v234 = vunpack.c.l.b16 %v39
  %v235 = vunpack.c.l.b16 %v40
  %v236 = vunpack.c.l.b16 %v41
  %v237 = vunpack.c.l.b16 %v42
  %v238 = vunpack.c.l.b16 %v43
  %v239 = vunpack.c.l.b16 %v44
  %v240 = vunpack.c.l.b16 %v45
  %v241 = vunpack.c.l.b16 %v46
  %v242 = vunpack.c.l.b16 %v47
  %v243 = vunpack.c.l.b16 %v48
  %v244 = vunpack.c.l.b16 %v49
  %v245 = vunpack.c.l.b16 %v50
  %v246 = vunpack.c.l.b16 %v51
  %v247 = vunpack.c.l.b16 %v52
  %v248 = vunpack.c.l.b16 %v53
  %v249 = vunpack.c.l.b16 %v54
  %v250 = vunpack.c.l.b16 %v55
  %v251 = vunpack.c.l.b16 %v56
  %v252 = vunpack.c.l.b16 %v57
  %v253 = vunpack.c.l.b16 %v58
  %v254 = vunpack.c.l.b16 %v59
  %v255 = vunpack.c.l.b16 %v60
  %v256 = vunpack.c.l.b16 %v61
  %v257 = vunpack.c.l.b16 %v62
  %v258 = vunpack.c.l.b16 %v63
  %v259 = vunpack.c.l.b16 %v64
  %v260 = vunpack.c.l.b16 %v65
  %v261 = vunpack.c.l.b16 %v66
  %v262 = vunpack.c.l.b16 %v67
  %v263 = vunpack.c.l.b16 %v68
  %v264 = vunpack.c.l.b16 %v69
  %v265 = vunpack.c.l.b16 %v70
  %v266 = vunpack.c.l.b16 %v71
  %v267 = vunpack.c.l.b16 %v72
  %v268 = vunpack.c.l.b16 %v73
  %v269 = vunpack.c.l.b16 %v74
  %v270 = vunpack.c.l.b16 %v75
  %v271 = vunpack.c.l.b16 %v76
  %v272 = vunpack.c.l.b16 %v77
  %v273 = vunpack.c.l.b16 %v78
  %v274 = vunpack.c.l.b16 %v79
  %v275 = vunpack.c.l.b16 %v80
  %v276 = vunpack.c.l.b16 %v81
  %v277 = vunpack.c.l.b16 %v82
  %v278 = vunpack.c.l.b16 %v83
  %v279 = vunpack.c.l.b16 %v84
  %v280 = vunpack.c.l.b16 %v85
  %v281 = vunpack.c.l.b16 %v86
  %v282 = vunpack.c.l.b16 %v87
  %v283 = vunpack.c.l.b16 %v88
  %v284 = vunpack.c.l.b16 %v89
  %v285 = vunpack.c.l.b16 %v90
  %v286 = vpack.c.b16 %v223, %v222
  %v287 = vpack.c.b16 %v225, %v224
  %v288 = vpack.c.b16 %v227, %v226
  %v289 = vpack.c.b16 %v229, %v228
  %v290 = vpack.c.b16 %v231, %v230
  %v291 = vpack.c.b16 %v233, %v232
  %v292 = vpack.c.b16 %v235, %v234
  %v293 = vpack.c.b16 %v237, %v236
  %v294 = vpack.c.b16 %v239, %v238
  %v295 = vpack.c.b16 %v241, %v240
  %v296 = vpack.c.b16 %v243, %v242
  %v297 = vpack.c.b16 %v245, %v244
  %v298 = vpack.c.b16 %v247, %v246
  %v299 = vpack.c.b16 %v249, %v248
  %v300 = vpack.c.b16 %v251, %v250
  %v301 = vpack.c.b16 %v253, %v252
  %v302 = vpack.c.b16 %v255, %v254
  %v303 = vpack.c.b16 %v257, %v256
  %v304 = vpack.c.b16 %v259, %v258
  %v305 = vpack.c.b16 %v261, %v260
  %v306 = vpack.c.b16 %v263, %v262
  %v307 = vpack.c.b16 %v265, %v264
  %v308 = vpack.c.b16 %v267, %v266
  %v309 = vpack.c.b16 %v269, %v268
  %v310 = vpack.c.b16 %v271, %v270
  %v311 = vpack.c.b16 %v273, %v272
  %v312 = vpack.c.b16 %v275, %v274
  %v313 = vpack.c.b16 %v277, %v276
  %v314 = vpack.c.b16 %v279, %v278
  %v315 = vpack.c.b16 %v281, %v280
  %v316 = vpack.c.b16 %v283, %v282
  %v317 = vpack.c.b16 %v285, %v284
  %350 = vmatprep.subr.bf16.mxu0 0
  %351 = vmatpush1.bf16.msra.mxu0 %v286
  %352 = vmatprep.subr.bf16.mxu0 0
  %353 = vmatpush1.bf16.msra.mxu0 %v287
  %354 = vmatprep.subr.bf16.mxu0 0
  %355 = vmatpush1.bf16.msra.mxu0 %v288
  %356 = vmatprep.subr.bf16.mxu0 0
  %357 = vmatpush1.bf16.msra.mxu0 %v289
  %358 = vmatprep.subr.bf16.mxu0 0
  %359 = vmatpush1.bf16.msra.mxu0 %v290
  %360 = vmatprep.subr.bf16.mxu0 0
  %361 = vmatpush1.bf16.msra.mxu0 %v291
  %362 = vmatprep.subr.bf16.mxu0 0
  %363 = vmatpush1.bf16.msra.mxu0 %v292
  %364 = vmatprep.subr.bf16.mxu0 0
  %365 = vmatpush1.bf16.msra.mxu0 %v293
  %366 = vmatprep.subr.bf16.mxu0 0
  %367 = vmatpush1.bf16.msra.mxu0 %v294
  %368 = vmatprep.subr.bf16.mxu0 0
  %369 = vmatpush1.bf16.msra.mxu0 %v295
  %370 = vmatprep.subr.bf16.mxu0 0
  %371 = vmatpush1.bf16.msra.mxu0 %v296
  %372 = vmatprep.subr.bf16.mxu0 0
  %373 = vmatpush1.bf16.msra.mxu0 %v297
  %374 = vmatprep.subr.bf16.mxu0 0
  %375 = vmatpush1.bf16.msra.mxu0 %v298
  %376 = vmatprep.subr.bf16.mxu0 0
  %377 = vmatpush1.bf16.msra.mxu0 %v299
  %378 = vmatprep.subr.bf16.mxu0 0
  %379 = vmatpush1.bf16.msra.mxu0 %v300
  %380 = vmatprep.subr.bf16.mxu0 0
  %381 = vmatpush1.bf16.msra.mxu0 %v301
  %382 = vmatprep.mubr.bf16.mxu0 %v135
  %383 = vmatmul.mubr.bf16.gmra.mrb[0].mxu0 %v134
  %v384 = vpop.f32.mrb[0].mxu0
  %v385 = vadd.f32 %v96, %v384
  %v386 = vpop.f32.mrb[0].mxu0
  %v387 = vpop.f32.mrb[0].mxu0
  %v388 = vadd.f32 %v96, %v387
  %v389 = vpop.f32.mrb[0].mxu0
  %390 = vmatprep.mubr.bf16.mxu0 %v139
  %391 = vmatmul.mubr.bf16.gmra.mrb[0].mxu0 %v138
  %v392 = vpop.f32.mrb[0].mxu0
  %v393 = vadd.f32 %v96, %v392
  %v394 = vpop.f32.mrb[0].mxu0
  %v395 = vpop.f32.mrb[0].mxu0
  %v396 = vadd.f32 %v96, %v395
  %v397 = vpop.f32.mrb[0].mxu0
  %398 = vmatprep.mubr.bf16.mxu0 %v143
  %399 = vmatmul.mubr.bf16.gmra.mrb[0].mxu0 %v142
  %v400 = vpop.f32.mrb[0].mxu0
  %v401 = vadd.f32 %v96, %v400
  %v402 = vpop.f32.mrb[0].mxu0
  %v403 = vpop.f32.mrb[0].mxu0
  %v404 = vadd.f32 %v96, %v403
  %v405 = vpop.f32.mrb[0].mxu0
  %406 = vdwg.mxu0
  %407 = vmatprep.subr.bf16.mxu0 0
  %408 = vmatpush1.bf16.msra.mxu0 %v302
  %409 = vmatprep.subr.bf16.mxu0 0
  %410 = vmatpush1.bf16.msra.mxu0 %v303
  %411 = vmatprep.subr.bf16.mxu0 0
  %412 = vmatpush1.bf16.msra.mxu0 %v304
  %413 = vmatprep.subr.bf16.mxu0 0
  %414 = vmatpush1.bf16.msra.mxu0 %v305
  %415 = vmatprep.subr.bf16.mxu0 0
  %416 = vmatpush1.bf16.msra.mxu0 %v306
  %417 = vmatprep.subr.bf16.mxu0 0
  %418 = vmatpush1.bf16.msra.mxu0 %v307
  %419 = vmatprep.subr.bf16.mxu0 0
  %420 = vmatpush1.bf16.msra.mxu0 %v308
  %421 = vmatprep.subr.bf16.mxu0 0
  %422 = vmatpush1.bf16.msra.mxu0 %v309
  %423 = vmatprep.subr.bf16.mxu0 0
  %424 = vmatpush1.bf16.msra.mxu0 %v310
  %425 = vmatprep.subr.bf16.mxu0 0
  %426 = vmatpush1.bf16.msra.mxu0 %v311
  %427 = vmatprep.subr.bf16.mxu0 0
  %428 = vmatpush1.bf16.msra.mxu0 %v312
  %429 = vmatprep.subr.bf16.mxu0 0
  %430 = vmatpush1.bf16.msra.mxu0 %v313
  %431 = vmatprep.subr.bf16.mxu0 0
  %432 = vmatpush1.bf16.msra.mxu0 %v314
  %433 = vmatprep.subr.bf16.mxu0 0
  %434 = vmatpush1.bf16.msra.mxu0 %v315
  %435 = vmatprep.subr.bf16.mxu0 0
  %436 = vmatpush1.bf16.msra.mxu0 %v316
  %437 = vmatprep.subr.bf16.mxu0 0
  %438 = vmatpush1.bf16.msra.mxu0 %v317
  %439 = vmatprep.mubr.bf16.mxu0 %v137
  %440 = vmatmul.mubr.bf16.gmra.mrb[0].mxu0 %v136
  %v441 = vpop.f32.mrb[0].mxu0
  %v442 = vadd.f32 %v385, %v441
  %v443 = vpop.f32.mrb[0].mxu0
  %v444 = vpop.f32.mrb[0].mxu0
  %v445 = vadd.f32 %v388, %v444
  %v446 = vpop.f32.mrb[0].mxu0
  %447 = vmatprep.mubr.bf16.mxu0 %v141
  %448 = vmatmul.mubr.bf16.gmra.mrb[0].mxu0 %v140
  %v449 = vpop.f32.mrb[0].mxu0
  %v450 = vadd.f32 %v393, %v449
  %v451 = vpop.f32.mrb[0].mxu0
  %v452 = vpop.f32.mrb[0].mxu0
  %v453 = vadd.f32 %v396, %v452
  %v454 = vpop.f32.mrb[0].mxu0
  %455 = vmatprep.mubr.bf16.mxu0 %v145
  %456 = vmatmul.mubr.bf16.gmra.mrb[0].mxu0 %v144
  %v457 = vpop.f32.mrb[0].mxu0
  %v458 = vadd.f32 %v401, %v457
  %v459 = vpop.f32.mrb[0].mxu0
  %v460 = vpop.f32.mrb[0].mxu0
  %v461 = vadd.f32 %v404, %v460
  %v462 = vpop.f32.mrb[0].mxu0
  %463 = vdwg.mxu0
  %v464 = vmax.f32 %v442, 0.0
  %v465 = vmax.f32 %v445, 0.0
  %v466 = vmax.f32 %v450, 0.0
  %v467 = vmax.f32 %v453, 0.0
  %v468 = vmax.f32 %v458, 0.0
  %v469 = vmax.f32 %v461, 0.0
  %v470 = vpack.c.bf16 %v465, %v464
  %v471 = vpack.c.bf16 %v467, %v466
  %v472 = vpack.c.bf16 %v469, %v468
  %v476 = vunpack.c.l.b16 %v470
  %v477 = vunpack.c.h.b16 %v470
  %v478 = vunpack.c.l.b16 %v471
  %v479 = vunpack.c.h.b16 %v471
  %v480 = vunpack.c.l.b16 %v472
  %v481 = vunpack.c.h.b16 %v472
  %v482 = vpack.c.b16 %v476, %v476
  %v483 = vpack.c.b16 %v477, %v477
  %v484 = vpack.c.b16 %v478, %v478
  %v485 = vpack.c.b16 %v479, %v479
  %v486 = vpack.c.b16 %v480, %v480
  %v487 = vpack.c.b16 %v481, %v481
  %494 = vst [vmem:[%s3] sm:$0xf] %v482
  %495 = vst [vmem:[%s3 + $0x4] sm:$0xf] %v483
  %496 = vst [vmem:[%s3 + $0x8] sm:$0xf] %v484
  %497 = vst [vmem:[%s3 + $0xc] sm:$0xf] %v485
  %498 = vst [vmem:[%s3 + $0x10] sm:$0xf] %v486
  %499 = vst [vmem:[%s3 + $0x14] sm:$0xf] %v487
  // Predicated region
  $region14: #{_lambda_.6} parent=0 // pred_check
    _
  $region15: #{_lambda_.6} parent=0 // pred_check_branch
    %501 = sbr.rel (0) target = $region17
  $region16: #{_lambda_.6} parent=0 // pred_region
    _
  $region17: #{_lambda_.6} parent=0 // pred_fallthru
    _
  // Predicated region
  $region18: #{_lambda_.6} parent=0 // pred_check
    _
  $region19: #{_lambda_.6} parent=0 // pred_check_branch
    %503 = sbr.rel (0) target = $region21
  $region20: #{_lambda_.6} parent=0 // pred_region
    _
  $region21: #{_lambda_.6} parent=0 // pred_fallthru
    _

// kernel: _lambda_.7
$region0: #{_lambda_.7}
  #allocation0 [shape = 'u32[]', space=smem, size = 0x4, offset = 0x4, fixed_abs, tag = 'smem constant byte address 0x4 - core index']
  #allocation1 [shape = 'u32[144,128]{1,0:T(1,128)}', space=vmem, size = 0x12000, scoped, tag = 'internal scratch']
  %s0 = inlined_call_operand.vmem [shape: bf16[16,640], index: 0, kind: input, shape index: {}]
  %s1 = inlined_call_operand.vmem [shape: bf16[640,128], index: 1, kind: input, shape index: {}]
  %s2 = inlined_call_operand.vmem [shape: f32[1,128], index: 2, kind: input, shape index: {}]
  %s3 = inlined_call_operand.vmem [shape: bf16[16,128], index: 3, kind: output, shape index: {}]
  %s4 = sld [smem:[#allocation0]]
  $region22: #{_lambda_.7} parent=0
    _
  %s6 = ssub.s32 1, %s4
  %s7 = scalar_select 0, %s6, %s4
  // Predicated region
  $region2: #{_lambda_.7} parent=0 // pred_check
    _
  $region3: #{_lambda_.7} parent=0 // pred_check_branch
    %9 = sbr.rel (0) target = $region5
  $region4: #{_lambda_.7} parent=0 // pred_region
    _
  $region5: #{_lambda_.7} parent=0 // pred_fallthru
    _
  // Predicated region
  $region6: #{_lambda_.7} parent=0 // pred_check
    _
  $region7: #{_lambda_.7} parent=0 // pred_check_branch
    %11 = sbr.rel (0) target = $region9
  $region8: #{_lambda_.7} parent=0 // pred_region
    _
  $region9: #{_lambda_.7} parent=0 // pred_fallthru
    _
  // Predicated region
  $region10: #{_lambda_.7} parent=0 // pred_check
    _
  $region11: #{_lambda_.7} parent=0 // pred_check_branch
    %13 = sbr.rel (0) target = $region13
  $region12: #{_lambda_.7} parent=0 // pred_region
    _
  $region13: #{_lambda_.7} parent=0 // pred_fallthru
    _
  %v15 = vld [vmem:[%s0] sm:$0xff]
  %v16 = vld [vmem:[%s0 + $0x8] sm:$0xff]
  %v17 = vld [vmem:[%s0 + $0x10] sm:$0xf]
  %v18 = vld [vmem:[%s0 + $0x14] sm:$0xff]
  %v19 = vld [vmem:[%s0 + $0x1c] sm:$0xff]
  %v20 = vld [vmem:[%s0 + $0x24] sm:$0xf]
  %v21 = vld [vmem:[%s1] sm:$0xf]
  %v22 = vld [vmem:[%s1 + $0x4] sm:$0xf]
  %v23 = vld [vmem:[%s1 + $0x8] sm:$0xf]
  %v24 = vld [vmem:[%s1 + $0xc] sm:$0xf]
  %v25 = vld [vmem:[%s1 + $0x10] sm:$0xf]
  %v26 = vld [vmem:[%s1 + $0x14] sm:$0xf]
  %v27 = vld [vmem:[%s1 + $0x18] sm:$0xf]
  %v28 = vld [vmem:[%s1 + $0x1c] sm:$0xf]
  %v29 = vld [vmem:[%s1 + $0x20] sm:$0xf]
  %v30 = vld [vmem:[%s1 + $0x24] sm:$0xf]
  %v31 = vld [vmem:[%s1 + $0x28] sm:$0xf]
  %v32 = vld [vmem:[%s1 + $0x2c] sm:$0xf]
  %v33 = vld [vmem:[%s1 + $0x30] sm:$0xf]
  %v34 = vld [vmem:[%s1 + $0x34] sm:$0xf]
  %v35 = vld [vmem:[%s1 + $0x38] sm:$0xf]
  %v36 = vld [vmem:[%s1 + $0x3c] sm:$0xf]
  %v37 = vld [vmem:[%s1 + $0x40] sm:$0xf]
  %v38 = vld [vmem:[%s1 + $0x44] sm:$0xf]
  %v39 = vld [vmem:[%s1 + $0x48] sm:$0xf]
  %v40 = vld [vmem:[%s1 + $0x4c] sm:$0xf]
  %v41 = vld [vmem:[%s1 + $0x50] sm:$0xf]
  %v42 = vld [vmem:[%s1 + $0x54] sm:$0xf]
  %v43 = vld [vmem:[%s1 + $0x58] sm:$0xf]
  %v44 = vld [vmem:[%s1 + $0x5c] sm:$0xf]
  %v45 = vld [vmem:[%s1 + $0x60] sm:$0xf]
  %v46 = vld [vmem:[%s1 + $0x64] sm:$0xf]
  %v47 = vld [vmem:[%s1 + $0x68] sm:$0xf]
  %v48 = vld [vmem:[%s1 + $0x6c] sm:$0xf]
  %v49 = vld [vmem:[%s1 + $0x70] sm:$0xf]
  %v50 = vld [vmem:[%s1 + $0x74] sm:$0xf]
  %v51 = vld [vmem:[%s1 + $0x78] sm:$0xf]
  %v52 = vld [vmem:[%s1 + $0x7c] sm:$0xf]
  %v53 = vld [vmem:[%s1 + $0x80] sm:$0xf]
  %v54 = vld [vmem:[%s1 + $0x84] sm:$0xf]
  %v55 = vld [vmem:[%s1 + $0x88] sm:$0xf]
  %v56 = vld [vmem:[%s1 + $0x8c] sm:$0xf]
  %v57 = vld [vmem:[%s1 + $0x90] sm:$0xf]
  %v58 = vld [vmem:[%s1 + $0x94] sm:$0xf]
  %v59 = vld [vmem:[%s1 + $0x98] sm:$0xf]
  %v60 = vld [vmem:[%s1 + $0x9c] sm:$0xf]
  %v61 = vld [vmem:[%s1 + $0xa0] sm:$0xf]
  %v62 = vld [vmem:[%s1 + $0xa4] sm:$0xf]
  %v63 = vld [vmem:[%s1 + $0xa8] sm:$0xf]
  %v64 = vld [vmem:[%s1 + $0xac] sm:$0xf]
  %v65 = vld [vmem:[%s1 + $0xb0] sm:$0xf]
  %v66 = vld [vmem:[%s1 + $0xb4] sm:$0xf]
  %v67 = vld [vmem:[%s1 + $0xb8] sm:$0xf]
  %v68 = vld [vmem:[%s1 + $0xbc] sm:$0xf]
  %v69 = vld [vmem:[%s1 + $0xc0] sm:$0xf]
  %v70 = vld [vmem:[%s1 + $0xc4] sm:$0xf]
  %v71 = vld [vmem:[%s1 + $0xc8] sm:$0xf]
  %v72 = vld [vmem:[%s1 + $0xcc] sm:$0xf]
  %v73 = vld [vmem:[%s1 + $0xd0] sm:$0xf]
  %v74 = vld [vmem:[%s1 + $0xd4] sm:$0xf]
  %v75 = vld [vmem:[%s1 + $0xd8] sm:$0xf]
  %v76 = vld [vmem:[%s1 + $0xdc] sm:$0xf]
  %v77 = vld [vmem:[%s1 + $0xe0] sm:$0xf]
  %v78 = vld [vmem:[%s1 + $0xe4] sm:$0xf]
  %v79 = vld [vmem:[%s1 + $0xe8] sm:$0xf]
  %v80 = vld [vmem:[%s1 + $0xec] sm:$0xf]
  %v81 = vld [vmem:[%s1 + $0xf0] sm:$0xf]
  %v82 = vld [vmem:[%s1 + $0xf4] sm:$0xf]
  %v83 = vld [vmem:[%s1 + $0xf8] sm:$0xf]
  %v84 = vld [vmem:[%s1 + $0xfc] sm:$0xf]
  %v85 = vld [vmem:[%s1 + $0x100] sm:$0xf]
  %v86 = vld [vmem:[%s1 + $0x104] sm:$0xf]
  %v87 = vld [vmem:[%s1 + $0x108] sm:$0xf]
  %v88 = vld [vmem:[%s1 + $0x10c] sm:$0xf]
  %v89 = vld [vmem:[%s1 + $0x110] sm:$0xf]
  %v90 = vld [vmem:[%s1 + $0x114] sm:$0xf]
  %v91 = vld [vmem:[%s1 + $0x118] sm:$0xf]
  %v92 = vld [vmem:[%s1 + $0x11c] sm:$0xf]
  %v93 = vld [vmem:[%s1 + $0x120] sm:$0xf]
  %v94 = vld [vmem:[%s1 + $0x124] sm:$0xf]
  %v95 = vld [vmem:[%s1 + $0x128] sm:$0xf]
  %v96 = vld [vmem:[%s1 + $0x12c] sm:$0xf]
  %v97 = vld [vmem:[%s1 + $0x130] sm:$0xf]
  %v98 = vld [vmem:[%s1 + $0x134] sm:$0xf]
  %v99 = vld [vmem:[%s1 + $0x138] sm:$0xf]
  %v100 = vld [vmem:[%s1 + $0x13c] sm:$0xf]
  %v101 = vld [vmem:[%s2] sm:$0x1]
  %v103 = vlaneseq
  %v104 = vshrl.u32 %v103, 7
  %v105 = vsub.s32 0, %v104
  %v106 = vrot.slane %v101, %v105
  %v114 = vunpack.c.l.b16 %v15
  %v115 = vunpack.c.h.b16 %v15
  %v116 = vunpack.c.l.b16 %v16
  %v117 = vunpack.c.h.b16 %v16
  %v118 = vunpack.c.l.b16 %v17
  %v119 = vunpack.c.l.b16 %v18
  %v120 = vunpack.c.h.b16 %v18
  %v121 = vunpack.c.l.b16 %v19
  %v122 = vunpack.c.h.b16 %v19
  %v123 = vunpack.c.l.b16 %v20
  %v124 = vpack.c.b16 %v119, %v114
  %v125 = vpack.c.b16 %v120, %v115
  %v126 = vpack.c.b16 %v121, %v116
  %v127 = vpack.c.b16 %v122, %v117
  %v128 = vpack.c.b16 %v123, %v118
  %v214 = vunpack.c.l.b16 %v21
  %v215 = vunpack.c.l.b16 %v22
  %v216 = vunpack.c.l.b16 %v23
  %v217 = vunpack.c.l.b16 %v24
  %v218 = vunpack.c.l.b16 %v25
  %v219 = vunpack.c.l.b16 %v26
  %v220 = vunpack.c.l.b16 %v27
  %v221 = vunpack.c.l.b16 %v28
  %v222 = vunpack.c.l.b16 %v29
  %v223 = vunpack.c.l.b16 %v30
  %v224 = vunpack.c.l.b16 %v31
  %v225 = vunpack.c.l.b16 %v32
  %v226 = vunpack.c.l.b16 %v33
  %v227 = vunpack.c.l.b16 %v34
  %v228 = vunpack.c.l.b16 %v35
  %v229 = vunpack.c.l.b16 %v36
  %v230 = vunpack.c.l.b16 %v37
  %v231 = vunpack.c.l.b16 %v38
  %v232 = vunpack.c.l.b16 %v39
  %v233 = vunpack.c.l.b16 %v40
  %v234 = vunpack.c.l.b16 %v41
  %v235 = vunpack.c.l.b16 %v42
  %v236 = vunpack.c.l.b16 %v43
  %v237 = vunpack.c.l.b16 %v44
  %v238 = vunpack.c.l.b16 %v45
  %v239 = vunpack.c.l.b16 %v46
  %v240 = vunpack.c.l.b16 %v47
  %v241 = vunpack.c.l.b16 %v48
  %v242 = vunpack.c.l.b16 %v49
  %v243 = vunpack.c.l.b16 %v50
  %v244 = vunpack.c.l.b16 %v51
  %v245 = vunpack.c.l.b16 %v52
  %v246 = vunpack.c.l.b16 %v53
  %v247 = vunpack.c.l.b16 %v54
  %v248 = vunpack.c.l.b16 %v55
  %v249 = vunpack.c.l.b16 %v56
  %v250 = vunpack.c.l.b16 %v57
  %v251 = vunpack.c.l.b16 %v58
  %v252 = vunpack.c.l.b16 %v59
  %v253 = vunpack.c.l.b16 %v60
  %v254 = vunpack.c.l.b16 %v61
  %v255 = vunpack.c.l.b16 %v62
  %v256 = vunpack.c.l.b16 %v63
  %v257 = vunpack.c.l.b16 %v64
  %v258 = vunpack.c.l.b16 %v65
  %v259 = vunpack.c.l.b16 %v66
  %v260 = vunpack.c.l.b16 %v67
  %v261 = vunpack.c.l.b16 %v68
  %v262 = vunpack.c.l.b16 %v69
  %v263 = vunpack.c.l.b16 %v70
  %v264 = vunpack.c.l.b16 %v71
  %v265 = vunpack.c.l.b16 %v72
  %v266 = vunpack.c.l.b16 %v73
  %v267 = vunpack.c.l.b16 %v74
  %v268 = vunpack.c.l.b16 %v75
  %v269 = vunpack.c.l.b16 %v76
  %v270 = vunpack.c.l.b16 %v77
  %v271 = vunpack.c.l.b16 %v78
  %v272 = vunpack.c.l.b16 %v79
  %v273 = vunpack.c.l.b16 %v80
  %v274 = vunpack.c.l.b16 %v81
  %v275 = vunpack.c.l.b16 %v82
  %v276 = vunpack.c.l.b16 %v83
  %v277 = vunpack.c.l.b16 %v84
  %v278 = vunpack.c.l.b16 %v85
  %v279 = vunpack.c.l.b16 %v86
  %v280 = vunpack.c.l.b16 %v87
  %v281 = vunpack.c.l.b16 %v88
  %v282 = vunpack.c.l.b16 %v89
  %v283 = vunpack.c.l.b16 %v90
  %v284 = vunpack.c.l.b16 %v91
  %v285 = vunpack.c.l.b16 %v92
  %v286 = vunpack.c.l.b16 %v93
  %v287 = vunpack.c.l.b16 %v94
  %v288 = vunpack.c.l.b16 %v95
  %v289 = vunpack.c.l.b16 %v96
  %v290 = vunpack.c.l.b16 %v97
  %v291 = vunpack.c.l.b16 %v98
  %v292 = vunpack.c.l.b16 %v99
  %v293 = vunpack.c.l.b16 %v100
  %v294 = vpack.c.b16 %v215, %v214
  %v295 = vpack.c.b16 %v217, %v216
  %v296 = vpack.c.b16 %v219, %v218
  %v297 = vpack.c.b16 %v221, %v220
  %v298 = vpack.c.b16 %v223, %v222
  %v299 = vpack.c.b16 %v225, %v224
  %v300 = vpack.c.b16 %v227, %v226
  %v301 = vpack.c.b16 %v229, %v228
  %v302 = vpack.c.b16 %v231, %v230
  %v303 = vpack.c.b16 %v233, %v232
  %v304 = vpack.c.b16 %v235, %v234
  %v305 = vpack.c.b16 %v237, %v236
  %v306 = vpack.c.b16 %v239, %v238
  %v307 = vpack.c.b16 %v241, %v240
  %v308 = vpack.c.b16 %v243, %v242
  %v309 = vpack.c.b16 %v245, %v244
  %v310 = vpack.c.b16 %v247, %v246
  %v311 = vpack.c.b16 %v249, %v248
  %v312 = vpack.c.b16 %v251, %v250
  %v313 = vpack.c.b16 %v253, %v252
  %v314 = vpack.c.b16 %v255, %v254
  %v315 = vpack.c.b16 %v257, %v256
  %v316 = vpack.c.b16 %v259, %v258
  %v317 = vpack.c.b16 %v261, %v260
  %v318 = vpack.c.b16 %v263, %v262
  %v319 = vpack.c.b16 %v265, %v264
  %v320 = vpack.c.b16 %v267, %v266
  %v321 = vpack.c.b16 %v269, %v268
  %v322 = vpack.c.b16 %v271, %v270
  %v323 = vpack.c.b16 %v273, %v272
  %v324 = vpack.c.b16 %v275, %v274
  %v325 = vpack.c.b16 %v277, %v276
  %v326 = vpack.c.b16 %v279, %v278
  %v327 = vpack.c.b16 %v281, %v280
  %v328 = vpack.c.b16 %v283, %v282
  %v329 = vpack.c.b16 %v285, %v284
  %v330 = vpack.c.b16 %v287, %v286
  %v331 = vpack.c.b16 %v289, %v288
  %v332 = vpack.c.b16 %v291, %v290
  %v333 = vpack.c.b16 %v293, %v292
  %374 = vmatprep.subr.bf16.mxu0 0
  %375 = vmatpush1.bf16.msra.mxu0 %v294
  %376 = vmatprep.subr.bf16.mxu0 0
  %377 = vmatpush1.bf16.msra.mxu0 %v295
  %378 = vmatprep.subr.bf16.mxu0 0
  %379 = vmatpush1.bf16.msra.mxu0 %v296
  %380 = vmatprep.subr.bf16.mxu0 0
  %381 = vmatpush1.bf16.msra.mxu0 %v297
  %382 = vmatprep.subr.bf16.mxu0 0
  %383 = vmatpush1.bf16.msra.mxu0 %v298
  %384 = vmatprep.subr.bf16.mxu0 0
  %385 = vmatpush1.bf16.msra.mxu0 %v299
  %386 = vmatprep.subr.bf16.mxu0 0
  %387 = vmatpush1.bf16.msra.mxu0 %v300
  %388 = vmatprep.subr.bf16.mxu0 0
  %389 = vmatpush1.bf16.msra.mxu0 %v301
  %390 = vmatprep.subr.bf16.mxu0 0
  %391 = vmatpush1.bf16.msra.mxu0 %v302
  %392 = vmatprep.subr.bf16.mxu0 0
  %393 = vmatpush1.bf16.msra.mxu0 %v303
  %394 = vmatprep.subr.bf16.mxu0 0
  %395 = vmatpush1.bf16.msra.mxu0 %v304
  %396 = vmatprep.subr.bf16.mxu0 0
  %397 = vmatpush1.bf16.msra.mxu0 %v305
  %398 = vmatprep.subr.bf16.mxu0 0
  %399 = vmatpush1.bf16.msra.mxu0 %v306
  %400 = vmatprep.subr.bf16.mxu0 0
  %401 = vmatpush1.bf16.msra.mxu0 %v307
  %402 = vmatprep.subr.bf16.mxu0 0
  %403 = vmatpush1.bf16.msra.mxu0 %v308
  %404 = vmatprep.subr.bf16.mxu0 0
  %405 = vmatpush1.bf16.msra.mxu0 %v309
  %406 = vmatprep.mubr.bf16.mxu0 %v125
  %407 = vmatmul.mubr.bf16.gmra.mrb[0].mxu0 %v124
  %v408 = vpop.f32.mrb[0].mxu0
  %v409 = vadd.f32 %v106, %v408
  %v410 = vpop.f32.mrb[0].mxu0
  %v411 = vpop.f32.mrb[0].mxu0
  %v412 = vadd.f32 %v106, %v411
  %v413 = vpop.f32.mrb[0].mxu0
  %414 = vdwg.mxu0
  %415 = vmatprep.subr.bf16.mxu0 0
  %416 = vmatpush1.bf16.msra.mxu0 %v310
  %417 = vmatprep.subr.bf16.mxu0 0
  %418 = vmatpush1.bf16.msra.mxu0 %v311
  %419 = vmatprep.subr.bf16.mxu0 0
  %420 = vmatpush1.bf16.msra.mxu0 %v312
  %421 = vmatprep.subr.bf16.mxu0 0
  %422 = vmatpush1.bf16.msra.mxu0 %v313
  %423 = vmatprep.subr.bf16.mxu0 0
  %424 = vmatpush1.bf16.msra.mxu0 %v314
  %425 = vmatprep.subr.bf16.mxu0 0
  %426 = vmatpush1.bf16.msra.mxu0 %v315
  %427 = vmatprep.subr.bf16.mxu0 0
  %428 = vmatpush1.bf16.msra.mxu0 %v316
  %429 = vmatprep.subr.bf16.mxu0 0
  %430 = vmatpush1.bf16.msra.mxu0 %v317
  %431 = vmatprep.subr.bf16.mxu0 0
  %432 = vmatpush1.bf16.msra.mxu0 %v318
  %433 = vmatprep.subr.bf16.mxu0 0
  %434 = vmatpush1.bf16.msra.mxu0 %v319
  %435 = vmatprep.subr.bf16.mxu0 0
  %436 = vmatpush1.bf16.msra.mxu0 %v320
  %437 = vmatprep.subr.bf16.mxu0 0
  %438 = vmatpush1.bf16.msra.mxu0 %v321
  %439 = vmatprep.subr.bf16.mxu0 0
  %440 = vmatpush1.bf16.msra.mxu0 %v322
  %441 = vmatprep.subr.bf16.mxu0 0
  %442 = vmatpush1.bf16.msra.mxu0 %v323
  %443 = vmatprep.subr.bf16.mxu0 0
  %444 = vmatpush1.bf16.msra.mxu0 %v324
  %445 = vmatprep.subr.bf16.mxu0 0
  %446 = vmatpush1.bf16.msra.mxu0 %v325
  %447 = vmatprep.mubr.bf16.mxu0 %v127
  %448 = vmatmul.mubr.bf16.gmra.mrb[0].mxu0 %v126
  %v449 = vpop.f32.mrb[0].mxu0
  %v450 = vadd.f32 %v409, %v449
  %v451 = vpop.f32.mrb[0].mxu0
  %v452 = vpop.f32.mrb[0].mxu0
  %v453 = vadd.f32 %v412, %v452
  %v454 = vpop.f32.mrb[0].mxu0
  %455 = vdwg.mxu0
  %456 = vmatprep.subr.bf16.mxu0 0
  %457 = vmatpush1.bf16.msra.mxu0 %v326
  %458 = vmatprep.subr.bf16.mxu0 0
  %459 = vmatpush1.bf16.msra.mxu0 %v327
  %460 = vmatprep.subr.bf16.mxu0 0
  %461 = vmatpush1.bf16.msra.mxu0 %v328
  %462 = vmatprep.subr.bf16.mxu0 0
  %463 = vmatpush1.bf16.msra.mxu0 %v329
  %464 = vmatprep.subr.bf16.mxu0 0
  %465 = vmatpush1.bf16.msra.mxu0 %v330
  %466 = vmatprep.subr.bf16.mxu0 0
  %467 = vmatpush1.bf16.msra.mxu0 %v331
  %468 = vmatprep.subr.bf16.mxu0 0
  %469 = vmatpush1.bf16.msra.mxu0 %v332
  %470 = vmatprep.subr.bf16.mxu0 0
  %471 = vmatpush1.bf16.msra.mxu0 %v333
  %472 = vmatprep.subr.bf16.mxu0 0
  %473 = vmatpush1.bf16.msra.mxu0 0
  %474 = vmatprep.subr.bf16.mxu0 0
  %475 = vmatpush1.bf16.msra.mxu0 0
  %476 = vmatprep.subr.bf16.mxu0 0
  %477 = vmatpush1.bf16.msra.mxu0 0
  %478 = vmatprep.subr.bf16.mxu0 0
  %479 = vmatpush1.bf16.msra.mxu0 0
  %480 = vmatprep.subr.bf16.mxu0 0
  %481 = vmatpush1.bf16.msra.mxu0 0
  %482 = vmatprep.subr.bf16.mxu0 0
  %483 = vmatpush1.bf16.msra.mxu0 0
  %484 = vmatprep.subr.bf16.mxu0 0
  %485 = vmatpush1.bf16.msra.mxu0 0
  %486 = vmatprep.subr.bf16.mxu0 0
  %487 = vmatpush1.bf16.msra.mxu0 0
  %488 = vmatprep.mubr.bf16.mxu0 0
  %489 = vmatmul.mubr.bf16.gmra.mrb[0].mxu0 %v128
  %v490 = vpop.f32.mrb[0].mxu0
  %v491 = vadd.f32 %v450, %v490
  %v492 = vpop.f32.mrb[0].mxu0
  %v493 = vpop.f32.mrb[0].mxu0
  %v494 = vadd.f32 %v453, %v493
  %v495 = vpop.f32.mrb[0].mxu0
  %496 = vdwg.mxu0
  %v497 = vmax.f32 %v491, 0.0
  %v498 = vmax.f32 %v494, 0.0
  %v499 = vpack.c.bf16 %v498, %v497
  %v501 = vunpack.c.l.b16 %v499
  %v502 = vunpack.c.h.b16 %v499
  %v503 = vpack.c.b16 %v501, %v501
  %v504 = vpack.c.b16 %v502, %v502
  %507 = vst [vmem:[%s3] sm:$0xf] %v503
  %508 = vst [vmem:[%s3 + $0x4] sm:$0xf] %v504
  // Predicated region
  $region14: #{_lambda_.7} parent=0 // pred_check
    _
  $region15: #{_lambda_.7} parent=0 // pred_check_branch
    %510 = sbr.rel (0) target = $region17
  $region16: #{_lambda_.7} parent=0 // pred_region
    _
  $region17: #{_lambda_.7} parent=0 // pred_fallthru
    _
  // Predicated region
  $region18: #{_lambda_.7} parent=0 // pred_check
    _
  $region19: #{_lambda_.7} parent=0 // pred_check_branch
    %512 = sbr.rel (0) target = $region21
  $region20: #{_lambda_.7} parent=0 // pred_region
    _
  $region21: #{_lambda_.7} parent=0 // pred_fallthru
    _

// kernel: _lambda_.8
$region0: #{_lambda_.8}
  #allocation0 [shape = 'u32[]', space=smem, size = 0x4, offset = 0x4, fixed_abs, tag = 'smem constant byte address 0x4 - core index']
  #allocation1 [shape = 'u32[144,128]{1,0:T(1,128)}', space=vmem, size = 0x12000, scoped, tag = 'internal scratch']
  %s0 = inlined_call_operand.vmem [shape: bf16[16,128], index: 0, kind: input, shape index: {}]
  %s1 = inlined_call_operand.vmem [shape: bf16[128,256], index: 1, kind: input, shape index: {}]
  %s2 = inlined_call_operand.vmem [shape: f32[1,256], index: 2, kind: input, shape index: {}]
  %s3 = inlined_call_operand.vmem [shape: f32[16,256], index: 3, kind: output, shape index: {}]
  %s4 = sld [smem:[#allocation0]]
  $region22: #{_lambda_.8} parent=0
    _
  %s6 = ssub.s32 1, %s4
  %s7 = scalar_select 0, %s6, %s4
  // Predicated region
  $region2: #{_lambda_.8} parent=0 // pred_check
    _
  $region3: #{_lambda_.8} parent=0 // pred_check_branch
    %9 = sbr.rel (0) target = $region5
  $region4: #{_lambda_.8} parent=0 // pred_region
    _
  $region5: #{_lambda_.8} parent=0 // pred_fallthru
    _
  // Predicated region
  $region6: #{_lambda_.8} parent=0 // pred_check
    _
  $region7: #{_lambda_.8} parent=0 // pred_check_branch
    %11 = sbr.rel (0) target = $region9
  $region8: #{_lambda_.8} parent=0 // pred_region
    _
  $region9: #{_lambda_.8} parent=0 // pred_fallthru
    _
  // Predicated region
  $region10: #{_lambda_.8} parent=0 // pred_check
    _
  $region11: #{_lambda_.8} parent=0 // pred_check_branch
    %13 = sbr.rel (0) target = $region13
  $region12: #{_lambda_.8} parent=0 // pred_region
    _
  $region13: #{_lambda_.8} parent=0 // pred_fallthru
    _
  %v15 = vld [vmem:[%s0] sm:$0xf]
  %v16 = vld [vmem:[%s0 + $0x4] sm:$0xf]
  %v17 = vld [vmem:[%s1] sm:$0xff]
  %v18 = vld [vmem:[%s1 + $0x8] sm:$0xff]
  %v19 = vld [vmem:[%s1 + $0x10] sm:$0xff]
  %v20 = vld [vmem:[%s1 + $0x18] sm:$0xff]
  %v21 = vld [vmem:[%s1 + $0x20] sm:$0xff]
  %v22 = vld [vmem:[%s1 + $0x28] sm:$0xff]
  %v23 = vld [vmem:[%s1 + $0x30] sm:$0xff]
  %v24 = vld [vmem:[%s1 + $0x38] sm:$0xff]
  %v25 = vld [vmem:[%s1 + $0x40] sm:$0xff]
  %v26 = vld [vmem:[%s1 + $0x48] sm:$0xff]
  %v27 = vld [vmem:[%s1 + $0x50] sm:$0xff]
  %v28 = vld [vmem:[%s1 + $0x58] sm:$0xff]
  %v29 = vld [vmem:[%s1 + $0x60] sm:$0xff]
  %v30 = vld [vmem:[%s1 + $0x68] sm:$0xff]
  %v31 = vld [vmem:[%s1 + $0x70] sm:$0xff]
  %v32 = vld [vmem:[%s1 + $0x78] sm:$0xff]
  %v33 = vld [vmem:[%s2] sm:$0x3]
  %v35 = vlaneseq
  %v36 = vshrl.u32 %v35, 7
  %v37 = vsub.s32 0, %v36
  %v38 = vrot.slane %v33, %v37
  %v39 = vlaneseq
  %v40 = vshrl.u32 %v39, 7
  %v41 = vsub.s32 1, %v40
  %v42 = vrot.slane %v33, %v41
  %v47 = vunpack.c.l.b16 %v15
  %v48 = vunpack.c.l.b16 %v16
  %v49 = vpack.c.b16 %v48, %v47
  %v67 = vunpack.c.l.b16 %v17
  %v68 = vunpack.c.h.b16 %v17
  %v69 = vunpack.c.l.b16 %v18
  %v70 = vunpack.c.h.b16 %v18
  %v71 = vunpack.c.l.b16 %v19
  %v72 = vunpack.c.h.b16 %v19
  %v73 = vunpack.c.l.b16 %v20
  %v74 = vunpack.c.h.b16 %v20
  %v75 = vunpack.c.l.b16 %v21
  %v76 = vunpack.c.h.b16 %v21
  %v77 = vunpack.c.l.b16 %v22
  %v78 = vunpack.c.h.b16 %v22
  %v79 = vunpack.c.l.b16 %v23
  %v80 = vunpack.c.h.b16 %v23
  %v81 = vunpack.c.l.b16 %v24
  %v82 = vunpack.c.h.b16 %v24
  %v83 = vunpack.c.l.b16 %v25
  %v84 = vunpack.c.h.b16 %v25
  %v85 = vunpack.c.l.b16 %v26
  %v86 = vunpack.c.h.b16 %v26
  %v87 = vunpack.c.l.b16 %v27
  %v88 = vunpack.c.h.b16 %v27
  %v89 = vunpack.c.l.b16 %v28
  %v90 = vunpack.c.h.b16 %v28
  %v91 = vunpack.c.l.b16 %v29
  %v92 = vunpack.c.h.b16 %v29
  %v93 = vunpack.c.l.b16 %v30
  %v94 = vunpack.c.h.b16 %v30
  %v95 = vunpack.c.l.b16 %v31
  %v96 = vunpack.c.h.b16 %v31
  %v97 = vunpack.c.l.b16 %v32
  %v98 = vunpack.c.h.b16 %v32
  %v99 = vpack.c.b16 %v69, %v67
  %v100 = vpack.c.b16 %v70, %v68
  %v101 = vpack.c.b16 %v73, %v71
  %v102 = vpack.c.b16 %v74, %v72
  %v103 = vpack.c.b16 %v77, %v75
  %v104 = vpack.c.b16 %v78, %v76
  %v105 = vpack.c.b16 %v81, %v79
  %v106 = vpack.c.b16 %v82, %v80
  %v107 = vpack.c.b16 %v85, %v83
  %v108 = vpack.c.b16 %v86, %v84
  %v109 = vpack.c.b16 %v89, %v87
  %v110 = vpack.c.b16 %v90, %v88
  %v111 = vpack.c.b16 %v93, %v91
  %v112 = vpack.c.b16 %v94, %v92
  %v113 = vpack.c.b16 %v97, %v95
  %v114 = vpack.c.b16 %v98, %v96
  %131 = vmatprep.subr.bf16.mxu0 %v100
  %132 = vmatpush1.bf16.msra.mxu0 %v99
  %133 = vmatprep.subr.bf16.mxu0 %v102
  %134 = vmatpush1.bf16.msra.mxu0 %v101
  %135 = vmatprep.subr.bf16.mxu0 %v104
  %136 = vmatpush1.bf16.msra.mxu0 %v103
  %137 = vmatprep.subr.bf16.mxu0 %v106
  %138 = vmatpush1.bf16.msra.mxu0 %v105
  %139 = vmatprep.subr.bf16.mxu0 %v108
  %140 = vmatpush1.bf16.msra.mxu0 %v107
  %141 = vmatprep.subr.bf16.mxu0 %v110
  %142 = vmatpush1.bf16.msra.mxu0 %v109
  %143 = vmatprep.subr.bf16.mxu0 %v112
  %144 = vmatpush1.bf16.msra.mxu0 %v111
  %145 = vmatprep.subr.bf16.mxu0 %v114
  %146 = vmatpush1.bf16.msra.mxu0 %v113
  %147 = vmatprep.subr.bf16.mxu0 0
  %148 = vmatpush1.bf16.msra.mxu0 0
  %149 = vmatprep.subr.bf16.mxu0 0
  %150 = vmatpush1.bf16.msra.mxu0 0
  %151 = vmatprep.subr.bf16.mxu0 0
  %152 = vmatpush1.bf16.msra.mxu0 0
  %153 = vmatprep.subr.bf16.mxu0 0
  %154 = vmatpush1.bf16.msra.mxu0 0
  %155 = vmatprep.subr.bf16.mxu0 0
  %156 = vmatpush1.bf16.msra.mxu0 0
  %157 = vmatprep.subr.bf16.mxu0 0
  %158 = vmatpush1.bf16.msra.mxu0 0
  %159 = vmatprep.subr.bf16.mxu0 0
  %160 = vmatpush1.bf16.msra.mxu0 0
  %161 = vmatprep.subr.bf16.mxu0 0
  %162 = vmatpush1.bf16.msra.mxu0 0
  %163 = vmatprep.mubr.bf16.mxu0 0
  %164 = vmatmul.mubr.bf16.gmra.mrb[0].mxu0 %v49
  %v165 = vpop.f32.mrb[0].mxu0
  %v166 = vadd.f32 %v38, %v165
  %v167 = vpop.f32.mrb[0].mxu0
  %v168 = vadd.f32 %v42, %v167
  %v169 = vpop.f32.mrb[0].mxu0
  %v170 = vadd.f32 %v38, %v169
  %v171 = vpop.f32.mrb[0].mxu0
  %v172 = vadd.f32 %v42, %v171
  %173 = vdwg.mxu0
  %v174 = vmax.f32 %v166, 0.0
  %v175 = vmax.f32 %v168, 0.0
  %v176 = vmax.f32 %v170, 0.0
  %v177 = vmax.f32 %v172, 0.0
  %178 = vst [vmem:[%s3] sm:$0xff] %v174
  %179 = vst [vmem:[%s3 + $0x8] sm:$0xff] %v175
  %180 = vst [vmem:[%s3 + $0x10] sm:$0xff] %v176
  %181 = vst [vmem:[%s3 + $0x18] sm:$0xff] %v177
  // Predicated region
  $region14: #{_lambda_.8} parent=0 // pred_check
    _
  $region15: #{_lambda_.8} parent=0 // pred_check_branch
    %183 = sbr.rel (0) target = $region17
  $region16: #{_lambda_.8} parent=0 // pred_region
    _
  $region17: #{_lambda_.8} parent=0 // pred_fallthru
    _
  // Predicated region
  $region18: #{_lambda_.8} parent=0 // pred_check
    _
  $region19: #{_lambda_.8} parent=0 // pred_check_branch
    %185 = sbr.rel (0) target = $region21
  $region20: #{_lambda_.8} parent=0 // pred_region
    _
  $region21: #{_lambda_.8} parent=0 // pred_fallthru
    _

// kernel: _lambda_.9
$region0: #{_lambda_.9}
  #allocation0 [shape = 'u32[]', space=smem, size = 0x4, offset = 0x4, fixed_abs, tag = 'smem constant byte address 0x4 - core index']
  #allocation1 [shape = 'u32[144,128]{1,0:T(1,128)}', space=vmem, size = 0x12000, scoped, tag = 'internal scratch']
  %s0 = inlined_call_operand.vmem [shape: bf16[16,256], index: 0, kind: input, shape index: {}]
  %s1 = inlined_call_operand.vmem [shape: bf16[16,256], index: 1, kind: input, shape index: {}]
  %s2 = inlined_call_operand.vmem [shape: bf16[16,128], index: 2, kind: input, shape index: {}]
  %s3 = inlined_call_operand.vmem [shape: bf16[256,256], index: 3, kind: input, shape index: {}]
  %s4 = inlined_call_operand.vmem [shape: bf16[128,256], index: 4, kind: input, shape index: {}]
  %s5 = inlined_call_operand.vmem [shape: f32[1,256], index: 5, kind: input, shape index: {}]
  %s6 = inlined_call_operand.vmem [shape: bf16[256,256], index: 6, kind: input, shape index: {}]
  %s7 = inlined_call_operand.vmem [shape: f32[1,256], index: 7, kind: input, shape index: {}]
  %s8 = inlined_call_operand.vmem [shape: bf16[256,256], index: 8, kind: input, shape index: {}]
  %s9 = inlined_call_operand.vmem [shape: bf16[256,256], index: 9, kind: input, shape index: {}]
  %s10 = inlined_call_operand.vmem [shape: f32[1,256], index: 10, kind: input, shape index: {}]
  %s11 = inlined_call_operand.vmem [shape: bf16[256,128], index: 11, kind: input, shape index: {}]
  %s12 = inlined_call_operand.vmem [shape: f32[1,128], index: 12, kind: input, shape index: {}]
  %s13 = inlined_call_operand.vmem [shape: f32[16,256], index: 13, kind: output, shape index: {0}]
  %s14 = inlined_call_operand.vmem [shape: f32[16,128], index: 14, kind: output, shape index: {1}]
  %15 = xla_tuple %s13, %s14
  %s16 = sld [smem:[#allocation0]]
  $region70: #{_lambda_.9} parent=0
    _
  %s18 = ssub.s32 1, %s16
  %s19 = scalar_select 0, %s18, %s16
  // Predicated region
  $region2: #{_lambda_.9} parent=0 // pred_check
    _
  $region3: #{_lambda_.9} parent=0 // pred_check_branch
    %21 = sbr.rel (0) target = $region5
  $region4: #{_lambda_.9} parent=0 // pred_region
    _
  $region5: #{_lambda_.9} parent=0 // pred_fallthru
    _
  // Predicated region
  $region6: #{_lambda_.9} parent=0 // pred_check
    _
  $region7: #{_lambda_.9} parent=0 // pred_check_branch
    %23 = sbr.rel (0) target = $region9
  $region8: #{_lambda_.9} parent=0 // pred_region
    _
  $region9: #{_lambda_.9} parent=0 // pred_fallthru
    _
  // Predicated region
  $region10: #{_lambda_.9} parent=0 // pred_check
    _
  $region11: #{_lambda_.9} parent=0 // pred_check_branch
    %25 = sbr.rel (0) target = $region13
  $region12: #{_lambda_.9} parent=0 // pred_region
    _
  $region13: #{_lambda_.9} parent=0 // pred_fallthru
    _
  // Predicated region
  $region14: #{_lambda_.9} parent=0 // pred_check
    _
  $region15: #{_lambda_.9} parent=0 // pred_check_branch
    %27 = sbr.rel (0) target = $region17
  $region16: #{_lambda_.9} parent=0 // pred_region
    _
  $region17: #{_lambda_.9} parent=0 // pred_fallthru
    _
  // Predicated region
  $region18: #{_lambda_.9} parent=0 // pred_check
    _
  $region19: #{_lambda_.9} parent=0 // pred_check_branch
    %29 = sbr.rel (0) target = $region21
  $region20: #{_lambda_.9} parent=0 // pred_region
    _
  $region21: #{_lambda_.9} parent=0 // pred_fallthru
    _
  // Predicated region
  $region22: #{_lambda_.9} parent=0 // pred_check
    _
  $region23: #{_lambda_.9} parent=0 // pred_check_branch
    %31 = sbr.rel (0) target = $region25
  $region24: #{_lambda_.9} parent=0 // pred_region
    _
  $region25: #{_lambda_.9} parent=0 // pred_fallthru
    _
  // Predicated region
  $region26: #{_lambda_.9} parent=0 // pred_check
    _
  $region27: #{_lambda_.9} parent=0 // pred_check_branch
    %33 = sbr.rel (0) target = $region29
  $region28: #{_lambda_.9} parent=0 // pred_region
    _
  $region29: #{_lambda_.9} parent=0 // pred_fallthru
    _
  // Predicated region
  $region30: #{_lambda_.9} parent=0 // pred_check
    _
  $region31: #{_lambda_.9} parent=0 // pred_check_branch
    %35 = sbr.rel (0) target = $region33
  $region32: #{_lambda_.9} parent=0 // pred_region
    _
  $region33: #{_lambda_.9} parent=0 // pred_fallthru
    _
  // Predicated region
  $region34: #{_lambda_.9} parent=0 // pred_check
    _
  $region35: #{_lambda_.9} parent=0 // pred_check_branch
    %37 = sbr.rel (0) target = $region37
  $region36: #{_lambda_.9} parent=0 // pred_region
    _
  $region37: #{_lambda_.9} parent=0 // pred_fallthru
    _
  // Predicated region
  $region38: #{_lambda_.9} parent=0 // pred_check
    _
  $region39: #{_lambda_.9} parent=0 // pred_check_branch
    %39 = sbr.rel (0) target = $region41
  $region40: #{_lambda_.9} parent=0 // pred_region
    _
  $region41: #{_lambda_.9} parent=0 // pred_fallthru
    _
  // Predicated region
  $region42: #{_lambda_.9} parent=0 // pred_check
    _
  $region43: #{_lambda_.9} parent=0 // pred_check_branch
    %41 = sbr.rel (0) target = $region45
  $region44: #{_lambda_.9} parent=0 // pred_region
    _
  $region45: #{_lambda_.9} parent=0 // pred_fallthru
    _
  // Predicated region
  $region46: #{_lambda_.9} parent=0 // pred_check
    _
  $region47: #{_lambda_.9} parent=0 // pred_check_branch
    %43 = sbr.rel (0) target = $region49
  $region48: #{_lambda_.9} parent=0 // pred_region
    _
  $region49: #{_lambda_.9} parent=0 // pred_fallthru
    _
  // Predicated region
  $region50: #{_lambda_.9} parent=0 // pred_check
    _
  $region51: #{_lambda_.9} parent=0 // pred_check_branch
    %45 = sbr.rel (0) target = $region53
  $region52: #{_lambda_.9} parent=0 // pred_region
    _
  $region53: #{_lambda_.9} parent=0 // pred_fallthru
    _
  %v47 = vld [vmem:[%s0] sm:$0xff]
  %v48 = vld [vmem:[%s0 + $0x8] sm:$0xff]
  %v49 = vld [vmem:[%s3] sm:$0xff]
  %v50 = vld [vmem:[%s3 + $0x8] sm:$0xff]
  %v51 = vld [vmem:[%s3 + $0x10] sm:$0xff]
  %v52 = vld [vmem:[%s3 + $0x18] sm:$0xff]
  %v53 = vld [vmem:[%s3 + $0x20] sm:$0xff]
  %v54 = vld [vmem:[%s3 + $0x28] sm:$0xff]
  %v55 = vld [vmem:[%s3 + $0x30] sm:$0xff]
  %v56 = vld [vmem:[%s3 + $0x38] sm:$0xff]
  %v57 = vld [vmem:[%s3 + $0x40] sm:$0xff]
  %v58 = vld [vmem:[%s3 + $0x48] sm:$0xff]
  %v59 = vld [vmem:[%s3 + $0x50] sm:$0xff]
  %v60 = vld [vmem:[%s3 + $0x58] sm:$0xff]
  %v61 = vld [vmem:[%s3 + $0x60] sm:$0xff]
  %v62 = vld [vmem:[%s3 + $0x68] sm:$0xff]
  %v63 = vld [vmem:[%s3 + $0x70] sm:$0xff]
  %v64 = vld [vmem:[%s3 + $0x78] sm:$0xff]
  %v65 = vld [vmem:[%s3 + $0x80] sm:$0xff]
  %v66 = vld [vmem:[%s3 + $0x88] sm:$0xff]
  %v67 = vld [vmem:[%s3 + $0x90] sm:$0xff]
  %v68 = vld [vmem:[%s3 + $0x98] sm:$0xff]
  %v69 = vld [vmem:[%s3 + $0xa0] sm:$0xff]
  %v70 = vld [vmem:[%s3 + $0xa8] sm:$0xff]
  %v71 = vld [vmem:[%s3 + $0xb0] sm:$0xff]
  %v72 = vld [vmem:[%s3 + $0xb8] sm:$0xff]
  %v73 = vld [vmem:[%s3 + $0xc0] sm:$0xff]
  %v74 = vld [vmem:[%s3 + $0xc8] sm:$0xff]
  %v75 = vld [vmem:[%s3 + $0xd0] sm:$0xff]
  %v76 = vld [vmem:[%s3 + $0xd8] sm:$0xff]
  %v77 = vld [vmem:[%s3 + $0xe0] sm:$0xff]
  %v78 = vld [vmem:[%s3 + $0xe8] sm:$0xff]
  %v79 = vld [vmem:[%s3 + $0xf0] sm:$0xff]
  %v80 = vld [vmem:[%s3 + $0xf8] sm:$0xff]
  %v81 = vld [vmem:[%s2] sm:$0xf]
  %v82 = vld [vmem:[%s2 + $0x4] sm:$0xf]
  %v83 = vld [vmem:[%s4] sm:$0xff]
  %v84 = vld [vmem:[%s4 + $0x8] sm:$0xff]
  %v85 = vld [vmem:[%s4 + $0x10] sm:$0xff]
  %v86 = vld [vmem:[%s4 + $0x18] sm:$0xff]
  %v87 = vld [vmem:[%s4 + $0x20] sm:$0xff]
  %v88 = vld [vmem:[%s4 + $0x28] sm:$0xff]
  %v89 = vld [vmem:[%s4 + $0x30] sm:$0xff]
  %v90 = vld [vmem:[%s4 + $0x38] sm:$0xff]
  %v91 = vld [vmem:[%s4 + $0x40] sm:$0xff]
  %v92 = vld [vmem:[%s4 + $0x48] sm:$0xff]
  %v93 = vld [vmem:[%s4 + $0x50] sm:$0xff]
  %v94 = vld [vmem:[%s4 + $0x58] sm:$0xff]
  %v95 = vld [vmem:[%s4 + $0x60] sm:$0xff]
  %v96 = vld [vmem:[%s4 + $0x68] sm:$0xff]
  %v97 = vld [vmem:[%s4 + $0x70] sm:$0xff]
  %v98 = vld [vmem:[%s4 + $0x78] sm:$0xff]
  %v101 = vunpack.c.l.b16 %v81
  %v102 = vunpack.c.l.b16 %v82
  %v103 = vpack.c.b16 %v102, %v101
  %v121 = vunpack.c.l.b16 %v83
  %v122 = vunpack.c.h.b16 %v83
  %v123 = vunpack.c.l.b16 %v84
  %v124 = vunpack.c.h.b16 %v84
  %v125 = vunpack.c.l.b16 %v85
  %v126 = vunpack.c.h.b16 %v85
  %v127 = vunpack.c.l.b16 %v86
  %v128 = vunpack.c.h.b16 %v86
  %v129 = vunpack.c.l.b16 %v87
  %v130 = vunpack.c.h.b16 %v87
  %v131 = vunpack.c.l.b16 %v88
  %v132 = vunpack.c.h.b16 %v88
  %v133 = vunpack.c.l.b16 %v89
  %v134 = vunpack.c.h.b16 %v89
  %v135 = vunpack.c.l.b16 %v90
  %v136 = vunpack.c.h.b16 %v90
  %v137 = vunpack.c.l.b16 %v91
  %v138 = vunpack.c.h.b16 %v91
  %v139 = vunpack.c.l.b16 %v92
  %v140 = vunpack.c.h.b16 %v92
  %v141 = vunpack.c.l.b16 %v93
  %v142 = vunpack.c.h.b16 %v93
  %v143 = vunpack.c.l.b16 %v94
  %v144 = vunpack.c.h.b16 %v94
  %v145 = vunpack.c.l.b16 %v95
  %v146 = vunpack.c.h.b16 %v95
  %v147 = vunpack.c.l.b16 %v96
  %v148 = vunpack.c.h.b16 %v96
  %v149 = vunpack.c.l.b16 %v97
  %v150 = vunpack.c.h.b16 %v97
  %v151 = vunpack.c.l.b16 %v98
  %v152 = vunpack.c.h.b16 %v98
  %v153 = vpack.c.b16 %v123, %v121
  %v154 = vpack.c.b16 %v124, %v122
  %v155 = vpack.c.b16 %v127, %v125
  %v156 = vpack.c.b16 %v128, %v126
  %v157 = vpack.c.b16 %v131, %v129
  %v158 = vpack.c.b16 %v132, %v130
  %v159 = vpack.c.b16 %v135, %v133
  %v160 = vpack.c.b16 %v136, %v134
  %v161 = vpack.c.b16 %v139, %v137
  %v162 = vpack.c.b16 %v140, %v138
  %v163 = vpack.c.b16 %v143, %v141
  %v164 = vpack.c.b16 %v144, %v142
  %v165 = vpack.c.b16 %v147, %v145
  %v166 = vpack.c.b16 %v148, %v146
  %v167 = vpack.c.b16 %v151, %v149
  %v168 = vpack.c.b16 %v152, %v150
  %185 = vmatprep.subr.bf16.mxu0 %v154
  %186 = vmatpush1.bf16.msra.mxu0 %v153
  %187 = vmatprep.subr.bf16.mxu0 %v156
  %188 = vmatpush1.bf16.msra.mxu0 %v155
  %189 = vmatprep.subr.bf16.mxu0 %v158
  %190 = vmatpush1.bf16.msra.mxu0 %v157
  %191 = vmatprep.subr.bf16.mxu0 %v160
  %192 = vmatpush1.bf16.msra.mxu0 %v159
  %193 = vmatprep.subr.bf16.mxu0 %v162
  %194 = vmatpush1.bf16.msra.mxu0 %v161
  %195 = vmatprep.subr.bf16.mxu0 %v164
  %196 = vmatpush1.bf16.msra.mxu0 %v163
  %197 = vmatprep.subr.bf16.mxu0 %v166
  %198 = vmatpush1.bf16.msra.mxu0 %v165
  %199 = vmatprep.subr.bf16.mxu0 %v168
  %200 = vmatpush1.bf16.msra.mxu0 %v167
  %201 = vmatprep.subr.bf16.mxu0 0
  %202 = vmatpush1.bf16.msra.mxu0 0
  %203 = vmatprep.subr.bf16.mxu0 0
  %204 = vmatpush1.bf16.msra.mxu0 0
  %205 = vmatprep.subr.bf16.mxu0 0
  %206 = vmatpush1.bf16.msra.mxu0 0
  %207 = vmatprep.subr.bf16.mxu0 0
  %208 = vmatpush1.bf16.msra.mxu0 0
  %209 = vmatprep.subr.bf16.mxu0 0
  %210 = vmatpush1.bf16.msra.mxu0 0
  %211 = vmatprep.subr.bf16.mxu0 0
  %212 = vmatpush1.bf16.msra.mxu0 0
  %213 = vmatprep.subr.bf16.mxu0 0
  %214 = vmatpush1.bf16.msra.mxu0 0
  %215 = vmatprep.subr.bf16.mxu0 0
  %216 = vmatpush1.bf16.msra.mxu0 0
  %217 = vmatprep.mubr.bf16.mxu0 0
  %218 = vmatmul.mubr.bf16.gmra.mrb[0].mxu0 %v103
  %v219 = vpop.f32.mrb[0].mxu0
  %v220 = vadd.f32 0.0, %v219
  %v221 = vpop.f32.mrb[0].mxu0
  %v222 = vadd.f32 0.0, %v221
  %v223 = vpop.f32.mrb[0].mxu0
  %v224 = vadd.f32 0.0, %v223
  %v225 = vpop.f32.mrb[0].mxu0
  %v226 = vadd.f32 0.0, %v225
  %227 = vdwg.mxu0
  %v230 = vunpack.c.l.b16 %v47
  %v231 = vunpack.c.h.b16 %v47
  %v232 = vunpack.c.l.b16 %v48
  %v233 = vunpack.c.h.b16 %v48
  %v234 = vpack.c.b16 %v232, %v230
  %v235 = vpack.c.b16 %v233, %v231
  %v270 = vunpack.c.l.b16 %v49
  %v271 = vunpack.c.h.b16 %v49
  %v272 = vunpack.c.l.b16 %v50
  %v273 = vunpack.c.h.b16 %v50
  %v274 = vunpack.c.l.b16 %v51
  %v275 = vunpack.c.h.b16 %v51
  %v276 = vunpack.c.l.b16 %v52
  %v277 = vunpack.c.h.b16 %v52
  %v278 = vunpack.c.l.b16 %v53
  %v279 = vunpack.c.h.b16 %v53
  %v280 = vunpack.c.l.b16 %v54
  %v281 = vunpack.c.h.b16 %v54
  %v282 = vunpack.c.l.b16 %v55
  %v283 = vunpack.c.h.b16 %v55
  %v284 = vunpack.c.l.b16 %v56
  %v285 = vunpack.c.h.b16 %v56
  %v286 = vunpack.c.l.b16 %v57
  %v287 = vunpack.c.h.b16 %v57
  %v288 = vunpack.c.l.b16 %v58
  %v289 = vunpack.c.h.b16 %v58
  %v290 = vunpack.c.l.b16 %v59
  %v291 = vunpack.c.h.b16 %v59
  %v292 = vunpack.c.l.b16 %v60
  %v293 = vunpack.c.h.b16 %v60
  %v294 = vunpack.c.l.b16 %v61
  %v295 = vunpack.c.h.b16 %v61
  %v296 = vunpack.c.l.b16 %v62
  %v297 = vunpack.c.h.b16 %v62
  %v298 = vunpack.c.l.b16 %v63
  %v299 = vunpack.c.h.b16 %v63
  %v300 = vunpack.c.l.b16 %v64
  %v301 = vunpack.c.h.b16 %v64
  %v302 = vunpack.c.l.b16 %v65
  %v303 = vunpack.c.h.b16 %v65
  %v304 = vunpack.c.l.b16 %v66
  %v305 = vunpack.c.h.b16 %v66
  %v306 = vunpack.c.l.b16 %v67
  %v307 = vunpack.c.h.b16 %v67
  %v308 = vunpack.c.l.b16 %v68
  %v309 = vunpack.c.h.b16 %v68
  %v310 = vunpack.c.l.b16 %v69
  %v311 = vunpack.c.h.b16 %v69
  %v312 = vunpack.c.l.b16 %v70
  %v313 = vunpack.c.h.b16 %v70
  %v314 = vunpack.c.l.b16 %v71
  %v315 = vunpack.c.h.b16 %v71
  %v316 = vunpack.c.l.b16 %v72
  %v317 = vunpack.c.h.b16 %v72
  %v318 = vunpack.c.l.b16 %v73
  %v319 = vunpack.c.h.b16 %v73
  %v320 = vunpack.c.l.b16 %v74
  %v321 = vunpack.c.h.b16 %v74
  %v322 = vunpack.c.l.b16 %v75
  %v323 = vunpack.c.h.b16 %v75
  %v324 = vunpack.c.l.b16 %v76
  %v325 = vunpack.c.h.b16 %v76
  %v326 = vunpack.c.l.b16 %v77
  %v327 = vunpack.c.h.b16 %v77
  %v328 = vunpack.c.l.b16 %v78
  %v329 = vunpack.c.h.b16 %v78
  %v330 = vunpack.c.l.b16 %v79
  %v331 = vunpack.c.h.b16 %v79
  %v332 = vunpack.c.l.b16 %v80
  %v333 = vunpack.c.h.b16 %v80
  %v334 = vpack.c.b16 %v272, %v270
  %v335 = vpack.c.b16 %v273, %v271
  %v336 = vpack.c.b16 %v276, %v274
  %v337 = vpack.c.b16 %v277, %v275
  %v338 = vpack.c.b16 %v280, %v278
  %v339 = vpack.c.b16 %v281, %v279
  %v340 = vpack.c.b16 %v284, %v282
  %v341 = vpack.c.b16 %v285, %v283
  %v342 = vpack.c.b16 %v288, %v286
  %v343 = vpack.c.b16 %v289, %v287
  %v344 = vpack.c.b16 %v292, %v290
  %v345 = vpack.c.b16 %v293, %v291
  %v346 = vpack.c.b16 %v296, %v294
  %v347 = vpack.c.b16 %v297, %v295
  %v348 = vpack.c.b16 %v300, %v298
  %v349 = vpack.c.b16 %v301, %v299
  %v350 = vpack.c.b16 %v304, %v302
  %v351 = vpack.c.b16 %v305, %v303
  %v352 = vpack.c.b16 %v308, %v306
  %v353 = vpack.c.b16 %v309, %v307
  %v354 = vpack.c.b16 %v312, %v310
  %v355 = vpack.c.b16 %v313, %v311
  %v356 = vpack.c.b16 %v316, %v314
  %v357 = vpack.c.b16 %v317, %v315
  %v358 = vpack.c.b16 %v320, %v318
  %v359 = vpack.c.b16 %v321, %v319
  %v360 = vpack.c.b16 %v324, %v322
  %v361 = vpack.c.b16 %v325, %v323
  %v362 = vpack.c.b16 %v328, %v326
  %v363 = vpack.c.b16 %v329, %v327
  %v364 = vpack.c.b16 %v332, %v330
  %v365 = vpack.c.b16 %v333, %v331
  %398 = vmatprep.subr.bf16.mxu0 %v335
  %399 = vmatpush1.bf16.msra.mxu0 %v334
  %400 = vmatprep.subr.bf16.mxu0 %v337
  %401 = vmatpush1.bf16.msra.mxu0 %v336
  %402 = vmatprep.subr.bf16.mxu0 %v339
  %403 = vmatpush1.bf16.msra.mxu0 %v338
  %404 = vmatprep.subr.bf16.mxu0 %v341
  %405 = vmatpush1.bf16.msra.mxu0 %v340
  %406 = vmatprep.subr.bf16.mxu0 %v343
  %407 = vmatpush1.bf16.msra.mxu0 %v342
  %408 = vmatprep.subr.bf16.mxu0 %v345
  %409 = vmatpush1.bf16.msra.mxu0 %v344
  %410 = vmatprep.subr.bf16.mxu0 %v347
  %411 = vmatpush1.bf16.msra.mxu0 %v346
  %412 = vmatprep.subr.bf16.mxu0 %v349
  %413 = vmatpush1.bf16.msra.mxu0 %v348
  %414 = vmatprep.subr.bf16.mxu0 %v351
  %415 = vmatpush1.bf16.msra.mxu0 %v350
  %416 = vmatprep.subr.bf16.mxu0 %v353
  %417 = vmatpush1.bf16.msra.mxu0 %v352
  %418 = vmatprep.subr.bf16.mxu0 %v355
  %419 = vmatpush1.bf16.msra.mxu0 %v354
  %420 = vmatprep.subr.bf16.mxu0 %v357
  %421 = vmatpush1.bf16.msra.mxu0 %v356
  %422 = vmatprep.subr.bf16.mxu0 %v359
  %423 = vmatpush1.bf16.msra.mxu0 %v358
  %424 = vmatprep.subr.bf16.mxu0 %v361
  %425 = vmatpush1.bf16.msra.mxu0 %v360
  %426 = vmatprep.subr.bf16.mxu0 %v363
  %427 = vmatpush1.bf16.msra.mxu0 %v362
  %428 = vmatprep.subr.bf16.mxu0 %v365
  %429 = vmatpush1.bf16.msra.mxu0 %v364
  %430 = vmatprep.mubr.bf16.mxu0 %v235
  %431 = vmatmul.mubr.bf16.gmra.mrb[0].mxu0 %v234
  %v432 = vpop.f32.mrb[0].mxu0
  %v433 = vadd.f32 %v220, %v432
  %v434 = vpop.f32.mrb[0].mxu0
  %v435 = vadd.f32 %v222, %v434
  %v436 = vpop.f32.mrb[0].mxu0
  %v437 = vadd.f32 %v224, %v436
  %v438 = vpop.f32.mrb[0].mxu0
  %v439 = vadd.f32 %v226, %v438
  %440 = vdwg.mxu0
  %v441 = vld [vmem:[%s5] sm:$0x3]
  %v443 = vlaneseq
  %v444 = vshrl.u32 %v443, 7
  %v445 = vsub.s32 0, %v444
  %v446 = vrot.slane %v441, %v445
  %v447 = vlaneseq
  %v448 = vshrl.u32 %v447, 7
  %v449 = vsub.s32 1, %v448
  %v450 = vrot.slane %v441, %v449
  %v453 = vadd.f32 %v433, %v446
  %v454 = vadd.f32 %v435, %v450
  %v455 = vadd.f32 %v437, %v446
  %v456 = vadd.f32 %v439, %v450
  %v457 = vmax.f32 %v453, 0.0
  %v458 = vmax.f32 %v454, 0.0
  %v459 = vmax.f32 %v455, 0.0
  %v460 = vmax.f32 %v456, 0.0
  %v461 = vpack.c.bf16 %v459, %v457
  %v462 = vpack.c.bf16 %v460, %v458
  %v463 = vld [vmem:[%s6] sm:$0xff]
  %v464 = vld [vmem:[%s6 + $0x8] sm:$0xff]
  %v465 = vld [vmem:[%s6 + $0x10] sm:$0xff]
  %v466 = vld [vmem:[%s6 + $0x18] sm:$0xff]
  %v467 = vld [vmem:[%s6 + $0x20] sm:$0xff]
  %v468 = vld [vmem:[%s6 + $0x28] sm:$0xff]
  %v469 = vld [vmem:[%s6 + $0x30] sm:$0xff]
  %v470 = vld [vmem:[%s6 + $0x38] sm:$0xff]
  %v471 = vld [vmem:[%s6 + $0x40] sm:$0xff]
  %v472 = vld [vmem:[%s6 + $0x48] sm:$0xff]
  %v473 = vld [vmem:[%s6 + $0x50] sm:$0xff]
  %v474 = vld [vmem:[%s6 + $0x58] sm:$0xff]
  %v475 = vld [vmem:[%s6 + $0x60] sm:$0xff]
  %v476 = vld [vmem:[%s6 + $0x68] sm:$0xff]
  %v477 = vld [vmem:[%s6 + $0x70] sm:$0xff]
  %v478 = vld [vmem:[%s6 + $0x78] sm:$0xff]
  %v479 = vld [vmem:[%s6 + $0x80] sm:$0xff]
  %v480 = vld [vmem:[%s6 + $0x88] sm:$0xff]
  %v481 = vld [vmem:[%s6 + $0x90] sm:$0xff]
  %v482 = vld [vmem:[%s6 + $0x98] sm:$0xff]
  %v483 = vld [vmem:[%s6 + $0xa0] sm:$0xff]
  %v484 = vld [vmem:[%s6 + $0xa8] sm:$0xff]
  %v485 = vld [vmem:[%s6 + $0xb0] sm:$0xff]
  %v486 = vld [vmem:[%s6 + $0xb8] sm:$0xff]
  %v487 = vld [vmem:[%s6 + $0xc0] sm:$0xff]
  %v488 = vld [vmem:[%s6 + $0xc8] sm:$0xff]
  %v489 = vld [vmem:[%s6 + $0xd0] sm:$0xff]
  %v490 = vld [vmem:[%s6 + $0xd8] sm:$0xff]
  %v491 = vld [vmem:[%s6 + $0xe0] sm:$0xff]
  %v492 = vld [vmem:[%s6 + $0xe8] sm:$0xff]
  %v493 = vld [vmem:[%s6 + $0xf0] sm:$0xff]
  %v494 = vld [vmem:[%s6 + $0xf8] sm:$0xff]
  %v495 = vld [vmem:[%s7] sm:$0x3]
  %v497 = vlaneseq
  %v498 = vshrl.u32 %v497, 7
  %v499 = vsub.s32 0, %v498
  %v500 = vrot.slane %v495, %v499
  %v501 = vlaneseq
  %v502 = vshrl.u32 %v501, 7
  %v503 = vsub.s32 1, %v502
  %v504 = vrot.slane %v495, %v503
  %v539 = vunpack.c.l.b16 %v463
  %v540 = vunpack.c.h.b16 %v463
  %v541 = vunpack.c.l.b16 %v464
  %v542 = vunpack.c.h.b16 %v464
  %v543 = vunpack.c.l.b16 %v465
  %v544 = vunpack.c.h.b16 %v465
  %v545 = vunpack.c.l.b16 %v466
  %v546 = vunpack.c.h.b16 %v466
  %v547 = vunpack.c.l.b16 %v467
  %v548 = vunpack.c.h.b16 %v467
  %v549 = vunpack.c.l.b16 %v468
  %v550 = vunpack.c.h.b16 %v468
  %v551 = vunpack.c.l.b16 %v469
  %v552 = vunpack.c.h.b16 %v469
  %v553 = vunpack.c.l.b16 %v470
  %v554 = vunpack.c.h.b16 %v470
  %v555 = vunpack.c.l.b16 %v471
  %v556 = vunpack.c.h.b16 %v471
  %v557 = vunpack.c.l.b16 %v472
  %v558 = vunpack.c.h.b16 %v472
  %v559 = vunpack.c.l.b16 %v473
  %v560 = vunpack.c.h.b16 %v473
  %v561 = vunpack.c.l.b16 %v474
  %v562 = vunpack.c.h.b16 %v474
  %v563 = vunpack.c.l.b16 %v475
  %v564 = vunpack.c.h.b16 %v475
  %v565 = vunpack.c.l.b16 %v476
  %v566 = vunpack.c.h.b16 %v476
  %v567 = vunpack.c.l.b16 %v477
  %v568 = vunpack.c.h.b16 %v477
  %v569 = vunpack.c.l.b16 %v478
  %v570 = vunpack.c.h.b16 %v478
  %v571 = vunpack.c.l.b16 %v479
  %v572 = vunpack.c.h.b16 %v479
  %v573 = vunpack.c.l.b16 %v480
  %v574 = vunpack.c.h.b16 %v480
  %v575 = vunpack.c.l.b16 %v481
  %v576 = vunpack.c.h.b16 %v481
  %v577 = vunpack.c.l.b16 %v482
  %v578 = vunpack.c.h.b16 %v482
  %v579 = vunpack.c.l.b16 %v483
  %v580 = vunpack.c.h.b16 %v483
  %v581 = vunpack.c.l.b16 %v484
  %v582 = vunpack.c.h.b16 %v484
  %v583 = vunpack.c.l.b16 %v485
  %v584 = vunpack.c.h.b16 %v485
  %v585 = vunpack.c.l.b16 %v486
  %v586 = vunpack.c.h.b16 %v486
  %v587 = vunpack.c.l.b16 %v487
  %v588 = vunpack.c.h.b16 %v487
  %v589 = vunpack.c.l.b16 %v488
  %v590 = vunpack.c.h.b16 %v488
  %v591 = vunpack.c.l.b16 %v489
  %v592 = vunpack.c.h.b16 %v489
  %v593 = vunpack.c.l.b16 %v490
  %v594 = vunpack.c.h.b16 %v490
  %v595 = vunpack.c.l.b16 %v491
  %v596 = vunpack.c.h.b16 %v491
  %v597 = vunpack.c.l.b16 %v492
  %v598 = vunpack.c.h.b16 %v492
  %v599 = vunpack.c.l.b16 %v493
  %v600 = vunpack.c.h.b16 %v493
  %v601 = vunpack.c.l.b16 %v494
  %v602 = vunpack.c.h.b16 %v494
  %v603 = vpack.c.b16 %v541, %v539
  %v604 = vpack.c.b16 %v542, %v540
  %v605 = vpack.c.b16 %v545, %v543
  %v606 = vpack.c.b16 %v546, %v544
  %v607 = vpack.c.b16 %v549, %v547
  %v608 = vpack.c.b16 %v550, %v548
  %v609 = vpack.c.b16 %v553, %v551
  %v610 = vpack.c.b16 %v554, %v552
  %v611 = vpack.c.b16 %v557, %v555
  %v612 = vpack.c.b16 %v558, %v556
  %v613 = vpack.c.b16 %v561, %v559
  %v614 = vpack.c.b16 %v562, %v560
  %v615 = vpack.c.b16 %v565, %v563
  %v616 = vpack.c.b16 %v566, %v564
  %v617 = vpack.c.b16 %v569, %v567
  %v618 = vpack.c.b16 %v570, %v568
  %v619 = vpack.c.b16 %v573, %v571
  %v620 = vpack.c.b16 %v574, %v572
  %v621 = vpack.c.b16 %v577, %v575
  %v622 = vpack.c.b16 %v578, %v576
  %v623 = vpack.c.b16 %v581, %v579
  %v624 = vpack.c.b16 %v582, %v580
  %v625 = vpack.c.b16 %v585, %v583
  %v626 = vpack.c.b16 %v586, %v584
  %v627 = vpack.c.b16 %v589, %v587
  %v628 = vpack.c.b16 %v590, %v588
  %v629 = vpack.c.b16 %v593, %v591
  %v630 = vpack.c.b16 %v594, %v592
  %v631 = vpack.c.b16 %v597, %v595
  %v632 = vpack.c.b16 %v598, %v596
  %v633 = vpack.c.b16 %v601, %v599
  %v634 = vpack.c.b16 %v602, %v600
  %667 = vmatprep.subr.bf16.mxu0 %v604
  %668 = vmatpush1.bf16.msra.mxu0 %v603
  %669 = vmatprep.subr.bf16.mxu0 %v606
  %670 = vmatpush1.bf16.msra.mxu0 %v605
  %671 = vmatprep.subr.bf16.mxu0 %v608
  %672 = vmatpush1.bf16.msra.mxu0 %v607
  %673 = vmatprep.subr.bf16.mxu0 %v610
  %674 = vmatpush1.bf16.msra.mxu0 %v609
  %675 = vmatprep.subr.bf16.mxu0 %v612
  %676 = vmatpush1.bf16.msra.mxu0 %v611
  %677 = vmatprep.subr.bf16.mxu0 %v614
  %678 = vmatpush1.bf16.msra.mxu0 %v613
  %679 = vmatprep.subr.bf16.mxu0 %v616
  %680 = vmatpush1.bf16.msra.mxu0 %v615
  %681 = vmatprep.subr.bf16.mxu0 %v618
  %682 = vmatpush1.bf16.msra.mxu0 %v617
  %683 = vmatprep.subr.bf16.mxu0 %v620
  %684 = vmatpush1.bf16.msra.mxu0 %v619
  %685 = vmatprep.subr.bf16.mxu0 %v622
  %686 = vmatpush1.bf16.msra.mxu0 %v621
  %687 = vmatprep.subr.bf16.mxu0 %v624
  %688 = vmatpush1.bf16.msra.mxu0 %v623
  %689 = vmatprep.subr.bf16.mxu0 %v626
  %690 = vmatpush1.bf16.msra.mxu0 %v625
  %691 = vmatprep.subr.bf16.mxu0 %v628
  %692 = vmatpush1.bf16.msra.mxu0 %v627
  %693 = vmatprep.subr.bf16.mxu0 %v630
  %694 = vmatpush1.bf16.msra.mxu0 %v629
  %695 = vmatprep.subr.bf16.mxu0 %v632
  %696 = vmatpush1.bf16.msra.mxu0 %v631
  %697 = vmatprep.subr.bf16.mxu0 %v634
  %698 = vmatpush1.bf16.msra.mxu0 %v633
  %699 = vmatprep.mubr.bf16.mxu0 %v462
  %700 = vmatmul.mubr.bf16.gmra.mrb[0].mxu0 %v461
  %v701 = vpop.f32.mrb[0].mxu0
  %v702 = vadd.f32 %v500, %v701
  %v703 = vpop.f32.mrb[0].mxu0
  %v704 = vadd.f32 %v504, %v703
  %v705 = vpop.f32.mrb[0].mxu0
  %v706 = vadd.f32 %v500, %v705
  %v707 = vpop.f32.mrb[0].mxu0
  %v708 = vadd.f32 %v504, %v707
  %709 = vdwg.mxu0
  %710 = vst [vmem:[%s13] sm:$0xff] %v702
  %711 = vst [vmem:[%s13 + $0x8] sm:$0xff] %v704
  %712 = vst [vmem:[%s13 + $0x10] sm:$0xff] %v706
  %713 = vst [vmem:[%s13 + $0x18] sm:$0xff] %v708
  %v714 = vld [vmem:[%s8] sm:$0xff]
  %v715 = vld [vmem:[%s8 + $0x8] sm:$0xff]
  %v716 = vld [vmem:[%s8 + $0x10] sm:$0xff]
  %v717 = vld [vmem:[%s8 + $0x18] sm:$0xff]
  %v718 = vld [vmem:[%s8 + $0x20] sm:$0xff]
  %v719 = vld [vmem:[%s8 + $0x28] sm:$0xff]
  %v720 = vld [vmem:[%s8 + $0x30] sm:$0xff]
  %v721 = vld [vmem:[%s8 + $0x38] sm:$0xff]
  %v722 = vld [vmem:[%s8 + $0x40] sm:$0xff]
  %v723 = vld [vmem:[%s8 + $0x48] sm:$0xff]
  %v724 = vld [vmem:[%s8 + $0x50] sm:$0xff]
  %v725 = vld [vmem:[%s8 + $0x58] sm:$0xff]
  %v726 = vld [vmem:[%s8 + $0x60] sm:$0xff]
  %v727 = vld [vmem:[%s8 + $0x68] sm:$0xff]
  %v728 = vld [vmem:[%s8 + $0x70] sm:$0xff]
  %v729 = vld [vmem:[%s8 + $0x78] sm:$0xff]
  %v730 = vld [vmem:[%s8 + $0x80] sm:$0xff]
  %v731 = vld [vmem:[%s8 + $0x88] sm:$0xff]
  %v732 = vld [vmem:[%s8 + $0x90] sm:$0xff]
  %v733 = vld [vmem:[%s8 + $0x98] sm:$0xff]
  %v734 = vld [vmem:[%s8 + $0xa0] sm:$0xff]
  %v735 = vld [vmem:[%s8 + $0xa8] sm:$0xff]
  %v736 = vld [vmem:[%s8 + $0xb0] sm:$0xff]
  %v737 = vld [vmem:[%s8 + $0xb8] sm:$0xff]
  %v738 = vld [vmem:[%s8 + $0xc0] sm:$0xff]
  %v739 = vld [vmem:[%s8 + $0xc8] sm:$0xff]
  %v740 = vld [vmem:[%s8 + $0xd0] sm:$0xff]
  %v741 = vld [vmem:[%s8 + $0xd8] sm:$0xff]
  %v742 = vld [vmem:[%s8 + $0xe0] sm:$0xff]
  %v743 = vld [vmem:[%s8 + $0xe8] sm:$0xff]
  %v744 = vld [vmem:[%s8 + $0xf0] sm:$0xff]
  %v745 = vld [vmem:[%s8 + $0xf8] sm:$0xff]
  %v746 = vld [vmem:[%s1] sm:$0xff]
  %v747 = vld [vmem:[%s1 + $0x8] sm:$0xff]
  %v748 = vld [vmem:[%s9] sm:$0xff]
  %v749 = vld [vmem:[%s9 + $0x8] sm:$0xff]
  %v750 = vld [vmem:[%s9 + $0x10] sm:$0xff]
  %v751 = vld [vmem:[%s9 + $0x18] sm:$0xff]
  %v752 = vld [vmem:[%s9 + $0x20] sm:$0xff]
  %v753 = vld [vmem:[%s9 + $0x28] sm:$0xff]
  %v754 = vld [vmem:[%s9 + $0x30] sm:$0xff]
  %v755 = vld [vmem:[%s9 + $0x38] sm:$0xff]
  %v756 = vld [vmem:[%s9 + $0x40] sm:$0xff]
  %v757 = vld [vmem:[%s9 + $0x48] sm:$0xff]
  %v758 = vld [vmem:[%s9 + $0x50] sm:$0xff]
  %v759 = vld [vmem:[%s9 + $0x58] sm:$0xff]
  %v760 = vld [vmem:[%s9 + $0x60] sm:$0xff]
  %v761 = vld [vmem:[%s9 + $0x68] sm:$0xff]
  %v762 = vld [vmem:[%s9 + $0x70] sm:$0xff]
  %v763 = vld [vmem:[%s9 + $0x78] sm:$0xff]
  %v764 = vld [vmem:[%s9 + $0x80] sm:$0xff]
  %v765 = vld [vmem:[%s9 + $0x88] sm:$0xff]
  %v766 = vld [vmem:[%s9 + $0x90] sm:$0xff]
  %v767 = vld [vmem:[%s9 + $0x98] sm:$0xff]
  %v768 = vld [vmem:[%s9 + $0xa0] sm:$0xff]
  %v769 = vld [vmem:[%s9 + $0xa8] sm:$0xff]
  %v770 = vld [vmem:[%s9 + $0xb0] sm:$0xff]
  %v771 = vld [vmem:[%s9 + $0xb8] sm:$0xff]
  %v772 = vld [vmem:[%s9 + $0xc0] sm:$0xff]
  %v773 = vld [vmem:[%s9 + $0xc8] sm:$0xff]
  %v774 = vld [vmem:[%s9 + $0xd0] sm:$0xff]
  %v775 = vld [vmem:[%s9 + $0xd8] sm:$0xff]
  %v776 = vld [vmem:[%s9 + $0xe0] sm:$0xff]
  %v777 = vld [vmem:[%s9 + $0xe8] sm:$0xff]
  %v778 = vld [vmem:[%s9 + $0xf0] sm:$0xff]
  %v779 = vld [vmem:[%s9 + $0xf8] sm:$0xff]
  %v782 = vunpack.c.l.b16 %v746
  %v783 = vunpack.c.h.b16 %v746
  %v784 = vunpack.c.l.b16 %v747
  %v785 = vunpack.c.h.b16 %v747
  %v786 = vpack.c.b16 %v784, %v782
  %v787 = vpack.c.b16 %v785, %v783
  %v822 = vunpack.c.l.b16 %v748
  %v823 = vunpack.c.h.b16 %v748
  %v824 = vunpack.c.l.b16 %v749
  %v825 = vunpack.c.h.b16 %v749
  %v826 = vunpack.c.l.b16 %v750
  %v827 = vunpack.c.h.b16 %v750
  %v828 = vunpack.c.l.b16 %v751
  %v829 = vunpack.c.h.b16 %v751
  %v830 = vunpack.c.l.b16 %v752
  %v831 = vunpack.c.h.b16 %v752
  %v832 = vunpack.c.l.b16 %v753
  %v833 = vunpack.c.h.b16 %v753
  %v834 = vunpack.c.l.b16 %v754
  %v835 = vunpack.c.h.b16 %v754
  %v836 = vunpack.c.l.b16 %v755
  %v837 = vunpack.c.h.b16 %v755
  %v838 = vunpack.c.l.b16 %v756
  %v839 = vunpack.c.h.b16 %v756
  %v840 = vunpack.c.l.b16 %v757
  %v841 = vunpack.c.h.b16 %v757
  %v842 = vunpack.c.l.b16 %v758
  %v843 = vunpack.c.h.b16 %v758
  %v844 = vunpack.c.l.b16 %v759
  %v845 = vunpack.c.h.b16 %v759
  %v846 = vunpack.c.l.b16 %v760
  %v847 = vunpack.c.h.b16 %v760
  %v848 = vunpack.c.l.b16 %v761
  %v849 = vunpack.c.h.b16 %v761
  %v850 = vunpack.c.l.b16 %v762
  %v851 = vunpack.c.h.b16 %v762
  %v852 = vunpack.c.l.b16 %v763
  %v853 = vunpack.c.h.b16 %v763
  %v854 = vunpack.c.l.b16 %v764
  %v855 = vunpack.c.h.b16 %v764
  %v856 = vunpack.c.l.b16 %v765
  %v857 = vunpack.c.h.b16 %v765
  %v858 = vunpack.c.l.b16 %v766
  %v859 = vunpack.c.h.b16 %v766
  %v860 = vunpack.c.l.b16 %v767
  %v861 = vunpack.c.h.b16 %v767
  %v862 = vunpack.c.l.b16 %v768
  %v863 = vunpack.c.h.b16 %v768
  %v864 = vunpack.c.l.b16 %v769
  %v865 = vunpack.c.h.b16 %v769
  %v866 = vunpack.c.l.b16 %v770
  %v867 = vunpack.c.h.b16 %v770
  %v868 = vunpack.c.l.b16 %v771
  %v869 = vunpack.c.h.b16 %v771
  %v870 = vunpack.c.l.b16 %v772
  %v871 = vunpack.c.h.b16 %v772
  %v872 = vunpack.c.l.b16 %v773
  %v873 = vunpack.c.h.b16 %v773
  %v874 = vunpack.c.l.b16 %v774
  %v875 = vunpack.c.h.b16 %v774
  %v876 = vunpack.c.l.b16 %v775
  %v877 = vunpack.c.h.b16 %v775
  %v878 = vunpack.c.l.b16 %v776
  %v879 = vunpack.c.h.b16 %v776
  %v880 = vunpack.c.l.b16 %v777
  %v881 = vunpack.c.h.b16 %v777
  %v882 = vunpack.c.l.b16 %v778
  %v883 = vunpack.c.h.b16 %v778
  %v884 = vunpack.c.l.b16 %v779
  %v885 = vunpack.c.h.b16 %v779
  %v886 = vpack.c.b16 %v824, %v822
  %v887 = vpack.c.b16 %v825, %v823
  %v888 = vpack.c.b16 %v828, %v826
  %v889 = vpack.c.b16 %v829, %v827
  %v890 = vpack.c.b16 %v832, %v830
  %v891 = vpack.c.b16 %v833, %v831
  %v892 = vpack.c.b16 %v836, %v834
  %v893 = vpack.c.b16 %v837, %v835
  %v894 = vpack.c.b16 %v840, %v838
  %v895 = vpack.c.b16 %v841, %v839
  %v896 = vpack.c.b16 %v844, %v842
  %v897 = vpack.c.b16 %v845, %v843
  %v898 = vpack.c.b16 %v848, %v846
  %v899 = vpack.c.b16 %v849, %v847
  %v900 = vpack.c.b16 %v852, %v850
  %v901 = vpack.c.b16 %v853, %v851
  %v902 = vpack.c.b16 %v856, %v854
  %v903 = vpack.c.b16 %v857, %v855
  %v904 = vpack.c.b16 %v860, %v858
  %v905 = vpack.c.b16 %v861, %v859
  %v906 = vpack.c.b16 %v864, %v862
  %v907 = vpack.c.b16 %v865, %v863
  %v908 = vpack.c.b16 %v868, %v866
  %v909 = vpack.c.b16 %v869, %v867
  %v910 = vpack.c.b16 %v872, %v870
  %v911 = vpack.c.b16 %v873, %v871
  %v912 = vpack.c.b16 %v876, %v874
  %v913 = vpack.c.b16 %v877, %v875
  %v914 = vpack.c.b16 %v880, %v878
  %v915 = vpack.c.b16 %v881, %v879
  %v916 = vpack.c.b16 %v884, %v882
  %v917 = vpack.c.b16 %v885, %v883
  %950 = vmatprep.subr.bf16.mxu0 %v887
  %951 = vmatpush1.bf16.msra.mxu0 %v886
  %952 = vmatprep.subr.bf16.mxu0 %v889
  %953 = vmatpush1.bf16.msra.mxu0 %v888
  %954 = vmatprep.subr.bf16.mxu0 %v891
  %955 = vmatpush1.bf16.msra.mxu0 %v890
  %956 = vmatprep.subr.bf16.mxu0 %v893
  %957 = vmatpush1.bf16.msra.mxu0 %v892
  %958 = vmatprep.subr.bf16.mxu0 %v895
  %959 = vmatpush1.bf16.msra.mxu0 %v894
  %960 = vmatprep.subr.bf16.mxu0 %v897
  %961 = vmatpush1.bf16.msra.mxu0 %v896
  %962 = vmatprep.subr.bf16.mxu0 %v899
  %963 = vmatpush1.bf16.msra.mxu0 %v898
  %964 = vmatprep.subr.bf16.mxu0 %v901
  %965 = vmatpush1.bf16.msra.mxu0 %v900
  %966 = vmatprep.subr.bf16.mxu0 %v903
  %967 = vmatpush1.bf16.msra.mxu0 %v902
  %968 = vmatprep.subr.bf16.mxu0 %v905
  %969 = vmatpush1.bf16.msra.mxu0 %v904
  %970 = vmatprep.subr.bf16.mxu0 %v907
  %971 = vmatpush1.bf16.msra.mxu0 %v906
  %972 = vmatprep.subr.bf16.mxu0 %v909
  %973 = vmatpush1.bf16.msra.mxu0 %v908
  %974 = vmatprep.subr.bf16.mxu0 %v911
  %975 = vmatpush1.bf16.msra.mxu0 %v910
  %976 = vmatprep.subr.bf16.mxu0 %v913
  %977 = vmatpush1.bf16.msra.mxu0 %v912
  %978 = vmatprep.subr.bf16.mxu0 %v915
  %979 = vmatpush1.bf16.msra.mxu0 %v914
  %980 = vmatprep.subr.bf16.mxu0 %v917
  %981 = vmatpush1.bf16.msra.mxu0 %v916
  %982 = vmatprep.mubr.bf16.mxu0 %v787
  %983 = vmatmul.mubr.bf16.gmra.mrb[0].mxu0 %v786
  %v984 = vpop.f32.mrb[0].mxu0
  %v985 = vadd.f32 0.0, %v984
  %v986 = vpop.f32.mrb[0].mxu0
  %v987 = vadd.f32 0.0, %v986
  %v988 = vpop.f32.mrb[0].mxu0
  %v989 = vadd.f32 0.0, %v988
  %v990 = vpop.f32.mrb[0].mxu0
  %v991 = vadd.f32 0.0, %v990
  %992 = vdwg.mxu0
  %v1025 = vunpack.c.l.b16 %v714
  %v1026 = vunpack.c.h.b16 %v714
  %v1027 = vunpack.c.l.b16 %v715
  %v1028 = vunpack.c.h.b16 %v715
  %v1029 = vunpack.c.l.b16 %v716
  %v1030 = vunpack.c.h.b16 %v716
  %v1031 = vunpack.c.l.b16 %v717
  %v1032 = vunpack.c.h.b16 %v717
  %v1033 = vunpack.c.l.b16 %v718
  %v1034 = vunpack.c.h.b16 %v718
  %v1035 = vunpack.c.l.b16 %v719
  %v1036 = vunpack.c.h.b16 %v719
  %v1037 = vunpack.c.l.b16 %v720
  %v1038 = vunpack.c.h.b16 %v720
  %v1039 = vunpack.c.l.b16 %v721
  %v1040 = vunpack.c.h.b16 %v721
  %v1041 = vunpack.c.l.b16 %v722
  %v1042 = vunpack.c.h.b16 %v722
  %v1043 = vunpack.c.l.b16 %v723
  %v1044 = vunpack.c.h.b16 %v723
  %v1045 = vunpack.c.l.b16 %v724
  %v1046 = vunpack.c.h.b16 %v724
  %v1047 = vunpack.c.l.b16 %v725
  %v1048 = vunpack.c.h.b16 %v725
  %v1049 = vunpack.c.l.b16 %v726
  %v1050 = vunpack.c.h.b16 %v726
  %v1051 = vunpack.c.l.b16 %v727
  %v1052 = vunpack.c.h.b16 %v727
  %v1053 = vunpack.c.l.b16 %v728
  %v1054 = vunpack.c.h.b16 %v728
  %v1055 = vunpack.c.l.b16 %v729
  %v1056 = vunpack.c.h.b16 %v729
  %v1057 = vunpack.c.l.b16 %v730
  %v1058 = vunpack.c.h.b16 %v730
  %v1059 = vunpack.c.l.b16 %v731
  %v1060 = vunpack.c.h.b16 %v731
  %v1061 = vunpack.c.l.b16 %v732
  %v1062 = vunpack.c.h.b16 %v732
  %v1063 = vunpack.c.l.b16 %v733
  %v1064 = vunpack.c.h.b16 %v733
  %v1065 = vunpack.c.l.b16 %v734
  %v1066 = vunpack.c.h.b16 %v734
  %v1067 = vunpack.c.l.b16 %v735
  %v1068 = vunpack.c.h.b16 %v735
  %v1069 = vunpack.c.l.b16 %v736
  %v1070 = vunpack.c.h.b16 %v736
  %v1071 = vunpack.c.l.b16 %v737
  %v1072 = vunpack.c.h.b16 %v737
  %v1073 = vunpack.c.l.b16 %v738
  %v1074 = vunpack.c.h.b16 %v738
  %v1075 = vunpack.c.l.b16 %v739
  %v1076 = vunpack.c.h.b16 %v739
  %v1077 = vunpack.c.l.b16 %v740
  %v1078 = vunpack.c.h.b16 %v740
  %v1079 = vunpack.c.l.b16 %v741
  %v1080 = vunpack.c.h.b16 %v741
  %v1081 = vunpack.c.l.b16 %v742
  %v1082 = vunpack.c.h.b16 %v742
  %v1083 = vunpack.c.l.b16 %v743
  %v1084 = vunpack.c.h.b16 %v743
  %v1085 = vunpack.c.l.b16 %v744
  %v1086 = vunpack.c.h.b16 %v744
  %v1087 = vunpack.c.l.b16 %v745
  %v1088 = vunpack.c.h.b16 %v745
  %v1089 = vpack.c.b16 %v1027, %v1025
  %v1090 = vpack.c.b16 %v1028, %v1026
  %v1091 = vpack.c.b16 %v1031, %v1029
  %v1092 = vpack.c.b16 %v1032, %v1030
  %v1093 = vpack.c.b16 %v1035, %v1033
  %v1094 = vpack.c.b16 %v1036, %v1034
  %v1095 = vpack.c.b16 %v1039, %v1037
  %v1096 = vpack.c.b16 %v1040, %v1038
  %v1097 = vpack.c.b16 %v1043, %v1041
  %v1098 = vpack.c.b16 %v1044, %v1042
  %v1099 = vpack.c.b16 %v1047, %v1045
  %v1100 = vpack.c.b16 %v1048, %v1046
  %v1101 = vpack.c.b16 %v1051, %v1049
  %v1102 = vpack.c.b16 %v1052, %v1050
  %v1103 = vpack.c.b16 %v1055, %v1053
  %v1104 = vpack.c.b16 %v1056, %v1054
  %v1105 = vpack.c.b16 %v1059, %v1057
  %v1106 = vpack.c.b16 %v1060, %v1058
  %v1107 = vpack.c.b16 %v1063, %v1061
  %v1108 = vpack.c.b16 %v1064, %v1062
  %v1109 = vpack.c.b16 %v1067, %v1065
  %v1110 = vpack.c.b16 %v1068, %v1066
  %v1111 = vpack.c.b16 %v1071, %v1069
  %v1112 = vpack.c.b16 %v1072, %v1070
  %v1113 = vpack.c.b16 %v1075, %v1073
  %v1114 = vpack.c.b16 %v1076, %v1074
  %v1115 = vpack.c.b16 %v1079, %v1077
  %v1116 = vpack.c.b16 %v1080, %v1078
  %v1117 = vpack.c.b16 %v1083, %v1081
  %v1118 = vpack.c.b16 %v1084, %v1082
  %v1119 = vpack.c.b16 %v1087, %v1085
  %v1120 = vpack.c.b16 %v1088, %v1086
  %1153 = vmatprep.subr.bf16.mxu0 %v1090
  %1154 = vmatpush1.bf16.msra.mxu0 %v1089
  %1155 = vmatprep.subr.bf16.mxu0 %v1092
  %1156 = vmatpush1.bf16.msra.mxu0 %v1091
  %1157 = vmatprep.subr.bf16.mxu0 %v1094
  %1158 = vmatpush1.bf16.msra.mxu0 %v1093
  %1159 = vmatprep.subr.bf16.mxu0 %v1096
  %1160 = vmatpush1.bf16.msra.mxu0 %v1095
  %1161 = vmatprep.subr.bf16.mxu0 %v1098
  %1162 = vmatpush1.bf16.msra.mxu0 %v1097
  %1163 = vmatprep.subr.bf16.mxu0 %v1100
  %1164 = vmatpush1.bf16.msra.mxu0 %v1099
  %1165 = vmatprep.subr.bf16.mxu0 %v1102
  %1166 = vmatpush1.bf16.msra.mxu0 %v1101
  %1167 = vmatprep.subr.bf16.mxu0 %v1104
  %1168 = vmatpush1.bf16.msra.mxu0 %v1103
  %1169 = vmatprep.subr.bf16.mxu0 %v1106
  %1170 = vmatpush1.bf16.msra.mxu0 %v1105
  %1171 = vmatprep.subr.bf16.mxu0 %v1108
  %1172 = vmatpush1.bf16.msra.mxu0 %v1107
  %1173 = vmatprep.subr.bf16.mxu0 %v1110
  %1174 = vmatpush1.bf16.msra.mxu0 %v1109
  %1175 = vmatprep.subr.bf16.mxu0 %v1112
  %1176 = vmatpush1.bf16.msra.mxu0 %v1111
  %1177 = vmatprep.subr.bf16.mxu0 %v1114
  %1178 = vmatpush1.bf16.msra.mxu0 %v1113
  %1179 = vmatprep.subr.bf16.mxu0 %v1116
  %1180 = vmatpush1.bf16.msra.mxu0 %v1115
  %1181 = vmatprep.subr.bf16.mxu0 %v1118
  %1182 = vmatpush1.bf16.msra.mxu0 %v1117
  %1183 = vmatprep.subr.bf16.mxu0 %v1120
  %1184 = vmatpush1.bf16.msra.mxu0 %v1119
  %1185 = vmatprep.mubr.bf16.mxu0 %v235
  %1186 = vmatmul.mubr.bf16.gmra.mrb[0].mxu0 %v234
  %v1187 = vpop.f32.mrb[0].mxu0
  %v1188 = vadd.f32 %v985, %v1187
  %v1189 = vpop.f32.mrb[0].mxu0
  %v1190 = vadd.f32 %v987, %v1189
  %v1191 = vpop.f32.mrb[0].mxu0
  %v1192 = vadd.f32 %v989, %v1191
  %v1193 = vpop.f32.mrb[0].mxu0
  %v1194 = vadd.f32 %v991, %v1193
  %1195 = vdwg.mxu0
  %v1196 = vld [vmem:[%s10] sm:$0x3]
  %v1198 = vlaneseq
  %v1199 = vshrl.u32 %v1198, 7
  %v1200 = vsub.s32 0, %v1199
  %v1201 = vrot.slane %v1196, %v1200
  %v1202 = vlaneseq
  %v1203 = vshrl.u32 %v1202, 7
  %v1204 = vsub.s32 1, %v1203
  %v1205 = vrot.slane %v1196, %v1204
  %v1208 = vadd.f32 %v1188, %v1201
  %v1209 = vadd.f32 %v1190, %v1205
  %v1210 = vadd.f32 %v1192, %v1201
  %v1211 = vadd.f32 %v1194, %v1205
  %v1212 = vmax.f32 %v1208, 0.0
  %v1213 = vmax.f32 %v1209, 0.0
  %v1214 = vmax.f32 %v1210, 0.0
  %v1215 = vmax.f32 %v1211, 0.0
  %v1216 = vpack.c.bf16 %v1214, %v1212
  %v1217 = vpack.c.bf16 %v1215, %v1213
  %v1218 = vld [vmem:[%s11] sm:$0xf]
  %v1219 = vld [vmem:[%s11 + $0x4] sm:$0xf]
  %v1220 = vld [vmem:[%s11 + $0x8] sm:$0xf]
  %v1221 = vld [vmem:[%s11 + $0xc] sm:$0xf]
  %v1222 = vld [vmem:[%s11 + $0x10] sm:$0xf]
  %v1223 = vld [vmem:[%s11 + $0x14] sm:$0xf]
  %v1224 = vld [vmem:[%s11 + $0x18] sm:$0xf]
  %v1225 = vld [vmem:[%s11 + $0x1c] sm:$0xf]
  %v1226 = vld [vmem:[%s11 + $0x20] sm:$0xf]
  %v1227 = vld [vmem:[%s11 + $0x24] sm:$0xf]
  %v1228 = vld [vmem:[%s11 + $0x28] sm:$0xf]
  %v1229 = vld [vmem:[%s11 + $0x2c] sm:$0xf]
  %v1230 = vld [vmem:[%s11 + $0x30] sm:$0xf]
  %v1231 = vld [vmem:[%s11 + $0x34] sm:$0xf]
  %v1232 = vld [vmem:[%s11 + $0x38] sm:$0xf]
  %v1233 = vld [vmem:[%s11 + $0x3c] sm:$0xf]
  %v1234 = vld [vmem:[%s11 + $0x40] sm:$0xf]
  %v1235 = vld [vmem:[%s11 + $0x44] sm:$0xf]
  %v1236 = vld [vmem:[%s11 + $0x48] sm:$0xf]
  %v1237 = vld [vmem:[%s11 + $0x4c] sm:$0xf]
  %v1238 = vld [vmem:[%s11 + $0x50] sm:$0xf]
  %v1239 = vld [vmem:[%s11 + $0x54] sm:$0xf]
  %v1240 = vld [vmem:[%s11 + $0x58] sm:$0xf]
  %v1241 = vld [vmem:[%s11 + $0x5c] sm:$0xf]
  %v1242 = vld [vmem:[%s11 + $0x60] sm:$0xf]
  %v1243 = vld [vmem:[%s11 + $0x64] sm:$0xf]
  %v1244 = vld [vmem:[%s11 + $0x68] sm:$0xf]
  %v1245 = vld [vmem:[%s11 + $0x6c] sm:$0xf]
  %v1246 = vld [vmem:[%s11 + $0x70] sm:$0xf]
  %v1247 = vld [vmem:[%s11 + $0x74] sm:$0xf]
  %v1248 = vld [vmem:[%s11 + $0x78] sm:$0xf]
  %v1249 = vld [vmem:[%s11 + $0x7c] sm:$0xf]
  %v1250 = vld [vmem:[%s12] sm:$0x1]
  %v1252 = vlaneseq
  %v1253 = vshrl.u32 %v1252, 7
  %v1254 = vsub.s32 0, %v1253
  %v1255 = vrot.slane %v1250, %v1254
  %v1289 = vunpack.c.l.b16 %v1218
  %v1290 = vunpack.c.l.b16 %v1219
  %v1291 = vunpack.c.l.b16 %v1220
  %v1292 = vunpack.c.l.b16 %v1221
  %v1293 = vunpack.c.l.b16 %v1222
  %v1294 = vunpack.c.l.b16 %v1223
  %v1295 = vunpack.c.l.b16 %v1224
  %v1296 = vunpack.c.l.b16 %v1225
  %v1297 = vunpack.c.l.b16 %v1226
  %v1298 = vunpack.c.l.b16 %v1227
  %v1299 = vunpack.c.l.b16 %v1228
  %v1300 = vunpack.c.l.b16 %v1229
  %v1301 = vunpack.c.l.b16 %v1230
  %v1302 = vunpack.c.l.b16 %v1231
  %v1303 = vunpack.c.l.b16 %v1232
  %v1304 = vunpack.c.l.b16 %v1233
  %v1305 = vunpack.c.l.b16 %v1234
  %v1306 = vunpack.c.l.b16 %v1235
  %v1307 = vunpack.c.l.b16 %v1236
  %v1308 = vunpack.c.l.b16 %v1237
  %v1309 = vunpack.c.l.b16 %v1238
  %v1310 = vunpack.c.l.b16 %v1239
  %v1311 = vunpack.c.l.b16 %v1240
  %v1312 = vunpack.c.l.b16 %v1241
  %v1313 = vunpack.c.l.b16 %v1242
  %v1314 = vunpack.c.l.b16 %v1243
  %v1315 = vunpack.c.l.b16 %v1244
  %v1316 = vunpack.c.l.b16 %v1245
  %v1317 = vunpack.c.l.b16 %v1246
  %v1318 = vunpack.c.l.b16 %v1247
  %v1319 = vunpack.c.l.b16 %v1248
  %v1320 = vunpack.c.l.b16 %v1249
  %v1321 = vpack.c.b16 %v1290, %v1289
  %v1322 = vpack.c.b16 %v1292, %v1291
  %v1323 = vpack.c.b16 %v1294, %v1293
  %v1324 = vpack.c.b16 %v1296, %v1295
  %v1325 = vpack.c.b16 %v1298, %v1297
  %v1326 = vpack.c.b16 %v1300, %v1299
  %v1327 = vpack.c.b16 %v1302, %v1301
  %v1328 = vpack.c.b16 %v1304, %v1303
  %v1329 = vpack.c.b16 %v1306, %v1305
  %v1330 = vpack.c.b16 %v1308, %v1307
  %v1331 = vpack.c.b16 %v1310, %v1309
  %v1332 = vpack.c.b16 %v1312, %v1311
  %v1333 = vpack.c.b16 %v1314, %v1313
  %v1334 = vpack.c.b16 %v1316, %v1315
  %v1335 = vpack.c.b16 %v1318, %v1317
  %v1336 = vpack.c.b16 %v1320, %v1319
  %1353 = vmatprep.subr.bf16.mxu0 0
  %1354 = vmatpush1.bf16.msra.mxu0 %v1321
  %1355 = vmatprep.subr.bf16.mxu0 0
  %1356 = vmatpush1.bf16.msra.mxu0 %v1322
  %1357 = vmatprep.subr.bf16.mxu0 0
  %1358 = vmatpush1.bf16.msra.mxu0 %v1323
  %1359 = vmatprep.subr.bf16.mxu0 0
  %1360 = vmatpush1.bf16.msra.mxu0 %v1324
  %1361 = vmatprep.subr.bf16.mxu0 0
  %1362 = vmatpush1.bf16.msra.mxu0 %v1325
  %1363 = vmatprep.subr.bf16.mxu0 0
  %1364 = vmatpush1.bf16.msra.mxu0 %v1326
  %1365 = vmatprep.subr.bf16.mxu0 0
  %1366 = vmatpush1.bf16.msra.mxu0 %v1327
  %1367 = vmatprep.subr.bf16.mxu0 0
  %1368 = vmatpush1.bf16.msra.mxu0 %v1328
  %1369 = vmatprep.subr.bf16.mxu0 0
  %1370 = vmatpush1.bf16.msra.mxu0 %v1329
  %1371 = vmatprep.subr.bf16.mxu0 0
  %1372 = vmatpush1.bf16.msra.mxu0 %v1330
  %1373 = vmatprep.subr.bf16.mxu0 0
  %1374 = vmatpush1.bf16.msra.mxu0 %v1331
  %1375 = vmatprep.subr.bf16.mxu0 0
  %1376 = vmatpush1.bf16.msra.mxu0 %v1332
  %1377 = vmatprep.subr.bf16.mxu0 0
  %1378 = vmatpush1.bf16.msra.mxu0 %v1333
  %1379 = vmatprep.subr.bf16.mxu0 0
  %1380 = vmatpush1.bf16.msra.mxu0 %v1334
  %1381 = vmatprep.subr.bf16.mxu0 0
  %1382 = vmatpush1.bf16.msra.mxu0 %v1335
  %1383 = vmatprep.subr.bf16.mxu0 0
  %1384 = vmatpush1.bf16.msra.mxu0 %v1336
  %1385 = vmatprep.mubr.bf16.mxu0 %v1217
  %1386 = vmatmul.mubr.bf16.gmra.mrb[0].mxu0 %v1216
  %v1387 = vpop.f32.mrb[0].mxu0
  %v1388 = vadd.f32 %v1255, %v1387
  %v1389 = vpop.f32.mrb[0].mxu0
  %v1390 = vpop.f32.mrb[0].mxu0
  %v1391 = vadd.f32 %v1255, %v1390
  %v1392 = vpop.f32.mrb[0].mxu0
  %1393 = vdwg.mxu0
  %1394 = vst [vmem:[%s14] sm:$0xff] %v1388
  %1395 = vst [vmem:[%s14 + $0x8] sm:$0xff] %v1391
  // Predicated region
  $region54: #{_lambda_.9} parent=0 // pred_check
    _
  $region55: #{_lambda_.9} parent=0 // pred_check_branch
    %1397 = sbr.rel (0) target = $region57
  $region56: #{_lambda_.9} parent=0 // pred_region
    _
  $region57: #{_lambda_.9} parent=0 // pred_fallthru
    _
  // Predicated region
  $region58: #{_lambda_.9} parent=0 // pred_check
    _
  $region59: #{_lambda_.9} parent=0 // pred_check_branch
    %1399 = sbr.rel (0) target = $region61
  $region60: #{_lambda_.9} parent=0 // pred_region
    _
  $region61: #{_lambda_.9} parent=0 // pred_fallthru
    _
  // Predicated region
  $region62: #{_lambda_.9} parent=0 // pred_check
    _
  $region63: #{_lambda_.9} parent=0 // pred_check_branch
    %1401 = sbr.rel (0) target = $region65
  $region64: #{_lambda_.9} parent=0 // pred_region
    _
  $region65: #{_lambda_.9} parent=0 // pred_fallthru
    _
  // Predicated region
  $region66: #{_lambda_.9} parent=0 // pred_check
    _
  $region67: #{_lambda_.9} parent=0 // pred_check_branch
    %1403 = sbr.rel (0) target = $region69
  $region68: #{_lambda_.9} parent=0 // pred_region
    _
  $region69: #{_lambda_.9} parent=0 // pred_fallthru
    _

</llo_original>
